<compile_context>
chip_gen: v6e
topology: v6e:2x2x1
jax: 0.10.0
libtpu: 0.0.40
codegen_flags: <defaults>
</compile_context>

<pallas_src>
import jax
import jax.numpy as jnp
from jax.experimental import pallas as pl
from jax.experimental.pallas import tpu as pltpu


# --------------------------------------------------------------------------------------
# Pallas kernel: forward + analytic d(sdf)/d(points) for one (batch, point-tile) block.
# In-kernel layout is transposed: features on sublanes, points on the 128-lane axis.
# --------------------------------------------------------------------------------------
def _make_sdf_kernel(num_layers, skip_layers, hidden_dim, fwd_dtype, bwd_dtype):
    skips = tuple(skip_layers)                        # sorted, already range-validated
    skip_slot = {s: 1 + k for k, s in enumerate(skips)}   # slot in the points-part stacks
    skipset = frozenset(skips)
    H = hidden_dim

    def kernel(p_ref, fwd_hh_ref, bwd_hh_ref, fwd_p_ref, bwd_p_ref, bias_ref,
               head_ref, out_ref):
        p = p_ref[0]                                  # [3, TN] f32 points (xyz on sublanes)
        tn = p.shape[-1]
        p_f = p.astype(fwd_dtype)                     # cast once; weights pre-cast in wrapper

        def fmm(w, x):                                # forward matmul (MXU, f32 accumulation)
            return jnp.dot(w, x.astype(fwd_dtype), preferred_element_type=jnp.float32)

        def bmm(w, x):                                # backward matmul (MXU, f32 accumulation)
            return jnp.dot(w, x.astype(bwd_dtype), preferred_element_type=jnp.float32)

        # ------------------------------ forward ------------------------------
        pre = fmm(fwd_p_ref[0], p_f) + bias_ref[0, 0]             # [H, TN]; latent folded in bias
        mask = pre > 0.0
        h = jnp.where(mask, pre, 0.0)
        masks = [mask]                                # TODO(synk): int8 masks if v7x VMEM-bound
        for i in range(1, num_layers):
            pre = fmm(fwd_hh_ref[i - 1], h)
            if i in skipset:
                pre = pre + fmm(fwd_p_ref[skip_slot[i]], p_f)
            pre = pre + bias_ref[0, i]
            mask = pre > 0.0
            masks.append(mask)
            h = jnp.where(mask, pre, 0.0)

        head = head_ref[...]                          # [H+1, 1] f32 (rows 0..H-1: w, row H: b)
        w_head = head[:H]                             # [H, 1]
        b_head = head[H:]                             # [1, 1]
        sdf = jnp.sum(w_head * h, axis=0, keepdims=True) + b_head            # [1, TN]

        # --------- backward: d sdf / d points (weights re-read from refs) ----------
        g = jnp.broadcast_to(w_head, (H, tn))                                 # [H, TN]
        gx = jnp.zeros((3, tn), jnp.float32)                                  # [3, TN]
        for i in range(num_layers - 1, 0, -1):
            g = jnp.where(masks[i], g, 0.0)
            if i in skipset:
                gx = gx + bmm(bwd_p_ref[skip_slot[i]], g)
            g = bmm(bwd_hh_ref[i - 1], g)
        g = jnp.where(masks[0], g, 0.0)
        gx = gx + bmm(bwd_p_ref[0], g)

        # Lane-dense packed output: rows = (sdf, d/dx, d/dy, d/dz), points on lanes.
        out_ref[0] = jnp.concatenate([sdf, gx], axis=0)                       # [4, TN]

    return kernel


def _choose_tn(N, B, H):
    """Point-tile (lane) size: multiple of 128, scaled with H (small H -> larger TN so the
    ~0.35us/step overhead amortizes; H>=512 -> 512 to respect v7x's smaller VMEM), and at
    least 2 total grid steps so megacore parts can shard the parallel grid."""
    tn_max = 2048 if H <= 64 else (1024 if H <= 256 else 512)
    n128 = -(-N // 128) * 128
    tn = min(tn_max, n128)
    while B * (-(-N // tn)) < 2 and tn > 128:
        tn = max(128, (tn // 2) // 128 * 128)
    return tn


# --------------------------------------------------------------------------------------
# Wrapper: embedding lookup, weight packing / latent->bias folding (tiny JAX glue),
# hot path in one pallas_call.
# --------------------------------------------------------------------------------------
def latent_sdf_forward(points, shape_ids, params, *, num_layers, skip_connections,
                       hidden_dim, tn=None,
                       fwd_matmul_dtype=jnp.bfloat16,
                       bwd_matmul_dtype=jnp.float32):
    B, N, _ = points.shape
    H = hidden_dim
    skips = sorted({int(s) for s in skip_connections if 1 <= int(s) < num_layers})
    skipset = set(skips)
    Ws, bs = params["Ws"], params["bs"]               # W_i: [in, out], b_i: [out]

    latent = jnp.take(params["embedding"], shape_ids, axis=0).astype(jnp.float32)  # [B, L]

    if tn is None:
        tn = _choose_tn(N, B, H)
    n_tiles = -(-N // tn)
    N_pad = n_tiles * tn

    # Points transposed to [B, 3, N_pad]: xyz on sublanes, point index on lanes.
    pts_t = jnp.transpose(points.astype(jnp.float32), (0, 2, 1))
    if N_pad != N:
        pts_t = jnp.pad(pts_t, ((0, 0), (0, 0), (0, N_pad - N)))

    # ---- pack weights into a handful of stacked resident arrays ----
    # fwd_* are [out, in] (cast once to fwd dtype); bwd_* are [in, out] (cast once to bwd dtype).
    fwd_hh, bwd_hh = [], []
    fwd_p, bwd_p = [Ws[0][:3, :].T], [Ws[0][:3, :]]
    # Per-layer bias columns; layer-0/skip-layer latent contribution folded in -> [B, nL, H, 1].
    bias_rows = [bs[0].reshape(-1)[None, :] + latent @ Ws[0][3:, :]]

    for i in range(1, num_layers):
        Wi, bi = Ws[i], bs[i].reshape(-1)
        if i in skipset:
            Wh, Wp, Wl = Wi[:H, :], Wi[H:H + 3, :], Wi[H + 3:, :]
            fwd_hh.append(Wh.T); bwd_hh.append(Wh)
            fwd_p.append(Wp.T);  bwd_p.append(Wp)
            bias_rows.append(bi[None, :] + latent @ Wl)
        else:
            fwd_hh.append(Wi.T); bwd_hh.append(Wi)
            bias_rows.append(jnp.broadcast_to(bi[None, :], (B, H)))

    if not fwd_hh:                       # num_layers == 1: dummy stack, never read in-kernel
        fwd_hh = [jnp.zeros((H, H), jnp.float32)]
        bwd_hh = [jnp.zeros((H, H), jnp.float32)]

    fwd_hh = jnp.stack(fwd_hh).astype(fwd_matmul_dtype)            # [nH, H, H]
    bwd_hh = jnp.stack(bwd_hh).astype(bwd_matmul_dtype)            # [nH, H, H]
    fwd_p = jnp.stack(fwd_p).astype(fwd_matmul_dtype)              # [nP, H, 3]
    bwd_p = jnp.stack(bwd_p).astype(bwd_matmul_dtype)              # [nP, 3, H]
    bias_st = jnp.stack(bias_rows, axis=1)[..., None].astype(jnp.float32)   # [B, nL, H, 1]
    head = jnp.concatenate([Ws[num_layers].reshape(H, 1),
                            bs[num_layers].reshape(1, 1)], axis=0).astype(jnp.float32)  # [H+1,1]

    kernel = _make_sdf_kernel(num_layers, skips, H, fwd_matmul_dtype, bwd_matmul_dtype)

    def run(single_buffer_residents):
        def resident(shape):                       # constant-index resident weight spec
            kwargs = {"pipeline_mode": pl.Buffered(1)} if single_buffer_residents else {}
            return pl.BlockSpec(shape, lambda *_: (0,) * len(shape), **kwargs)

        in_specs = [
            pl.BlockSpec((1, 3, tn), lambda b, j: (b, 0, j)),      # streamed points
            resident(fwd_hh.shape),
            resident(bwd_hh.shape),
            resident(fwd_p.shape),
            resident(bwd_p.shape),
            pl.BlockSpec((1,) + bias_st.shape[1:], lambda b, j: (b, 0, 0, 0)),  # per-batch bias
            resident(head.shape),
        ]
        return pl.pallas_call(
            kernel,
            out_shape=jax.ShapeDtypeStruct((B, 4, N_pad), jnp.float32),
            grid_spec=pltpu.PrefetchScalarGridSpec(
                num_scalar_prefetch=0,
                grid=(B, n_tiles),
                in_specs=in_specs,
                out_specs=pl.BlockSpec((1, 4, tn), lambda b, j: (b, 0, j)),
            ),
            compiler_params=pltpu.CompilerParams(
                dimension_semantics=("parallel", "parallel"),
                vmem_limit_bytes=48 * 1024 * 1024),
        )(pts_t, fwd_hh, bwd_hh, fwd_p, bwd_p, bias_st, head)

    try:
        packed = run(True)       # single-buffered residents: no wasted 2x weight VMEM
    except Exception:            # pragma: no cover -- jax build without Buffered(1) support
        packed = run(False)

    packed = packed[:, :, :N]                                       # drop lane padding
    sdf = jnp.transpose(packed[:, 0:1, :], (0, 2, 1))               # [B, N, 1]
    grads = jnp.transpose(packed[:, 1:4, :], (0, 2, 1))             # [B, N, 3]
    return sdf, grads


# --------------------------------------------------------------------------------------
# Deterministic parameter init (nn.Linear-style init + sphere init + Embedding).
# Weight layout: W_i [in, out], b_i [out]. The layer index used by the forward pass
# decides the fan-in at skip layers (resolves the module's init/forward index mismatch).
# --------------------------------------------------------------------------------------
def init_params(key, *, dim_latent, num_shapes, hidden_dim, num_layers, skip_connections,
                use_sphere_init=True, sphere_radius=1.0):
    d_in = 3 + dim_latent
    skips = set(int(s) for s in skip_connections)
    keys = jax.random.split(key, num_layers + 2)

    def linear(k, fan_in, fan_out):
        kw, kb = jax.random.split(k)
        bound = 1.0 / (fan_in ** 0.5)
        W = jax.random.uniform(kw, (fan_in, fan_out), jnp.float32, -bound, bound)
        b = jax.random.uniform(kb, (fan_out,), jnp.float32, -bound, bound)
        return W, b

    Ws, bs = [], []
    W, b = linear(keys[0], d_in, hidden_dim)                  # layer 0: (3+L) -> H
    Ws.append(W); bs.append(b)
    for li in range(1, num_layers):                           # layers 1..num_layers-1
        fan_in = hidden_dim + d_in if li in skips else hidden_dim
        W, b = linear(keys[li], fan_in, hidden_dim)
        Ws.append(W); bs.append(b)
    Wh, bh = linear(keys[num_layers], hidden_dim, 1)          # sdf head: H -> 1
    Ws.append(Wh); bs.append(bh)

    if use_sphere_init:
        Ws[0] = Ws[0].at[:3, 0].set(1.0)
        bs[0] = bs[0].at[0].set(0.0)
        Ws[-1] = Ws[-1].at[0, 0].set(1.0)
        bs[-1] = bs[-1].at[0].set(-sphere_radius)

    embedding = 1e-4 * jax.random.normal(keys[num_layers + 1],
                                         (num_shapes, dim_latent), jnp.float32)
    return {"Ws": Ws, "bs": bs, "embedding": embedding}


# --------------------------------------------------------------------------------------
# Pure-JAX reference (full f32 precision).  Also returns, per point, the minimum |pre-act|
# over all hidden units ("margin"): where margin is large, ReLU branches provably cannot
# flip under bf16 rounding, so the analytic gradient must match the reference exactly.
# --------------------------------------------------------------------------------------
def _ref_forward(points, shape_ids, params, *, num_layers, skip_connections, hidden_dim):
    skips = set(int(s) for s in skip_connections if 1 <= int(s) < num_layers)
    B, N, _ = points.shape
    latent = jnp.take(params["embedding"], shape_ids, axis=0)
    latent_exp = jnp.broadcast_to(latent[:, None, :], (B, N, latent.shape[-1]))
    x_in = jnp.concatenate([points, latent_exp], axis=-1).reshape(B * N, -1)
    Ws, bs = params["Ws"], params["bs"]

    def fwd(x):
        pre = x @ Ws[0] + bs[0]
        margin = jnp.min(jnp.abs(pre), axis=-1)
        h = jax.nn.relu(pre)
        for i in range(1, num_layers):
            z = jnp.concatenate([h, x], axis=-1) if i in skips else h
            pre = z @ Ws[i] + bs[i]
            margin = jnp.minimum(margin, jnp.min(jnp.abs(pre), axis=-1))
            h = jax.nn.relu(pre)
        return h @ Ws[num_layers] + bs[num_layers], margin

    def loss(x):
        s, m = fwd(x)
        return s.sum(), (s, m)

    with jax.default_matmul_precision("highest"):
        grad_full, (sdf, margin) = jax.grad(loss, has_aux=True)(x_in)
    return (sdf.reshape(B, N, 1), grad_full[:, :3].reshape(B, N, 3),
            margin.reshape(B, N))


if __name__ == "__main__":
    # Small, module-consistent config. N is not a multiple of 128 to exercise lane padding.
    dim_latent = 16
    num_shapes = 8
    hidden_dim = 32
    num_layers = 4
    skip_connections = [2]
    B, N = 2, 200

    key = jax.random.PRNGKey(0)
    kp, kx = jax.random.split(key, 2)
    params = init_params(kp, dim_latent=dim_latent, num_shapes=num_shapes,
                         hidden_dim=hidden_dim, num_layers=num_layers,
                         skip_connections=skip_connections,
                         use_sphere_init=True, sphere_radius=1.0)

    points = jax.random.normal(kx, (B, N, 3), jnp.float32)     # [B, N, 3]
    shape_ids = jnp.array([0, 3], dtype=jnp.int32)             # [B]

    sdf, grads = latent_sdf_forward(points, shape_ids, params,
                                    num_layers=num_layers,
                                    skip_connections=skip_connections,
                                    hidden_dim=hidden_dim)
    jax.block_until_ready((sdf, grads))
    assert sdf.shape == (B, N, 1) and grads.shape == (B, N, 3)

    # ---- silent correctness check vs. a full-precision pure-JAX reference ----
    sdf_ref, grads_ref, margin = _ref_forward(points, shape_ids, params,
                                              num_layers=num_layers,
                                              skip_connections=skip_connections,
                                              hidden_dim=hidden_dim)

    # SDF is insensitive to ReLU-boundary ties (a flipped unit has pre ~ 0, so its forward
    # contribution is ~0); bf16-operand drift at these sizes is ~1e-3.
    assert jnp.allclose(sdf, sdf_ref, atol=3e-2, rtol=3e-2)

    # Gradients of a ReLU MLP are piecewise constant in the activations.  At points whose
    # pre-activations all sit well away from 0 the kernel's masks provably equal the f32
    # reference's, so the analytic (f32-backward) gradient must match tightly there.
    safe = (margin > 2e-3)[..., None]
    safe_frac = jnp.mean(safe.astype(jnp.float32))
    assert safe_frac > 0.01, safe_frac
    assert jnp.allclose(jnp.where(safe, grads, grads_ref), grads_ref, atol=1e-2, rtol=1e-2)

    # Globally, tolerate the rare points where bf16 forward rounding legitimately flips a
    # ReLU branch sitting exactly at its boundary (which changes that point's true gradient).
    err = jnp.abs(grads - grads_ref)
    tol = 5e-2 + 5e-2 * jnp.abs(grads_ref)
    assert jnp.mean((err <= tol).astype(jnp.float32)) >= 0.93
    assert jnp.median(err) < 1e-2

    print("KERNEL_OK")
</pallas_src>

<mosaic_0001>
module attributes {stable_mosaic.version = 11 : i64} {
  func.func @kernel(%arg0: i32, %arg1: i32, %arg2: memref<1x3x256xf32, #tpu.memory_space<vmem>>, %arg3: memref<3x32x32xbf16, #tpu.memory_space<vmem>>, %arg4: memref<3x32x32xf32, #tpu.memory_space<vmem>>, %arg5: memref<2x32x3xbf16, #tpu.memory_space<vmem>>, %arg6: memref<2x3x32xf32, #tpu.memory_space<vmem>>, %arg7: memref<1x4x32x1xf32, #tpu.memory_space<vmem>>, %arg8: memref<33x1xf32, #tpu.memory_space<vmem>>, %arg9: memref<1x4x256xf32, #tpu.memory_space<vmem>>) attributes {dimension_semantics = [#tpu.dimension_semantics<parallel>, #tpu.dimension_semantics<parallel>], iteration_bounds = array<i64: 2, 1>, scalar_prefetch = 0 : i64, scratch_operands = 0 : i64, tpu.core_type = #tpu.core_type<tc>, window_params = [{transform_indices = @transform_0, window_bounds = array<i64: 1, 3, 256>}, {pipeline_mode = #tpu.pipeline_mode<synchronous>, transform_indices = @transform_1, window_bounds = array<i64: 3, 32, 32>}, {pipeline_mode = #tpu.pipeline_mode<synchronous>, transform_indices = @transform_2, window_bounds = array<i64: 3, 32, 32>}, {pipeline_mode = #tpu.pipeline_mode<synchronous>, transform_indices = @transform_3, window_bounds = array<i64: 2, 32, 3>}, {pipeline_mode = #tpu.pipeline_mode<synchronous>, transform_indices = @transform_4, window_bounds = array<i64: 2, 3, 32>}, {transform_indices = @transform_5, window_bounds = array<i64: 1, 4, 32, 1>}, {pipeline_mode = #tpu.pipeline_mode<synchronous>, transform_indices = @transform_6, window_bounds = array<i64: 33, 1>}, {transform_indices = @transform_7, window_bounds = array<i64: 1, 4, 256>}]} {
    %c0 = arith.constant 0 : index
    %c0_0 = arith.constant 0 : index
    %c0_1 = arith.constant 0 : index
    %0 = vector.load %arg2[%c0, %c0_0, %c0_1] : memref<1x3x256xf32, #tpu.memory_space<vmem>>, vector<1x3x256xf32>
    %1 = vector.shape_cast %0 : vector<1x3x256xf32> to vector<3x256xf32>
    %2 = arith.truncf %1 : vector<3x256xf32> to vector<3x256xbf16>
    %c0_2 = arith.constant 0 : index
    %c0_3 = arith.constant 0 : index
    %c0_4 = arith.constant 0 : index
    %3 = vector.load %arg5[%c0_2, %c0_3, %c0_4] : memref<2x32x3xbf16, #tpu.memory_space<vmem>>, vector<1x32x3xbf16>
    %4 = vector.shape_cast %3 : vector<1x32x3xbf16> to vector<32x3xbf16>
    %cst = arith.constant dense<0.000000e+00> : vector<32x256xf32>
    %5 = tpu.matmul %4, %2, %cst {dimension_numbers = #tpu.dot_dimension_numbers<[1], [0], [0], [1], [0, 0, 1, 1], [], []>} : vector<32x3xbf16>, vector<3x256xbf16>, vector<32x256xf32> -> vector<32x256xf32>
    %c0_5 = arith.constant 0 : index
    %c0_6 = arith.constant 0 : index
    %c0_7 = arith.constant 0 : index
    %c0_8 = arith.constant 0 : index
    %6 = vector.load %arg7[%c0_5, %c0_6, %c0_7, %c0_8] : memref<1x4x32x1xf32, #tpu.memory_space<vmem>>, vector<1x1x32x1xf32>
    %7 = vector.shape_cast %6 : vector<1x1x32x1xf32> to vector<32x1xf32>
    %8 = vector.broadcast %7 : vector<32x1xf32> to vector<32x256xf32>
    %9 = arith.addf %5, %8 : vector<32x256xf32>
    %cst_9 = arith.constant 0.000000e+00 : f32
    %10 = vector.broadcast %cst_9 : f32 to vector<32x256xf32>
    %11 = arith.cmpf ogt, %9, %10 : vector<32x256xf32>
    %cst_10 = arith.constant 0.000000e+00 : f32
    %12 = vector.broadcast %cst_10 : f32 to vector<32x256xf32>
    %13 = arith.select %11, %9, %12 : vector<32x256xi1>, vector<32x256xf32>
    %c0_11 = arith.constant 0 : index
    %c0_12 = arith.constant 0 : index
    %c0_13 = arith.constant 0 : index
    %14 = vector.load %arg3[%c0_11, %c0_12, %c0_13] : memref<3x32x32xbf16, #tpu.memory_space<vmem>>, vector<1x32x32xbf16>
    %15 = vector.shape_cast %14 : vector<1x32x32xbf16> to vector<32x32xbf16>
    %16 = arith.truncf %13 : vector<32x256xf32> to vector<32x256xbf16>
    %cst_14 = arith.constant dense<0.000000e+00> : vector<32x256xf32>
    %17 = tpu.matmul %15, %16, %cst_14 {dimension_numbers = #tpu.dot_dimension_numbers<[1], [0], [0], [1], [0, 0, 1, 1], [], []>} : vector<32x32xbf16>, vector<32x256xbf16>, vector<32x256xf32> -> vector<32x256xf32>
    %c0_15 = arith.constant 0 : index
    %c1 = arith.constant 1 : index
    %c0_16 = arith.constant 0 : index
    %c0_17 = arith.constant 0 : index
    %18 = vector.load %arg7[%c0_15, %c1, %c0_16, %c0_17] : memref<1x4x32x1xf32, #tpu.memory_space<vmem>>, vector<1x1x32x1xf32>
    %19 = vector.shape_cast %18 : vector<1x1x32x1xf32> to vector<32x1xf32>
    %20 = vector.broadcast %19 : vector<32x1xf32> to vector<32x256xf32>
    %21 = arith.addf %17, %20 : vector<32x256xf32>
    %cst_18 = arith.constant 0.000000e+00 : f32
    %22 = vector.broadcast %cst_18 : f32 to vector<32x256xf32>
    %23 = arith.cmpf ogt, %21, %22 : vector<32x256xf32>
    %cst_19 = arith.constant 0.000000e+00 : f32
    %24 = vector.broadcast %cst_19 : f32 to vector<32x256xf32>
    %25 = arith.select %23, %21, %24 : vector<32x256xi1>, vector<32x256xf32>
    %c1_20 = arith.constant 1 : index
    %c0_21 = arith.constant 0 : index
    %c0_22 = arith.constant 0 : index
    %26 = vector.load %arg3[%c1_20, %c0_21, %c0_22] : memref<3x32x32xbf16, #tpu.memory_space<vmem>>, vector<1x32x32xbf16>
    %27 = vector.shape_cast %26 : vector<1x32x32xbf16> to vector<32x32xbf16>
    %28 = arith.truncf %25 : vector<32x256xf32> to vector<32x256xbf16>
    %cst_23 = arith.constant dense<0.000000e+00> : vector<32x256xf32>
    %29 = tpu.matmul %27, %28, %cst_23 {dimension_numbers = #tpu.dot_dimension_numbers<[1], [0], [0], [1], [0, 0, 1, 1], [], []>} : vector<32x32xbf16>, vector<32x256xbf16>, vector<32x256xf32> -> vector<32x256xf32>
    %c1_24 = arith.constant 1 : index
    %c0_25 = arith.constant 0 : index
    %c0_26 = arith.constant 0 : index
    %30 = vector.load %arg5[%c1_24, %c0_25, %c0_26] : memref<2x32x3xbf16, #tpu.memory_space<vmem>>, vector<1x32x3xbf16>
    %31 = vector.shape_cast %30 : vector<1x32x3xbf16> to vector<32x3xbf16>
    %cst_27 = arith.constant dense<0.000000e+00> : vector<32x256xf32>
    %32 = tpu.matmul %31, %2, %cst_27 {dimension_numbers = #tpu.dot_dimension_numbers<[1], [0], [0], [1], [0, 0, 1, 1], [], []>} : vector<32x3xbf16>, vector<3x256xbf16>, vector<32x256xf32> -> vector<32x256xf32>
    %33 = arith.addf %29, %32 : vector<32x256xf32>
    %c0_28 = arith.constant 0 : index
    %c2 = arith.constant 2 : index
    %c0_29 = arith.constant 0 : index
    %c0_30 = arith.constant 0 : index
    %34 = vector.load %arg7[%c0_28, %c2, %c0_29, %c0_30] : memref<1x4x32x1xf32, #tpu.memory_space<vmem>>, vector<1x1x32x1xf32>
    %35 = vector.shape_cast %34 : vector<1x1x32x1xf32> to vector<32x1xf32>
    %36 = vector.broadcast %35 : vector<32x1xf32> to vector<32x256xf32>
    %37 = arith.addf %33, %36 : vector<32x256xf32>
    %cst_31 = arith.constant 0.000000e+00 : f32
    %38 = vector.broadcast %cst_31 : f32 to vector<32x256xf32>
    %39 = arith.cmpf ogt, %37, %38 : vector<32x256xf32>
    %cst_32 = arith.constant 0.000000e+00 : f32
    %40 = vector.broadcast %cst_32 : f32 to vector<32x256xf32>
    %41 = arith.select %39, %37, %40 : vector<32x256xi1>, vector<32x256xf32>
    %c2_33 = arith.constant 2 : index
    %c0_34 = arith.constant 0 : index
    %c0_35 = arith.constant 0 : index
    %42 = vector.load %arg3[%c2_33, %c0_34, %c0_35] : memref<3x32x32xbf16, #tpu.memory_space<vmem>>, vector<1x32x32xbf16>
    %43 = vector.shape_cast %42 : vector<1x32x32xbf16> to vector<32x32xbf16>
    %44 = arith.truncf %41 : vector<32x256xf32> to vector<32x256xbf16>
    %cst_36 = arith.constant dense<0.000000e+00> : vector<32x256xf32>
    %45 = tpu.matmul %43, %44, %cst_36 {dimension_numbers = #tpu.dot_dimension_numbers<[1], [0], [0], [1], [0, 0, 1, 1], [], []>} : vector<32x32xbf16>, vector<32x256xbf16>, vector<32x256xf32> -> vector<32x256xf32>
    %c0_37 = arith.constant 0 : index
    %c3 = arith.constant 3 : index
    %c0_38 = arith.constant 0 : index
    %c0_39 = arith.constant 0 : index
    %46 = vector.load %arg7[%c0_37, %c3, %c0_38, %c0_39] : memref<1x4x32x1xf32, #tpu.memory_space<vmem>>, vector<1x1x32x1xf32>
    %47 = vector.shape_cast %46 : vector<1x1x32x1xf32> to vector<32x1xf32>
    %48 = vector.broadcast %47 : vector<32x1xf32> to vector<32x256xf32>
    %49 = arith.addf %45, %48 : vector<32x256xf32>
    %cst_40 = arith.constant 0.000000e+00 : f32
    %50 = vector.broadcast %cst_40 : f32 to vector<32x256xf32>
    %51 = arith.cmpf ogt, %49, %50 : vector<32x256xf32>
    %cst_41 = arith.constant 0.000000e+00 : f32
    %52 = vector.broadcast %cst_41 : f32 to vector<32x256xf32>
    %53 = arith.select %51, %49, %52 : vector<32x256xi1>, vector<32x256xf32>
    %c0_42 = arith.constant 0 : index
    %c0_43 = arith.constant 0 : index
    %54 = vector.load %arg8[%c0_42, %c0_43] : memref<33x1xf32, #tpu.memory_space<vmem>>, vector<33x1xf32>
    %55 = vector.extract_strided_slice %54 {offsets = [0, 0], sizes = [32, 1], strides = [1, 1]} : vector<33x1xf32> to vector<32x1xf32>
    %56 = vector.extract_strided_slice %54 {offsets = [32, 0], sizes = [1, 1], strides = [1, 1]} : vector<33x1xf32> to vector<1x1xf32>
    %57 = vector.broadcast %55 : vector<32x1xf32> to vector<32x256xf32>
    %58 = arith.mulf %57, %53 : vector<32x256xf32>
    %cst_44 = arith.constant dense<0.000000e+00> : vector<256xf32>
    %59 = vector.multi_reduction <add>, %58, %cst_44 [0] : vector<32x256xf32> to vector<256xf32>
    %60 = vector.shape_cast %59 : vector<256xf32> to vector<1x256xf32>
    %61 = vector.broadcast %56 : vector<1x1xf32> to vector<1x256xf32>
    %62 = arith.addf %60, %61 : vector<1x256xf32>
    %63 = vector.shape_cast %55 : vector<32x1xf32> to vector<32x1xf32>
    %64 = vector.broadcast %63 : vector<32x1xf32> to vector<32x256xf32>
    %cst_45 = arith.constant 0.000000e+00 : f32
    %65 = vector.broadcast %cst_45 : f32 to vector<3x256xf32>
    %cst_46 = arith.constant 0.000000e+00 : f32
    %66 = vector.broadcast %cst_46 : f32 to vector<32x256xf32>
    %67 = arith.select %51, %64, %66 : vector<32x256xi1>, vector<32x256xf32>
    %c2_47 = arith.constant 2 : index
    %c0_48 = arith.constant 0 : index
    %c0_49 = arith.constant 0 : index
    %68 = vector.load %arg4[%c2_47, %c0_48, %c0_49] : memref<3x32x32xf32, #tpu.memory_space<vmem>>, vector<1x32x32xf32>
    %69 = vector.shape_cast %68 : vector<1x32x32xf32> to vector<32x32xf32>
    %cst_50 = arith.constant dense<0.000000e+00> : vector<32x256xf32>
    %70 = tpu.matmul %69, %67, %cst_50 {dimension_numbers = #tpu.dot_dimension_numbers<[1], [0], [0], [1], [0, 0, 1, 1], [], []>} : vector<32x32xf32>, vector<32x256xf32>, vector<32x256xf32> -> vector<32x256xf32>
    %cst_51 = arith.constant 0.000000e+00 : f32
    %71 = vector.broadcast %cst_51 : f32 to vector<32x256xf32>
    %72 = arith.select %39, %70, %71 : vector<32x256xi1>, vector<32x256xf32>
    %c1_52 = arith.constant 1 : index
    %c0_53 = arith.constant 0 : index
    %c0_54 = arith.constant 0 : index
    %73 = vector.load %arg6[%c1_52, %c0_53, %c0_54] : memref<2x3x32xf32, #tpu.memory_space<vmem>>, vector<1x3x32xf32>
    %74 = vector.shape_cast %73 : vector<1x3x32xf32> to vector<3x32xf32>
    %cst_55 = arith.constant dense<0.000000e+00> : vector<3x256xf32>
    %75 = tpu.matmul %74, %72, %cst_55 {dimension_numbers = #tpu.dot_dimension_numbers<[1], [0], [0], [1], [0, 0, 1, 1], [], []>} : vector<3x32xf32>, vector<32x256xf32>, vector<3x256xf32> -> vector<3x256xf32>
    %76 = arith.addf %65, %75 : vector<3x256xf32>
    %c1_56 = arith.constant 1 : index
    %c0_57 = arith.constant 0 : index
    %c0_58 = arith.constant 0 : index
    %77 = vector.load %arg4[%c1_56, %c0_57, %c0_58] : memref<3x32x32xf32, #tpu.memory_space<vmem>>, vector<1x32x32xf32>
    %78 = vector.shape_cast %77 : vector<1x32x32xf32> to vector<32x32xf32>
    %cst_59 = arith.constant dense<0.000000e+00> : vector<32x256xf32>
    %79 = tpu.matmul %78, %72, %cst_59 {dimension_numbers = #tpu.dot_dimension_numbers<[1], [0], [0], [1], [0, 0, 1, 1], [], []>} : vector<32x32xf32>, vector<32x256xf32>, vector<32x256xf32> -> vector<32x256xf32>
    %cst_60 = arith.constant 0.000000e+00 : f32
    %80 = vector.broadcast %cst_60 : f32 to vector<32x256xf32>
    %81 = arith.select %23, %79, %80 : vector<32x256xi1>, vector<32x256xf32>
    %c0_61 = arith.constant 0 : index
    %c0_62 = arith.constant 0 : index
    %c0_63 = arith.constant 0 : index
    %82 = vector.load %arg4[%c0_61, %c0_62, %c0_63] : memref<3x32x32xf32, #tpu.memory_space<vmem>>, vector<1x32x32xf32>
    %83 = vector.shape_cast %82 : vector<1x32x32xf32> to vector<32x32xf32>
    %cst_64 = arith.constant dense<0.000000e+00> : vector<32x256xf32>
    %84 = tpu.matmul %83, %81, %cst_64 {dimension_numbers = #tpu.dot_dimension_numbers<[1], [0], [0], [1], [0, 0, 1, 1], [], []>} : vector<32x32xf32>, vector<32x256xf32>, vector<32x256xf32> -> vector<32x256xf32>
    %cst_65 = arith.constant 0.000000e+00 : f32
    %85 = vector.broadcast %cst_65 : f32 to vector<32x256xf32>
    %86 = arith.select %11, %84, %85 : vector<32x256xi1>, vector<32x256xf32>
    %c0_66 = arith.constant 0 : index
    %c0_67 = arith.constant 0 : index
    %c0_68 = arith.constant 0 : index
    %87 = vector.load %arg6[%c0_66, %c0_67, %c0_68] : memref<2x3x32xf32, #tpu.memory_space<vmem>>, vector<1x3x32xf32>
    %88 = vector.shape_cast %87 : vector<1x3x32xf32> to vector<3x32xf32>
    %cst_69 = arith.constant dense<0.000000e+00> : vector<3x256xf32>
    %89 = tpu.matmul %88, %86, %cst_69 {dimension_numbers = #tpu.dot_dimension_numbers<[1], [0], [0], [1], [0, 0, 1, 1], [], []>} : vector<3x32xf32>, vector<32x256xf32>, vector<3x256xf32> -> vector<3x256xf32>
    %90 = arith.addf %76, %89 : vector<3x256xf32>
    %91 = tpu.concatenate %62, %90 in 0 : vector<1x256xf32>, vector<3x256xf32> -> vector<4x256xf32>
    %c0_70 = arith.constant 0 : index
    %c0_71 = arith.constant 0 : index
    %c0_72 = arith.constant 0 : index
    %92 = vector.load %arg9[%c0_70, %c0_71, %c0_72] : memref<1x4x256xf32, #tpu.memory_space<vmem>>, vector<1x4x256xf32>
    %93 = vector.shape_cast %92 : vector<1x4x256xf32> to vector<4x256xf32>
    %94 = vector.shape_cast %91 : vector<4x256xf32> to vector<1x4x256xf32>
    tpu.vector_store %arg9[%c0_70, %c0_71, %c0_72], %94 {strides = array<i32>} : memref<1x4x256xf32, #tpu.memory_space<vmem>>, vector<1x4x256xf32>,
    return
  }
  func.func @transform_0(%arg0: i32, %arg1: i32) -> (i32, i32, i32) {
    %c0_i32 = arith.constant 0 : i32
    %c0_i32_0 = arith.constant 0 : i32
    return %arg0, %c0_i32, %arg1 : i32, i32, i32
  }
  func.func @transform_1(%arg0: i32, %arg1: i32) -> (i32, i32, i32) {
    %c0_i32 = arith.constant 0 : i32
    %c0_i32_0 = arith.constant 0 : i32
    %c0_i32_1 = arith.constant 0 : i32
    %c0_i32_2 = arith.constant 0 : i32
    return %c0_i32, %c0_i32_0, %c0_i32_1 : i32, i32, i32
  }
  func.func @transform_2(%arg0: i32, %arg1: i32) -> (i32, i32, i32) {
    %c0_i32 = arith.constant 0 : i32
    %c0_i32_0 = arith.constant 0 : i32
    %c0_i32_1 = arith.constant 0 : i32
    %c0_i32_2 = arith.constant 0 : i32
    return %c0_i32, %c0_i32_0, %c0_i32_1 : i32, i32, i32
  }
  func.func @transform_3(%arg0: i32, %arg1: i32) -> (i32, i32, i32) {
    %c0_i32 = arith.constant 0 : i32
    %c0_i32_0 = arith.constant 0 : i32
    %c0_i32_1 = arith.constant 0 : i32
    %c0_i32_2 = arith.constant 0 : i32
    return %c0_i32, %c0_i32_0, %c0_i32_1 : i32, i32, i32
  }
  func.func @transform_4(%arg0: i32, %arg1: i32) -> (i32, i32, i32) {
    %c0_i32 = arith.constant 0 : i32
    %c0_i32_0 = arith.constant 0 : i32
    %c0_i32_1 = arith.constant 0 : i32
    %c0_i32_2 = arith.constant 0 : i32
    return %c0_i32, %c0_i32_0, %c0_i32_1 : i32, i32, i32
  }
  func.func @transform_5(%arg0: i32, %arg1: i32) -> (i32, i32, i32, i32) {
    %c0_i32 = arith.constant 0 : i32
    %c0_i32_0 = arith.constant 0 : i32
    %c0_i32_1 = arith.constant 0 : i32
    %c0_i32_2 = arith.constant 0 : i32
    return %arg0, %c0_i32, %c0_i32_0, %c0_i32_1 : i32, i32, i32, i32
  }
  func.func @transform_6(%arg0: i32, %arg1: i32) -> (i32, i32) {
    %c0_i32 = arith.constant 0 : i32
    %c0_i32_0 = arith.constant 0 : i32
    %c0_i32_1 = arith.constant 0 : i32
    return %c0_i32, %c0_i32_0 : i32, i32
  }
  func.func @transform_7(%arg0: i32, %arg1: i32) -> (i32, i32, i32) {
    %c0_i32 = arith.constant 0 : i32
    %c0_i32_0 = arith.constant 0 : i32
    return %arg0, %c0_i32, %arg1 : i32, i32, i32
  }
}

module attributes {stable_mosaic.version = 11 : i64} {
  func.func @kernel(%arg0: i32, %arg1: i32, %arg2: memref<1x3x256xf32, #tpu.memory_space<vmem>>, %arg3: memref<3x32x32xbf16, #tpu.memory_space<vmem>>, %arg4: memref<3x32x32xf32, #tpu.memory_space<vmem>>, %arg5: memref<2x32x3xbf16, #tpu.memory_space<vmem>>, %arg6: memref<2x3x32xf32, #tpu.memory_space<vmem>>, %arg7: memref<1x4x32x1xf32, #tpu.memory_space<vmem>>, %arg8: memref<33x1xf32, #tpu.memory_space<vmem>>, %arg9: memref<1x4x256xf32, #tpu.memory_space<vmem>>) attributes {dimension_semantics = [#tpu.dimension_semantics<parallel>, #tpu.dimension_semantics<parallel>], iteration_bounds = array<i64: 2, 1>, scalar_prefetch = 0 : i64, scratch_operands = 0 : i64, tpu.core_type = #tpu.core_type<tc>, window_params = [{transform_indices = @transform_0, window_bounds = array<i64: 1, 3, 256>}, {pipeline_mode = #tpu.pipeline_mode<synchronous>, transform_indices = @transform_1, window_bounds = array<i64: 3, 32, 32>}, {pipeline_mode = #tpu.pipeline_mode<synchronous>, transform_indices = @transform_2, window_bounds = array<i64: 3, 32, 32>}, {pipeline_mode = #tpu.pipeline_mode<synchronous>, transform_indices = @transform_3, window_bounds = array<i64: 2, 32, 3>}, {pipeline_mode = #tpu.pipeline_mode<synchronous>, transform_indices = @transform_4, window_bounds = array<i64: 2, 3, 32>}, {transform_indices = @transform_5, window_bounds = array<i64: 1, 4, 32, 1>}, {pipeline_mode = #tpu.pipeline_mode<synchronous>, transform_indices = @transform_6, window_bounds = array<i64: 33, 1>}, {transform_indices = @transform_7, window_bounds = array<i64: 1, 4, 256>}]} {
    %c0 = arith.constant 0 : index
    %c0_0 = arith.constant 0 : index
    %c0_1 = arith.constant 0 : index
    %0 = vector.load %arg2[%c0, %c0_0, %c0_1] : memref<1x3x256xf32, #tpu.memory_space<vmem>>, vector<1x3x256xf32>
    %1 = vector.shape_cast %0 : vector<1x3x256xf32> to vector<3x256xf32>
    %2 = arith.truncf %1 : vector<3x256xf32> to vector<3x256xbf16>
    %c0_2 = arith.constant 0 : index
    %c0_3 = arith.constant 0 : index
    %c0_4 = arith.constant 0 : index
    %3 = vector.load %arg5[%c0_2, %c0_3, %c0_4] : memref<2x32x3xbf16, #tpu.memory_space<vmem>>, vector<1x32x3xbf16>
    %4 = vector.shape_cast %3 : vector<1x32x3xbf16> to vector<32x3xbf16>
    %cst = arith.constant dense<0.000000e+00> : vector<32x256xf32>
    %5 = tpu.matmul %4, %2, %cst {dimension_numbers = #tpu.dot_dimension_numbers<[1], [0], [0], [1], [0, 0, 1, 1], [], []>} : vector<32x3xbf16>, vector<3x256xbf16>, vector<32x256xf32> -> vector<32x256xf32>
    %c0_5 = arith.constant 0 : index
    %c0_6 = arith.constant 0 : index
    %c0_7 = arith.constant 0 : index
    %c0_8 = arith.constant 0 : index
    %6 = vector.load %arg7[%c0_5, %c0_6, %c0_7, %c0_8] : memref<1x4x32x1xf32, #tpu.memory_space<vmem>>, vector<1x1x32x1xf32>
    %7 = vector.shape_cast %6 : vector<1x1x32x1xf32> to vector<32x1xf32>
    %8 = vector.broadcast %7 : vector<32x1xf32> to vector<32x256xf32>
    %9 = arith.addf %5, %8 : vector<32x256xf32>
    %cst_9 = arith.constant 0.000000e+00 : f32
    %10 = vector.broadcast %cst_9 : f32 to vector<32x256xf32>
    %11 = arith.cmpf ogt, %9, %10 : vector<32x256xf32>
    %cst_10 = arith.constant 0.000000e+00 : f32
    %12 = vector.broadcast %cst_10 : f32 to vector<32x256xf32>
    %13 = arith.select %11, %9, %12 : vector<32x256xi1>, vector<32x256xf32>
    %c0_11 = arith.constant 0 : index
    %c0_12 = arith.constant 0 : index
    %c0_13 = arith.constant 0 : index
    %14 = vector.load %arg3[%c0_11, %c0_12, %c0_13] : memref<3x32x32xbf16, #tpu.memory_space<vmem>>, vector<1x32x32xbf16>
    %15 = vector.shape_cast %14 : vector<1x32x32xbf16> to vector<32x32xbf16>
    %16 = arith.truncf %13 : vector<32x256xf32> to vector<32x256xbf16>
    %cst_14 = arith.constant dense<0.000000e+00> : vector<32x256xf32>
    %17 = tpu.matmul %15, %16, %cst_14 {dimension_numbers = #tpu.dot_dimension_numbers<[1], [0], [0], [1], [0, 0, 1, 1], [], []>} : vector<32x32xbf16>, vector<32x256xbf16>, vector<32x256xf32> -> vector<32x256xf32>
    %c0_15 = arith.constant 0 : index
    %c1 = arith.constant 1 : index
    %c0_16 = arith.constant 0 : index
    %c0_17 = arith.constant 0 : index
    %18 = vector.load %arg7[%c0_15, %c1, %c0_16, %c0_17] : memref<1x4x32x1xf32, #tpu.memory_space<vmem>>, vector<1x1x32x1xf32>
    %19 = vector.shape_cast %18 : vector<1x1x32x1xf32> to vector<32x1xf32>
    %20 = vector.broadcast %19 : vector<32x1xf32> to vector<32x256xf32>
    %21 = arith.addf %17, %20 : vector<32x256xf32>
    %cst_18 = arith.constant 0.000000e+00 : f32
    %22 = vector.broadcast %cst_18 : f32 to vector<32x256xf32>
    %23 = arith.cmpf ogt, %21, %22 : vector<32x256xf32>
    %cst_19 = arith.constant 0.000000e+00 : f32
    %24 = vector.broadcast %cst_19 : f32 to vector<32x256xf32>
    %25 = arith.select %23, %21, %24 : vector<32x256xi1>, vector<32x256xf32>
    %c1_20 = arith.constant 1 : index
    %c0_21 = arith.constant 0 : index
    %c0_22 = arith.constant 0 : index
    %26 = vector.load %arg3[%c1_20, %c0_21, %c0_22] : memref<3x32x32xbf16, #tpu.memory_space<vmem>>, vector<1x32x32xbf16>
    %27 = vector.shape_cast %26 : vector<1x32x32xbf16> to vector<32x32xbf16>
    %28 = arith.truncf %25 : vector<32x256xf32> to vector<32x256xbf16>
    %cst_23 = arith.constant dense<0.000000e+00> : vector<32x256xf32>
    %29 = tpu.matmul %27, %28, %cst_23 {dimension_numbers = #tpu.dot_dimension_numbers<[1], [0], [0], [1], [0, 0, 1, 1], [], []>} : vector<32x32xbf16>, vector<32x256xbf16>, vector<32x256xf32> -> vector<32x256xf32>
    %c1_24 = arith.constant 1 : index
    %c0_25 = arith.constant 0 : index
    %c0_26 = arith.constant 0 : index
    %30 = vector.load %arg5[%c1_24, %c0_25, %c0_26] : memref<2x32x3xbf16, #tpu.memory_space<vmem>>, vector<1x32x3xbf16>
    %31 = vector.shape_cast %30 : vector<1x32x3xbf16> to vector<32x3xbf16>
    %cst_27 = arith.constant dense<0.000000e+00> : vector<32x256xf32>
    %32 = tpu.matmul %31, %2, %cst_27 {dimension_numbers = #tpu.dot_dimension_numbers<[1], [0], [0], [1], [0, 0, 1, 1], [], []>} : vector<32x3xbf16>, vector<3x256xbf16>, vector<32x256xf32> -> vector<32x256xf32>
    %33 = arith.addf %29, %32 : vector<32x256xf32>
    %c0_28 = arith.constant 0 : index
    %c2 = arith.constant 2 : index
    %c0_29 = arith.constant 0 : index
    %c0_30 = arith.constant 0 : index
    %34 = vector.load %arg7[%c0_28, %c2, %c0_29, %c0_30] : memref<1x4x32x1xf32, #tpu.memory_space<vmem>>, vector<1x1x32x1xf32>
    %35 = vector.shape_cast %34 : vector<1x1x32x1xf32> to vector<32x1xf32>
    %36 = vector.broadcast %35 : vector<32x1xf32> to vector<32x256xf32>
    %37 = arith.addf %33, %36 : vector<32x256xf32>
    %cst_31 = arith.constant 0.000000e+00 : f32
    %38 = vector.broadcast %cst_31 : f32 to vector<32x256xf32>
    %39 = arith.cmpf ogt, %37, %38 : vector<32x256xf32>
    %cst_32 = arith.constant 0.000000e+00 : f32
    %40 = vector.broadcast %cst_32 : f32 to vector<32x256xf32>
    %41 = arith.select %39, %37, %40 : vector<32x256xi1>, vector<32x256xf32>
    %c2_33 = arith.constant 2 : index
    %c0_34 = arith.constant 0 : index
    %c0_35 = arith.constant 0 : index
    %42 = vector.load %arg3[%c2_33, %c0_34, %c0_35] : memref<3x32x32xbf16, #tpu.memory_space<vmem>>, vector<1x32x32xbf16>
    %43 = vector.shape_cast %42 : vector<1x32x32xbf16> to vector<32x32xbf16>
    %44 = arith.truncf %41 : vector<32x256xf32> to vector<32x256xbf16>
    %cst_36 = arith.constant dense<0.000000e+00> : vector<32x256xf32>
    %45 = tpu.matmul %43, %44, %cst_36 {dimension_numbers = #tpu.dot_dimension_numbers<[1], [0], [0], [1], [0, 0, 1, 1], [], []>} : vector<32x32xbf16>, vector<32x256xbf16>, vector<32x256xf32> -> vector<32x256xf32>
    %c0_37 = arith.constant 0 : index
    %c3 = arith.constant 3 : index
    %c0_38 = arith.constant 0 : index
    %c0_39 = arith.constant 0 : index
    %46 = vector.load %arg7[%c0_37, %c3, %c0_38, %c0_39] : memref<1x4x32x1xf32, #tpu.memory_space<vmem>>, vector<1x1x32x1xf32>
    %47 = vector.shape_cast %46 : vector<1x1x32x1xf32> to vector<32x1xf32>
    %48 = vector.broadcast %47 : vector<32x1xf32> to vector<32x256xf32>
    %49 = arith.addf %45, %48 : vector<32x256xf32>
    %cst_40 = arith.constant 0.000000e+00 : f32
    %50 = vector.broadcast %cst_40 : f32 to vector<32x256xf32>
    %51 = arith.cmpf ogt, %49, %50 : vector<32x256xf32>
    %cst_41 = arith.constant 0.000000e+00 : f32
    %52 = vector.broadcast %cst_41 : f32 to vector<32x256xf32>
    %53 = arith.select %51, %49, %52 : vector<32x256xi1>, vector<32x256xf32>
    %c0_42 = arith.constant 0 : index
    %c0_43 = arith.constant 0 : index
    %54 = vector.load %arg8[%c0_42, %c0_43] : memref<33x1xf32, #tpu.memory_space<vmem>>, vector<33x1xf32>
    %55 = vector.extract_strided_slice %54 {offsets = [0, 0], sizes = [32, 1], strides = [1, 1]} : vector<33x1xf32> to vector<32x1xf32>
    %56 = vector.extract_strided_slice %54 {offsets = [32, 0], sizes = [1, 1], strides = [1, 1]} : vector<33x1xf32> to vector<1x1xf32>
    %57 = vector.broadcast %55 : vector<32x1xf32> to vector<32x256xf32>
    %58 = arith.mulf %57, %53 : vector<32x256xf32>
    %cst_44 = arith.constant dense<0.000000e+00> : vector<256xf32>
    %59 = vector.multi_reduction <add>, %58, %cst_44 [0] : vector<32x256xf32> to vector<256xf32>
    %60 = vector.shape_cast %59 : vector<256xf32> to vector<1x256xf32>
    %61 = vector.broadcast %56 : vector<1x1xf32> to vector<1x256xf32>
    %62 = arith.addf %60, %61 : vector<1x256xf32>
    %63 = vector.shape_cast %55 : vector<32x1xf32> to vector<32x1xf32>
    %64 = vector.broadcast %63 : vector<32x1xf32> to vector<32x256xf32>
    %cst_45 = arith.constant 0.000000e+00 : f32
    %65 = vector.broadcast %cst_45 : f32 to vector<3x256xf32>
    %cst_46 = arith.constant 0.000000e+00 : f32
    %66 = vector.broadcast %cst_46 : f32 to vector<32x256xf32>
    %67 = arith.select %51, %64, %66 : vector<32x256xi1>, vector<32x256xf32>
    %c2_47 = arith.constant 2 : index
    %c0_48 = arith.constant 0 : index
    %c0_49 = arith.constant 0 : index
    %68 = vector.load %arg4[%c2_47, %c0_48, %c0_49] : memref<3x32x32xf32, #tpu.memory_space<vmem>>, vector<1x32x32xf32>
    %69 = vector.shape_cast %68 : vector<1x32x32xf32> to vector<32x32xf32>
    %cst_50 = arith.constant dense<0.000000e+00> : vector<32x256xf32>
    %70 = tpu.matmul %69, %67, %cst_50 {dimension_numbers = #tpu.dot_dimension_numbers<[1], [0], [0], [1], [0, 0, 1, 1], [], []>} : vector<32x32xf32>, vector<32x256xf32>, vector<32x256xf32> -> vector<32x256xf32>
    %cst_51 = arith.constant 0.000000e+00 : f32
    %71 = vector.broadcast %cst_51 : f32 to vector<32x256xf32>
    %72 = arith.select %39, %70, %71 : vector<32x256xi1>, vector<32x256xf32>
    %c1_52 = arith.constant 1 : index
    %c0_53 = arith.constant 0 : index
    %c0_54 = arith.constant 0 : index
    %73 = vector.load %arg6[%c1_52, %c0_53, %c0_54] : memref<2x3x32xf32, #tpu.memory_space<vmem>>, vector<1x3x32xf32>
    %74 = vector.shape_cast %73 : vector<1x3x32xf32> to vector<3x32xf32>
    %cst_55 = arith.constant dense<0.000000e+00> : vector<3x256xf32>
    %75 = tpu.matmul %74, %72, %cst_55 {dimension_numbers = #tpu.dot_dimension_numbers<[1], [0], [0], [1], [0, 0, 1, 1], [], []>} : vector<3x32xf32>, vector<32x256xf32>, vector<3x256xf32> -> vector<3x256xf32>
    %76 = arith.addf %65, %75 : vector<3x256xf32>
    %c1_56 = arith.constant 1 : index
    %c0_57 = arith.constant 0 : index
    %c0_58 = arith.constant 0 : index
    %77 = vector.load %arg4[%c1_56, %c0_57, %c0_58] : memref<3x32x32xf32, #tpu.memory_space<vmem>>, vector<1x32x32xf32>
    %78 = vector.shape_cast %77 : vector<1x32x32xf32> to vector<32x32xf32>
    %cst_59 = arith.constant dense<0.000000e+00> : vector<32x256xf32>
    %79 = tpu.matmul %78, %72, %cst_59 {dimension_numbers = #tpu.dot_dimension_numbers<[1], [0], [0], [1], [0, 0, 1, 1], [], []>} : vector<32x32xf32>, vector<32x256xf32>, vector<32x256xf32> -> vector<32x256xf32>
    %cst_60 = arith.constant 0.000000e+00 : f32
    %80 = vector.broadcast %cst_60 : f32 to vector<32x256xf32>
    %81 = arith.select %23, %79, %80 : vector<32x256xi1>, vector<32x256xf32>
    %c0_61 = arith.constant 0 : index
    %c0_62 = arith.constant 0 : index
    %c0_63 = arith.constant 0 : index
    %82 = vector.load %arg4[%c0_61, %c0_62, %c0_63] : memref<3x32x32xf32, #tpu.memory_space<vmem>>, vector<1x32x32xf32>
    %83 = vector.shape_cast %82 : vector<1x32x32xf32> to vector<32x32xf32>
    %cst_64 = arith.constant dense<0.000000e+00> : vector<32x256xf32>
    %84 = tpu.matmul %83, %81, %cst_64 {dimension_numbers = #tpu.dot_dimension_numbers<[1], [0], [0], [1], [0, 0, 1, 1], [], []>} : vector<32x32xf32>, vector<32x256xf32>, vector<32x256xf32> -> vector<32x256xf32>
    %cst_65 = arith.constant 0.000000e+00 : f32
    %85 = vector.broadcast %cst_65 : f32 to vector<32x256xf32>
    %86 = arith.select %11, %84, %85 : vector<32x256xi1>, vector<32x256xf32>
    %c0_66 = arith.constant 0 : index
    %c0_67 = arith.constant 0 : index
    %c0_68 = arith.constant 0 : index
    %87 = vector.load %arg6[%c0_66, %c0_67, %c0_68] : memref<2x3x32xf32, #tpu.memory_space<vmem>>, vector<1x3x32xf32>
    %88 = vector.shape_cast %87 : vector<1x3x32xf32> to vector<3x32xf32>
    %cst_69 = arith.constant dense<0.000000e+00> : vector<3x256xf32>
    %89 = tpu.matmul %88, %86, %cst_69 {dimension_numbers = #tpu.dot_dimension_numbers<[1], [0], [0], [1], [0, 0, 1, 1], [], []>} : vector<3x32xf32>, vector<32x256xf32>, vector<3x256xf32> -> vector<3x256xf32>
    %90 = arith.addf %76, %89 : vector<3x256xf32>
    %91 = tpu.concatenate %62, %90 in 0 : vector<1x256xf32>, vector<3x256xf32> -> vector<4x256xf32>
    %c0_70 = arith.constant 0 : index
    %c0_71 = arith.constant 0 : index
    %c0_72 = arith.constant 0 : index
    %92 = vector.load %arg9[%c0_70, %c0_71, %c0_72] : memref<1x4x256xf32, #tpu.memory_space<vmem>>, vector<1x4x256xf32>
    %93 = vector.shape_cast %92 : vector<1x4x256xf32> to vector<4x256xf32>
    %94 = vector.shape_cast %91 : vector<4x256xf32> to vector<1x4x256xf32>
    tpu.vector_store %arg9[%c0_70, %c0_71, %c0_72], %94 {strides = array<i32>} : memref<1x4x256xf32, #tpu.memory_space<vmem>>, vector<1x4x256xf32>,
    return
  }
  func.func @transform_0(%arg0: i32, %arg1: i32) -> (i32, i32, i32) {
    %c0_i32 = arith.constant 0 : i32
    %c0_i32_0 = arith.constant 0 : i32
    return %arg0, %c0_i32, %arg1 : i32, i32, i32
  }
  func.func @transform_1(%arg0: i32, %arg1: i32) -> (i32, i32, i32) {
    %c0_i32 = arith.constant 0 : i32
    %c0_i32_0 = arith.constant 0 : i32
    %c0_i32_1 = arith.constant 0 : i32
    %c0_i32_2 = arith.constant 0 : i32
    return %c0_i32, %c0_i32_0, %c0_i32_1 : i32, i32, i32
  }
  func.func @transform_2(%arg0: i32, %arg1: i32) -> (i32, i32, i32) {
    %c0_i32 = arith.constant 0 : i32
    %c0_i32_0 = arith.constant 0 : i32
    %c0_i32_1 = arith.constant 0 : i32
    %c0_i32_2 = arith.constant 0 : i32
    return %c0_i32, %c0_i32_0, %c0_i32_1 : i32, i32, i32
  }
  func.func @transform_3(%arg0: i32, %arg1: i32) -> (i32, i32, i32) {
    %c0_i32 = arith.constant 0 : i32
    %c0_i32_0 = arith.constant 0 : i32
    %c0_i32_1 = arith.constant 0 : i32
    %c0_i32_2 = arith.constant 0 : i32
    return %c0_i32, %c0_i32_0, %c0_i32_1 : i32, i32, i32
  }
  func.func @transform_4(%arg0: i32, %arg1: i32) -> (i32, i32, i32) {
    %c0_i32 = arith.constant 0 : i32
    %c0_i32_0 = arith.constant 0 : i32
    %c0_i32_1 = arith.constant 0 : i32
    %c0_i32_2 = arith.constant 0 : i32
    return %c0_i32, %c0_i32_0, %c0_i32_1 : i32, i32, i32
  }
  func.func @transform_5(%arg0: i32, %arg1: i32) -> (i32, i32, i32, i32) {
    %c0_i32 = arith.constant 0 : i32
    %c0_i32_0 = arith.constant 0 : i32
    %c0_i32_1 = arith.constant 0 : i32
    %c0_i32_2 = arith.constant 0 : i32
    return %arg0, %c0_i32, %c0_i32_0, %c0_i32_1 : i32, i32, i32, i32
  }
  func.func @transform_6(%arg0: i32, %arg1: i32) -> (i32, i32) {
    %c0_i32 = arith.constant 0 : i32
    %c0_i32_0 = arith.constant 0 : i32
    %c0_i32_1 = arith.constant 0 : i32
    return %c0_i32, %c0_i32_0 : i32, i32
  }
  func.func @transform_7(%arg0: i32, %arg1: i32) -> (i32, i32, i32) {
    %c0_i32 = arith.constant 0 : i32
    %c0_i32_0 = arith.constant 0 : i32
    return %arg0, %c0_i32, %arg1 : i32, i32, i32
  }
}

</mosaic_0001>

<llo_original>
// kernel: tpu_custom_call.1
$region0: #{tpu_custom_call.1}
  #allocation0 [shape = 'u32[]', space=smem, size = 0x4, offset = 0x4, fixed_abs, tag = 'smem constant byte address 0x4 - core index']
  #allocation1 [shape = 'u32[144,128]{1,0:T(1,128)}', space=vmem, size = 0x12000, scoped, tag = 'internal scratch']
  %s0 = inlined_call_operand.vmem [shape: f32[2,3,256], index: 0, kind: input, shape index: {}]
  %s1 = inlined_call_operand.vmem [shape: bf16[3,32,32], index: 1, kind: input, shape index: {}]
  %s2 = inlined_call_operand.vmem [shape: f32[3,32,32], index: 2, kind: input, shape index: {}]
  %s3 = inlined_call_operand.vmem [shape: bf16[2,32,3], index: 3, kind: input, shape index: {}]
  %s4 = inlined_call_operand.vmem [shape: f32[2,3,32], index: 4, kind: input, shape index: {}]
  %s5 = inlined_call_operand.vmem [shape: f32[2,4,32,1], index: 5, kind: input, shape index: {}]
  %s6 = inlined_call_operand.vmem [shape: f32[33,1], index: 6, kind: input, shape index: {}]
  %s7 = inlined_call_operand.hbm [shape: f32[2,4,256], index: 7, kind: output, shape index: {}]
  %s8 = sld [smem:[#allocation0]]
  $region61: #{tpu_custom_call.1} parent=0
    _
  %s10 = ssub.s32 1, %s8
  %s11 = scalar_select 0, %s10, %s8
  $region1: #{tpu_custom_call.1} parent=0
    #allocation2 [shape = 'u8[8192]{0}', space=vmem, size = 0x2000, scoped, tag = 'output window, operand 0']
    #allocation3 [shape = 's32[2]{0}', space=sflag, size = 0x8, scoped, tag = 'scoped memory for tpu_custom_call.1']
    %12 = vsyncpa [#allocation3], 0
    %s13 = scalar_lea.sflag [#allocation3], 1
    %14 = vsyncpa %s13, 0
    loop: start=0, step=1, limit=4
    $region2: #{tpu_custom_call.1} parent=1 // loop_pre_header
      _
    $region3: #{tpu_custom_call.1} parent=1 // loop_header
      %s16 = sphi 0, %s20
      %p17 = scmp.ge.s32.totalorder %s16, 4
      %s23 = sphi 0, %s35
      %s24 = sphi 0, %s31
      %s25 = sphi 0, %s23
      %s26 = sphi 0, %s24
      %s27 = sphi 0, %s25
      %s28 = sphi 0, %s26
      %s40 = sphi 0, %s42
      %s43 = sphi 0, %s40
      %s44 = sphi 0, %s43
      %s60 = sphi 0, %s44
      %s64 = sphi 0, %s64
      %s66 = sphi 0, %s64
      %s67 = sphi 0, %s66
      %s81 = sphi 0, %s67
      %s85 = sphi 0, %s85
      %s87 = sphi 0, %s85
      %s88 = sphi 0, %s87
      %s102 = sphi 0, %s88
      %s106 = sphi 0, %s106
      %s108 = sphi 0, %s106
      %s109 = sphi 0, %s108
      %s123 = sphi 0, %s109
      %s127 = sphi 0, %s127
      %s129 = sphi 0, %s127
      %s130 = sphi 0, %s129
      %s144 = sphi 0, %s130
      %s150 = sphi 0, %s152
      %s153 = sphi 0, %s150
      %s154 = sphi 0, %s153
      %s170 = sphi 0, %s154
      %s174 = sphi 0, %s174
      %s176 = sphi 0, %s174
      %s177 = sphi 0, %s176
      %s191 = sphi 0, %s177
      %s199 = sphi 0, %s201
      %s202 = sphi 0, %s199
      %s203 = sphi 0, %s202
      %s219 = sphi 0, %s203
    $region4: #{tpu_custom_call.1} parent=1 // loop_header_branch
      %19 = sbr.rel (%p17) target = $region8
    $region5: #{tpu_custom_call.1} parent=1 // loop_body
      %s21 = ssub.s32 %s16, 1
      %s22 = ssub.s32 %s16, 2
      %s29 = sadd.s32 1, %s24
      %p30 = scmp.ge.s32.totalorder %s29, 1
      %s31 = scalar_select %p30, 0, %s29
      %s32 = sadd.s32 1, %s23
      %s33 = scalar_select %p30, %s32, %s23
      %p34 = scmp.ge.s32.totalorder %s33, 2
      %s35 = scalar_select %p34, 0, %s33
      %s36 = ssub.s32 %s23, %s35
      %s37 = ssub.s32 %s24, %s31
      %s38 = sor.u32 %s36, %s37
      %p39 = scmp.eq.s32.totalorder %s38, 0
      %s41 = sadd.s32 %s40, 1
      %s42 = scalar_select %p39, %s40, %s41
      %p45 = pneg %p39
      %p46 = scmp.eq.s32.totalorder %s16, 1
      %p47 = por %p45, %p46
      %p48 = scmp.ne.s32.totalorder %s40, %s43
      %p49 = scmp.eq.s32.totalorder %s16, 0
      %p50 = por %p48, %p49
      %p51 = scmp.ne.s32.totalorder %s40, %s43
      %p52 = scmp.eq.s32.totalorder %s21, 1
      %p53 = por %p51, %p52
      %p54 = scmp.ne.s32.totalorder %s43, %s44
      %p55 = scmp.eq.s32.totalorder %s21, 0
      %p56 = por %p54, %p55
      %p57 = scmp.ne.s32.totalorder %s43, %s44
      %p58 = scmp.eq.s32.totalorder %s22, 1
      %p59 = por %p57, %p58
      %p61 = scmp.ne.s32.totalorder %s44, %s60
      %p62 = scmp.eq.s32.totalorder %s22, 0
      %p63 = por %p61, %p62
      %s65 = sadd.s32 %s64, 1
      %p68 = scmp.eq.s32.totalorder %s16, 1
      %p69 = scmp.ne.s32.totalorder %s64, %s66
      %p70 = scmp.eq.s32.totalorder %s16, 0
      %p71 = por %p69, %p70
      %p72 = scmp.ne.s32.totalorder %s64, %s66
      %p73 = scmp.eq.s32.totalorder %s21, 1
      %p74 = por %p72, %p73
      %p75 = scmp.ne.s32.totalorder %s66, %s67
      %p76 = scmp.eq.s32.totalorder %s21, 0
      %p77 = por %p75, %p76
      %p78 = scmp.ne.s32.totalorder %s66, %s67
      %p79 = scmp.eq.s32.totalorder %s22, 1
      %p80 = por %p78, %p79
      %p82 = scmp.ne.s32.totalorder %s67, %s81
      %p83 = scmp.eq.s32.totalorder %s22, 0
      %p84 = por %p82, %p83
      %s86 = sadd.s32 %s85, 1
      %p89 = scmp.eq.s32.totalorder %s16, 1
      %p90 = scmp.ne.s32.totalorder %s85, %s87
      %p91 = scmp.eq.s32.totalorder %s16, 0
      %p92 = por %p90, %p91
      %p93 = scmp.ne.s32.totalorder %s85, %s87
      %p94 = scmp.eq.s32.totalorder %s21, 1
      %p95 = por %p93, %p94
      %p96 = scmp.ne.s32.totalorder %s87, %s88
      %p97 = scmp.eq.s32.totalorder %s21, 0
      %p98 = por %p96, %p97
      %p99 = scmp.ne.s32.totalorder %s87, %s88
      %p100 = scmp.eq.s32.totalorder %s22, 1
      %p101 = por %p99, %p100
      %p103 = scmp.ne.s32.totalorder %s88, %s102
      %p104 = scmp.eq.s32.totalorder %s22, 0
      %p105 = por %p103, %p104
      %s107 = sadd.s32 %s106, 1
      %p110 = scmp.eq.s32.totalorder %s16, 1
      %p111 = scmp.ne.s32.totalorder %s106, %s108
      %p112 = scmp.eq.s32.totalorder %s16, 0
      %p113 = por %p111, %p112
      %p114 = scmp.ne.s32.totalorder %s106, %s108
      %p115 = scmp.eq.s32.totalorder %s21, 1
      %p116 = por %p114, %p115
      %p117 = scmp.ne.s32.totalorder %s108, %s109
      %p118 = scmp.eq.s32.totalorder %s21, 0
      %p119 = por %p117, %p118
      %p120 = scmp.ne.s32.totalorder %s108, %s109
      %p121 = scmp.eq.s32.totalorder %s22, 1
      %p122 = por %p120, %p121
      %p124 = scmp.ne.s32.totalorder %s109, %s123
      %p125 = scmp.eq.s32.totalorder %s22, 0
      %p126 = por %p124, %p125
      %s128 = sadd.s32 %s127, 1
      %p131 = scmp.eq.s32.totalorder %s16, 1
      %p132 = scmp.ne.s32.totalorder %s127, %s129
      %p133 = scmp.eq.s32.totalorder %s16, 0
      %p134 = por %p132, %p133
      %p135 = scmp.ne.s32.totalorder %s127, %s129
      %p136 = scmp.eq.s32.totalorder %s21, 1
      %p137 = por %p135, %p136
      %p138 = scmp.ne.s32.totalorder %s129, %s130
      %p139 = scmp.eq.s32.totalorder %s21, 0
      %p140 = por %p138, %p139
      %p141 = scmp.ne.s32.totalorder %s129, %s130
      %p142 = scmp.eq.s32.totalorder %s22, 1
      %p143 = por %p141, %p142
      %p145 = scmp.ne.s32.totalorder %s130, %s144
      %p146 = scmp.eq.s32.totalorder %s22, 0
      %p147 = por %p145, %p146
      %s148 = ssub.s32 %s23, %s35
      %p149 = scmp.eq.s32.totalorder %s148, 0
      %s151 = sadd.s32 %s150, 1
      %s152 = scalar_select %p149, %s150, %s151
      %p155 = pneg %p149
      %p156 = scmp.eq.s32.totalorder %s16, 1
      %p157 = por %p155, %p156
      %p158 = scmp.ne.s32.totalorder %s150, %s153
      %p159 = scmp.eq.s32.totalorder %s16, 0
      %p160 = por %p158, %p159
      %p161 = scmp.ne.s32.totalorder %s150, %s153
      %p162 = scmp.eq.s32.totalorder %s21, 1
      %p163 = por %p161, %p162
      %p164 = scmp.ne.s32.totalorder %s153, %s154
      %p165 = scmp.eq.s32.totalorder %s21, 0
      %p166 = por %p164, %p165
      %p167 = scmp.ne.s32.totalorder %s153, %s154
      %p168 = scmp.eq.s32.totalorder %s22, 1
      %p169 = por %p167, %p168
      %p171 = scmp.ne.s32.totalorder %s154, %s170
      %p172 = scmp.eq.s32.totalorder %s22, 0
      %p173 = por %p171, %p172
      %s175 = sadd.s32 %s174, 1
      %p178 = scmp.eq.s32.totalorder %s16, 1
      %p179 = scmp.ne.s32.totalorder %s174, %s176
      %p180 = scmp.eq.s32.totalorder %s16, 0
      %p181 = por %p179, %p180
      %p182 = scmp.ne.s32.totalorder %s174, %s176
      %p183 = scmp.eq.s32.totalorder %s21, 1
      %p184 = por %p182, %p183
      %p185 = scmp.ne.s32.totalorder %s176, %s177
      %p186 = scmp.eq.s32.totalorder %s21, 0
      %p187 = por %p185, %p186
      %p188 = scmp.ne.s32.totalorder %s176, %s177
      %p189 = scmp.eq.s32.totalorder %s22, 1
      %p190 = por %p188, %p189
      %p192 = scmp.ne.s32.totalorder %s177, %s191
      %p193 = scmp.eq.s32.totalorder %s22, 0
      %p194 = por %p192, %p193
      %s195 = ssub.s32 %s23, %s35
      %s196 = ssub.s32 %s24, %s31
      %s197 = sor.u32 %s195, %s196
      %p198 = scmp.eq.s32.totalorder %s197, 0
      %s200 = sadd.s32 %s199, 1
      %s201 = scalar_select %p198, %s199, %s200
      %p204 = pneg %p198
      %p205 = scmp.eq.s32.totalorder %s16, 1
      %p206 = por %p204, %p205
      %p207 = scmp.ne.s32.totalorder %s199, %s202
      %p208 = scmp.eq.s32.totalorder %s16, 0
      %p209 = por %p207, %p208
      %p210 = scmp.ne.s32.totalorder %s199, %s202
      %p211 = scmp.eq.s32.totalorder %s21, 1
      %p212 = por %p210, %p211
      %p213 = scmp.ne.s32.totalorder %s202, %s203
      %p214 = scmp.eq.s32.totalorder %s21, 0
      %p215 = por %p213, %p214
      %p216 = scmp.ne.s32.totalorder %s202, %s203
      %p217 = scmp.eq.s32.totalorder %s22, 1
      %p218 = por %p216, %p217
      %p220 = scmp.ne.s32.totalorder %s203, %s219
      %p221 = scmp.eq.s32.totalorder %s22, 0
      %p222 = por %p220, %p221
      %p223 = scmp.le.s32.totalorder 1, %s16
      %p224 = scmp.lt.s32.totalorder %s16, 3
      %p225 = pnand %p223, %p224
      %p226 = pneg %p225
      // Predicated region
      $region9: #{tpu_custom_call.1} parent=5 // pred_check
        _
      $region10: #{tpu_custom_call.1} parent=5 // pred_check_branch
        %228 = sbr.rel (%p225) target = $region12
      $region11: #{tpu_custom_call.1} parent=5 // pred_region
        %s229 = ssub.s32 %s16, 1
        // Predicated region
        $region13: #{tpu_custom_call.1} parent=11 // pred_check
          %p230 = pneg %p77
        $region14: #{tpu_custom_call.1} parent=11 // pred_check_branch
          %232 = sbr.rel (%p230) target = $region16
        $region15: #{tpu_custom_call.1} parent=11 // pred_region
          _
        $region16: #{tpu_custom_call.1} parent=11 // pred_fallthru
          _
        // Predicated region
        $region17: #{tpu_custom_call.1} parent=11 // pred_check
          %p233 = pneg %p98
        $region18: #{tpu_custom_call.1} parent=11 // pred_check_branch
          %235 = sbr.rel (%p233) target = $region20
        $region19: #{tpu_custom_call.1} parent=11 // pred_region
          _
        $region20: #{tpu_custom_call.1} parent=11 // pred_fallthru
          _
        // Predicated region
        $region21: #{tpu_custom_call.1} parent=11 // pred_check
          %p236 = pneg %p119
        $region22: #{tpu_custom_call.1} parent=11 // pred_check_branch
          %238 = sbr.rel (%p236) target = $region24
        $region23: #{tpu_custom_call.1} parent=11 // pred_region
          _
        $region24: #{tpu_custom_call.1} parent=11 // pred_fallthru
          _
        // Predicated region
        $region25: #{tpu_custom_call.1} parent=11 // pred_check
          %p239 = pneg %p140
        $region26: #{tpu_custom_call.1} parent=11 // pred_check_branch
          %241 = sbr.rel (%p239) target = $region28
        $region27: #{tpu_custom_call.1} parent=11 // pred_region
          _
        $region28: #{tpu_custom_call.1} parent=11 // pred_fallthru
          _
        // Predicated region
        $region29: #{tpu_custom_call.1} parent=11 // pred_check
          %p242 = pneg %p187
        $region30: #{tpu_custom_call.1} parent=11 // pred_check_branch
          %244 = sbr.rel (%p242) target = $region32
        $region31: #{tpu_custom_call.1} parent=11 // pred_region
          _
        $region32: #{tpu_custom_call.1} parent=11 // pred_fallthru
          _
      $region12: #{tpu_custom_call.1} parent=5 // pred_fallthru
        _
      %p245 = scmp.lt.s32.totalorder %s16, 2
      // Predicated region
      $region33: #{tpu_custom_call.1} parent=5 // pred_check
        %p246 = pneg %p245
      $region34: #{tpu_custom_call.1} parent=5 // pred_check_branch
        %248 = sbr.rel (%p246) target = $region36
      $region35: #{tpu_custom_call.1} parent=5 // pred_region
        // Predicated region
        $region37: #{tpu_custom_call.1} parent=35 // pred_check
          %p249 = pneg %p50
        $region38: #{tpu_custom_call.1} parent=35 // pred_check_branch
          %251 = sbr.rel (%p249) target = $region40
        $region39: #{tpu_custom_call.1} parent=35 // pred_region
          %s252 = smul.u32 2, %s24
          %p253 = scmp.lt.s32.totalorder %s23, 1
          %s254 = scalar_select %p253, %s23, 1
          %p255 = scmp.lt.s32.totalorder %s252, 1
          %s256 = scalar_select %p255, %s252, 1
          %s257 = smul.addr %s254, 2
          %s258 = sadd.s32 %s256, %s257
          %s259 = smul.addr %s258, 4
          %s260 = scalar_lea.vmem %s0, %s259
          %s261 = smul.u32 2, %s24
        $region40: #{tpu_custom_call.1} parent=35 // pred_fallthru
          _
        // Predicated region
        $region41: #{tpu_custom_call.1} parent=35 // pred_check
          %p262 = pneg %p160
        $region42: #{tpu_custom_call.1} parent=35 // pred_check_branch
          %264 = sbr.rel (%p262) target = $region44
        $region43: #{tpu_custom_call.1} parent=35 // pred_region
          %p265 = scmp.lt.s32.totalorder %s23, 1
          %s266 = scalar_select %p265, %s23, 1
          %s267 = smul.addr %s266, 16
          %s268 = smul.addr %s267, 8
          %s269 = scalar_lea.vmem %s5, %s268
        $region44: #{tpu_custom_call.1} parent=35 // pred_fallthru
          _
      $region36: #{tpu_custom_call.1} parent=5 // pred_fallthru
        _
      %p270 = scmp.le.s32.totalorder 1, %s16
      %p271 = scmp.lt.s32.totalorder %s16, 3
      %p272 = pnand %p270, %p271
      %p273 = pneg %p272
      // Predicated region
      $region45: #{tpu_custom_call.1} parent=5 // pred_check
        _
      $region46: #{tpu_custom_call.1} parent=5 // pred_check_branch
        %275 = sbr.rel (%p272) target = $region48
      $region47: #{tpu_custom_call.1} parent=5 // pred_region
        %s276 = ssub.s32 %s16, 1
        %s277 = smul.u32 2, %s26
        %p278 = scmp.lt.s32.totalorder %s25, 1
        %s279 = scalar_select %p278, %s25, 1
        %p280 = scmp.lt.s32.totalorder %s277, 1
        %s281 = scalar_select %p280, %s277, 1
        %s282 = smul.addr %s279, 2
        %s283 = sadd.s32 %s281, %s282
        %s284 = smul.addr %s283, 4
        %s285 = scalar_lea.vmem %s0, %s284
        %p286 = pneg %p56
        %p287 = pneg %p53
        %p288 = pneg %p77
        %p289 = pneg %p74
        %p290 = pneg %p98
        %p291 = pneg %p95
        %p292 = pneg %p119
        %p293 = pneg %p116
        %p294 = pneg %p140
        %p295 = pneg %p137
        %p296 = scmp.lt.s32.totalorder %s25, 1
        %s297 = scalar_select %p296, %s25, 1
        %s298 = smul.addr %s297, 16
        %s299 = smul.addr %s298, 8
        %s300 = scalar_lea.vmem %s5, %s299
        %p301 = pneg %p166
        %p302 = pneg %p163
        %p303 = pneg %p187
        %p304 = pneg %p184
        %p305 = pneg %p215
        %p306 = pneg %p212
        %s307 = sand.u32 %s202, 1
        %s308 = scalar_lea.sflag [#allocation3], %s307
        %s309 = sand.u32 %s202, 1
        %s310 = smul.addr %s309, 8
        %s311 = scalar_lea.vmem [#allocation2], %s310
        %s312 = smul.u32 2, %s26
        %p313 = scmp.lt.s32.totalorder %s25, 1
        %s314 = scalar_select %p313, %s25, 1
        %p315 = scmp.lt.s32.totalorder %s312, 1
        %s316 = scalar_select %p315, %s312, 1
        %s317 = smul.addr %s314, 2
        %s318 = sadd.s32 %s316, %s317
        %s319 = smul.addr %s318, 4
        %s320 = scalar_lea.vmem %s0, %s319
        %s321 = smul.u32 2, %s26
        %p322 = scmp.lt.s32.totalorder %s25, 1
        %s323 = scalar_select %p322, %s25, 1
        %s324 = smul.addr %s323, 16
        %s325 = smul.addr %s324, 8
        %s326 = scalar_lea.vmem %s5, %s325
        %s327 = smul.u32 2, %s26
        %v329 = vld [vmem:[%s320] sm:$0x77]
        %v331 = vcombine.high %v329, %v329
        %v333 = vpack.c.bf16 %v329, %v329
        %v334 = vpack.c.bf16 %v331, %v331
        %v335 = vld [vmem:[%s3] sm:$0xf]
        %v336 = vld [vmem:[%s3 + $0x4] sm:$0xf]
        %v337 = vld [vmem:[%s3 + $0x8] sm:$0xf]
        %v338 = vld [vmem:[%s3 + $0xc] sm:$0xf]
        %v339 = vld [vmem:[%s326] sm:$0xff]
        %v340 = vld [vmem:[%s326 + $0x8] sm:$0xff]
        %v341 = vld [vmem:[%s326 + $0x10] sm:$0xff]
        %v342 = vld [vmem:[%s326 + $0x18] sm:$0xff]
        %344 = vset.pattern.permute.xlu0 0
        %345 = vperm.xlu0 %344, %v339
        %v346 = vpop.permute.xlu0 %345
        %349 = vset.pattern.permute.xlu0 0
        %350 = vperm.xlu0 %349, %v340
        %v351 = vpop.permute.xlu0 %350
        %354 = vset.pattern.permute.xlu0 0
        %355 = vperm.xlu0 %354, %v341
        %v356 = vpop.permute.xlu0 %355
        %359 = vset.pattern.permute.xlu0 0
        %360 = vperm.xlu0 %359, %v342
        %v361 = vpop.permute.xlu0 %360
        %v367 = vunpack.c.l.b16 %v335
        %v368 = vunpack.c.l.b16 %v336
        %v369 = vunpack.c.l.b16 %v337
        %v370 = vunpack.c.l.b16 %v338
        %v371 = vpack.c.b16 %v368, %v367
        %v372 = vpack.c.b16 %v370, %v369
        %vm373 = vcmask 23552
        %v375 = vsel %vm373, %v371, 0
        %v378 = vsel %vm373, %v372, 0
        %vm380 = vcmask 1040384
        %vm381 = vcmask 1041408
        %v382 = vsel %vm380, 4294967295, 65535
        %v383 = vsel %vm381, %v382, 0
        %v385 = vand.u32 %v333, %v383
        %v388 = vand.u32 %v334, %v383
        %390 = vmatprep.subr.bf16.mxu0 0
        %391 = vmatpush1.bf16.msra.mxu0 0
        %392 = vmatprep.subr.bf16.mxu0 0
        %393 = vmatpush1.bf16.msra.mxu0 0
        %394 = vmatprep.subr.bf16.mxu0 0
        %395 = vmatpush1.bf16.msra.mxu0 0
        %396 = vmatprep.subr.bf16.mxu0 0
        %397 = vmatpush1.bf16.msra.mxu0 0
        %398 = vmatprep.subr.bf16.mxu0 0
        %399 = vmatpush1.bf16.msra.mxu0 0
        %400 = vmatprep.subr.bf16.mxu0 0
        %401 = vmatpush1.bf16.msra.mxu0 0
        %402 = vmatprep.subr.bf16.mxu0 0
        %403 = vmatpush1.bf16.msra.mxu0 0
        %404 = vmatprep.subr.bf16.mxu0 %v388
        %405 = vmatpush1.bf16.msra.mxu0 %v385
        %406 = vmatprep.subr.bf16.mxu0 0
        %407 = vmatpush2.bf16.msra.mxu0 0
        %408 = vmatprep.subr.bf16.mxu0 0
        %409 = vmatpush2.bf16.msra.mxu0 0
        %410 = vmatprep.subr.bf16.mxu0 0
        %411 = vmatpush2.bf16.msra.mxu0 0
        %412 = vmatprep.subr.bf16.mxu0 0
        %413 = vmatpush2.bf16.msra.mxu0 0
        %414 = vmatprep.subr.bf16.mxu0 0
        %415 = vmatpush2.bf16.msra.mxu0 0
        %416 = vmatprep.subr.bf16.mxu0 0
        %417 = vmatpush2.bf16.msra.mxu0 0
        %418 = vmatprep.subr.bf16.mxu0 0
        %419 = vmatpush2.bf16.msra.mxu0 0
        %420 = vmatprep.subr.bf16.mxu0 0
        %421 = vmatpush2.bf16.msra.mxu0 0
        %422 = vmatprep.mubr.bf16.mxu0 0
        %423 = vmatmul.mubr.bf16.gmra.mxu0 %v375
        %v424 = vpop.f32.mrf.mxu0
        %v425 = vadd.f32 %v346, %v424
        %v426 = vpop.f32.mrf.mxu0
        %v427 = vadd.f32 %v346, %v426
        %v428 = vpop.f32.mrf.mxu0
        %v429 = vadd.f32 %v351, %v428
        %v430 = vpop.f32.mrf.mxu0
        %v431 = vadd.f32 %v351, %v430
        %432 = vmatprep.mubr.bf16.mxu0 0
        %433 = vmatmul.mubr.bf16.gmra.mxu0 %v378
        %v434 = vpop.f32.mrf.mxu0
        %v435 = vadd.f32 %v356, %v434
        %v436 = vpop.f32.mrf.mxu0
        %v437 = vadd.f32 %v356, %v436
        %v438 = vpop.f32.mrf.mxu0
        %v439 = vadd.f32 %v361, %v438
        %v440 = vpop.f32.mrf.mxu0
        %v441 = vadd.f32 %v361, %v440
        %442 = vdwg.mxu0
        %vm443 = vcmp.gt.f32.partialorder %v425, 0.0
        %vm444 = vcmp.gt.f32.partialorder %v427, 0.0
        %vm445 = vcmp.gt.f32.partialorder %v429, 0.0
        %vm446 = vcmp.gt.f32.partialorder %v431, 0.0
        %vm447 = vcmp.gt.f32.partialorder %v435, 0.0
        %vm448 = vcmp.gt.f32.partialorder %v437, 0.0
        %vm449 = vcmp.gt.f32.partialorder %v439, 0.0
        %vm450 = vcmp.gt.f32.partialorder %v441, 0.0
        %v451 = vsel %vm443, %v425, 0.0
        %v452 = vsel %vm444, %v427, 0.0
        %v453 = vsel %vm445, %v429, 0.0
        %v454 = vsel %vm446, %v431, 0.0
        %v455 = vsel %vm447, %v435, 0.0
        %v456 = vsel %vm448, %v437, 0.0
        %v457 = vsel %vm449, %v439, 0.0
        %v458 = vsel %vm450, %v441, 0.0
        %v459 = vld [vmem:[%s1] sm:$0xf]
        %v460 = vld [vmem:[%s1 + $0x4] sm:$0xf]
        %v461 = vld [vmem:[%s1 + $0x8] sm:$0xf]
        %v462 = vld [vmem:[%s1 + $0xc] sm:$0xf]
        %v463 = vpack.c.bf16 %v453, %v451
        %v464 = vpack.c.bf16 %v454, %v452
        %v465 = vpack.c.bf16 %v457, %v455
        %v466 = vpack.c.bf16 %v458, %v456
        %s467 = scalar_lea.vmem %s326, 32
        %v468 = vld [vmem:[%s467] sm:$0xff]
        %v469 = vld [vmem:[%s467 + $0x8] sm:$0xff]
        %v470 = vld [vmem:[%s467 + $0x10] sm:$0xff]
        %v471 = vld [vmem:[%s467 + $0x18] sm:$0xff]
        %473 = vset.pattern.permute.xlu0 0
        %474 = vperm.xlu0 %473, %v468
        %v475 = vpop.permute.xlu0 %474
        %478 = vset.pattern.permute.xlu0 0
        %479 = vperm.xlu0 %478, %v469
        %v480 = vpop.permute.xlu0 %479
        %483 = vset.pattern.permute.xlu0 0
        %484 = vperm.xlu0 %483, %v470
        %v485 = vpop.permute.xlu0 %484
        %488 = vset.pattern.permute.xlu0 0
        %489 = vperm.xlu0 %488, %v471
        %v490 = vpop.permute.xlu0 %489
        %v496 = vunpack.c.l.b16 %v459
        %v497 = vunpack.c.l.b16 %v460
        %v498 = vunpack.c.l.b16 %v461
        %v499 = vunpack.c.l.b16 %v462
        %v500 = vpack.c.b16 %v497, %v496
        %v501 = vpack.c.b16 %v499, %v498
        %vm502 = vcmask 261120
        %v504 = vsel %vm502, %v500, 0
        %v507 = vsel %vm502, %v501, 0
        %509 = vmatprep.subr.bf16.mxu0 0
        %510 = vmatpush1.bf16.msra.mxu0 0
        %511 = vmatprep.subr.bf16.mxu0 0
        %512 = vmatpush1.bf16.msra.mxu0 0
        %513 = vmatprep.subr.bf16.mxu0 0
        %514 = vmatpush1.bf16.msra.mxu0 0
        %515 = vmatprep.subr.bf16.mxu0 0
        %516 = vmatpush1.bf16.msra.mxu0 0
        %517 = vmatprep.subr.bf16.mxu0 0
        %518 = vmatpush1.bf16.msra.mxu0 0
        %519 = vmatprep.subr.bf16.mxu0 0
        %520 = vmatpush1.bf16.msra.mxu0 0
        %521 = vmatprep.subr.bf16.mxu0 %v466
        %522 = vmatpush1.bf16.msra.mxu0 %v465
        %523 = vmatprep.subr.bf16.mxu0 %v464
        %524 = vmatpush1.bf16.msra.mxu0 %v463
        %525 = vmatprep.subr.bf16.mxu0 0
        %526 = vmatpush2.bf16.msra.mxu0 0
        %527 = vmatprep.subr.bf16.mxu0 0
        %528 = vmatpush2.bf16.msra.mxu0 0
        %529 = vmatprep.subr.bf16.mxu0 0
        %530 = vmatpush2.bf16.msra.mxu0 0
        %531 = vmatprep.subr.bf16.mxu0 0
        %532 = vmatpush2.bf16.msra.mxu0 0
        %533 = vmatprep.subr.bf16.mxu0 0
        %534 = vmatpush2.bf16.msra.mxu0 0
        %535 = vmatprep.subr.bf16.mxu0 0
        %536 = vmatpush2.bf16.msra.mxu0 0
        %537 = vmatprep.subr.bf16.mxu0 0
        %538 = vmatpush2.bf16.msra.mxu0 0
        %539 = vmatprep.subr.bf16.mxu0 0
        %540 = vmatpush2.bf16.msra.mxu0 0
        %541 = vmatprep.mubr.bf16.mxu0 0
        %542 = vmatmul.mubr.bf16.gmra.mxu0 %v504
        %v543 = vpop.f32.mrf.mxu0
        %v544 = vadd.f32 %v475, %v543
        %v545 = vpop.f32.mrf.mxu0
        %v546 = vadd.f32 %v475, %v545
        %v547 = vpop.f32.mrf.mxu0
        %v548 = vadd.f32 %v480, %v547
        %v549 = vpop.f32.mrf.mxu0
        %v550 = vadd.f32 %v480, %v549
        %551 = vmatprep.mubr.bf16.mxu0 0
        %552 = vmatmul.mubr.bf16.gmra.mxu0 %v507
        %v553 = vpop.f32.mrf.mxu0
        %v554 = vadd.f32 %v485, %v553
        %v555 = vpop.f32.mrf.mxu0
        %v556 = vadd.f32 %v485, %v555
        %v557 = vpop.f32.mrf.mxu0
        %v558 = vadd.f32 %v490, %v557
        %v559 = vpop.f32.mrf.mxu0
        %v560 = vadd.f32 %v490, %v559
        %561 = vdwg.mxu0
        %vm562 = vcmp.gt.f32.partialorder %v544, 0.0
        %vm563 = vcmp.gt.f32.partialorder %v546, 0.0
        %vm564 = vcmp.gt.f32.partialorder %v548, 0.0
        %vm565 = vcmp.gt.f32.partialorder %v550, 0.0
        %vm566 = vcmp.gt.f32.partialorder %v554, 0.0
        %vm567 = vcmp.gt.f32.partialorder %v556, 0.0
        %vm568 = vcmp.gt.f32.partialorder %v558, 0.0
        %vm569 = vcmp.gt.f32.partialorder %v560, 0.0
        %v570 = vsel %vm562, %v544, 0.0
        %v571 = vsel %vm563, %v546, 0.0
        %v572 = vsel %vm564, %v548, 0.0
        %v573 = vsel %vm565, %v550, 0.0
        %v574 = vsel %vm566, %v554, 0.0
        %v575 = vsel %vm567, %v556, 0.0
        %v576 = vsel %vm568, %v558, 0.0
        %v577 = vsel %vm569, %v560, 0.0
        %s578 = scalar_lea.vmem %s1, 16
        %v579 = vld [vmem:[%s578] sm:$0xf]
        %v580 = vld [vmem:[%s578 + $0x4] sm:$0xf]
        %v581 = vld [vmem:[%s578 + $0x8] sm:$0xf]
        %v582 = vld [vmem:[%s578 + $0xc] sm:$0xf]
        %v583 = vpack.c.bf16 %v572, %v570
        %v584 = vpack.c.bf16 %v573, %v571
        %v585 = vpack.c.bf16 %v576, %v574
        %v586 = vpack.c.bf16 %v577, %v575
        %s587 = scalar_lea.vmem %s3, 16
        %v588 = vld [vmem:[%s587] sm:$0xf]
        %v589 = vld [vmem:[%s587 + $0x4] sm:$0xf]
        %v590 = vld [vmem:[%s587 + $0x8] sm:$0xf]
        %v591 = vld [vmem:[%s587 + $0xc] sm:$0xf]
        %v596 = vunpack.c.l.b16 %v588
        %v597 = vunpack.c.l.b16 %v589
        %v598 = vunpack.c.l.b16 %v590
        %v599 = vunpack.c.l.b16 %v591
        %v600 = vpack.c.b16 %v597, %v596
        %v601 = vpack.c.b16 %v599, %v598
        %v603 = vsel %vm373, %v600, 0
        %v606 = vsel %vm373, %v601, 0
        %608 = vmatprep.subr.bf16.mxu0 0
        %609 = vmatpush1.bf16.msra.mxu0 0
        %610 = vmatprep.subr.bf16.mxu0 0
        %611 = vmatpush1.bf16.msra.mxu0 0
        %612 = vmatprep.subr.bf16.mxu0 0
        %613 = vmatpush1.bf16.msra.mxu0 0
        %614 = vmatprep.subr.bf16.mxu0 0
        %615 = vmatpush1.bf16.msra.mxu0 0
        %616 = vmatprep.subr.bf16.mxu0 0
        %617 = vmatpush1.bf16.msra.mxu0 0
        %618 = vmatprep.subr.bf16.mxu0 0
        %619 = vmatpush1.bf16.msra.mxu0 0
        %620 = vmatprep.subr.bf16.mxu0 0
        %621 = vmatpush1.bf16.msra.mxu0 0
        %622 = vmatprep.subr.bf16.mxu0 %v388
        %623 = vmatpush1.bf16.msra.mxu0 %v385
        %624 = vmatprep.subr.bf16.mxu0 0
        %625 = vmatpush2.bf16.msra.mxu0 0
        %626 = vmatprep.subr.bf16.mxu0 0
        %627 = vmatpush2.bf16.msra.mxu0 0
        %628 = vmatprep.subr.bf16.mxu0 0
        %629 = vmatpush2.bf16.msra.mxu0 0
        %630 = vmatprep.subr.bf16.mxu0 0
        %631 = vmatpush2.bf16.msra.mxu0 0
        %632 = vmatprep.subr.bf16.mxu0 0
        %633 = vmatpush2.bf16.msra.mxu0 0
        %634 = vmatprep.subr.bf16.mxu0 0
        %635 = vmatpush2.bf16.msra.mxu0 0
        %636 = vmatprep.subr.bf16.mxu0 0
        %637 = vmatpush2.bf16.msra.mxu0 0
        %638 = vmatprep.subr.bf16.mxu0 0
        %639 = vmatpush2.bf16.msra.mxu0 0
        %640 = vmatprep.mubr.bf16.mxu0 0
        %641 = vmatmul.mubr.bf16.gmra.mxu0 %v603
        %v642 = vpop.f32.mrf.mxu0
        %v643 = vadd.f32 0.0, %v642
        %v644 = vpop.f32.mrf.mxu0
        %v645 = vadd.f32 0.0, %v644
        %v646 = vpop.f32.mrf.mxu0
        %v647 = vadd.f32 0.0, %v646
        %v648 = vpop.f32.mrf.mxu0
        %v649 = vadd.f32 0.0, %v648
        %650 = vmatprep.mubr.bf16.mxu0 0
        %651 = vmatmul.mubr.bf16.gmra.mxu0 %v606
        %v652 = vpop.f32.mrf.mxu0
        %v653 = vadd.f32 0.0, %v652
        %v654 = vpop.f32.mrf.mxu0
        %v655 = vadd.f32 0.0, %v654
        %v656 = vpop.f32.mrf.mxu0
        %v657 = vadd.f32 0.0, %v656
        %v658 = vpop.f32.mrf.mxu0
        %v659 = vadd.f32 0.0, %v658
        %660 = vdwg.mxu0
        %v665 = vunpack.c.l.b16 %v579
        %v666 = vunpack.c.l.b16 %v580
        %v667 = vunpack.c.l.b16 %v581
        %v668 = vunpack.c.l.b16 %v582
        %v669 = vpack.c.b16 %v666, %v665
        %v670 = vpack.c.b16 %v668, %v667
        %v672 = vsel %vm502, %v669, 0
        %v675 = vsel %vm502, %v670, 0
        %677 = vmatprep.subr.bf16.mxu0 0
        %678 = vmatpush1.bf16.msra.mxu0 0
        %679 = vmatprep.subr.bf16.mxu0 0
        %680 = vmatpush1.bf16.msra.mxu0 0
        %681 = vmatprep.subr.bf16.mxu0 0
        %682 = vmatpush1.bf16.msra.mxu0 0
        %683 = vmatprep.subr.bf16.mxu0 0
        %684 = vmatpush1.bf16.msra.mxu0 0
        %685 = vmatprep.subr.bf16.mxu0 0
        %686 = vmatpush1.bf16.msra.mxu0 0
        %687 = vmatprep.subr.bf16.mxu0 0
        %688 = vmatpush1.bf16.msra.mxu0 0
        %689 = vmatprep.subr.bf16.mxu0 %v586
        %690 = vmatpush1.bf16.msra.mxu0 %v585
        %691 = vmatprep.subr.bf16.mxu0 %v584
        %692 = vmatpush1.bf16.msra.mxu0 %v583
        %693 = vmatprep.subr.bf16.mxu0 0
        %694 = vmatpush2.bf16.msra.mxu0 0
        %695 = vmatprep.subr.bf16.mxu0 0
        %696 = vmatpush2.bf16.msra.mxu0 0
        %697 = vmatprep.subr.bf16.mxu0 0
        %698 = vmatpush2.bf16.msra.mxu0 0
        %699 = vmatprep.subr.bf16.mxu0 0
        %700 = vmatpush2.bf16.msra.mxu0 0
        %701 = vmatprep.subr.bf16.mxu0 0
        %702 = vmatpush2.bf16.msra.mxu0 0
        %703 = vmatprep.subr.bf16.mxu0 0
        %704 = vmatpush2.bf16.msra.mxu0 0
        %705 = vmatprep.subr.bf16.mxu0 0
        %706 = vmatpush2.bf16.msra.mxu0 0
        %707 = vmatprep.subr.bf16.mxu0 0
        %708 = vmatpush2.bf16.msra.mxu0 0
        %709 = vmatprep.mubr.bf16.mxu0 0
        %710 = vmatmul.mubr.bf16.gmra.mxu0 %v672
        %v711 = vpop.f32.mrf.mxu0
        %v712 = vadd.f32 %v643, %v711
        %v713 = vpop.f32.mrf.mxu0
        %v714 = vadd.f32 %v645, %v713
        %v715 = vpop.f32.mrf.mxu0
        %v716 = vadd.f32 %v647, %v715
        %v717 = vpop.f32.mrf.mxu0
        %v718 = vadd.f32 %v649, %v717
        %719 = vmatprep.mubr.bf16.mxu0 0
        %720 = vmatmul.mubr.bf16.gmra.mxu0 %v675
        %v721 = vpop.f32.mrf.mxu0
        %v722 = vadd.f32 %v653, %v721
        %v723 = vpop.f32.mrf.mxu0
        %v724 = vadd.f32 %v655, %v723
        %v725 = vpop.f32.mrf.mxu0
        %v726 = vadd.f32 %v657, %v725
        %v727 = vpop.f32.mrf.mxu0
        %v728 = vadd.f32 %v659, %v727
        %729 = vdwg.mxu0
        %s730 = scalar_lea.vmem %s326, 64
        %v731 = vld [vmem:[%s730] sm:$0xff]
        %v732 = vld [vmem:[%s730 + $0x8] sm:$0xff]
        %v733 = vld [vmem:[%s730 + $0x10] sm:$0xff]
        %v734 = vld [vmem:[%s730 + $0x18] sm:$0xff]
        %736 = vset.pattern.permute.xlu0 0
        %737 = vperm.xlu0 %736, %v731
        %v738 = vpop.permute.xlu0 %737
        %741 = vset.pattern.permute.xlu0 0
        %742 = vperm.xlu0 %741, %v732
        %v743 = vpop.permute.xlu0 %742
        %746 = vset.pattern.permute.xlu0 0
        %747 = vperm.xlu0 %746, %v733
        %v748 = vpop.permute.xlu0 %747
        %751 = vset.pattern.permute.xlu0 0
        %752 = vperm.xlu0 %751, %v734
        %v753 = vpop.permute.xlu0 %752
        %v755 = vadd.f32 %v712, %v738
        %v756 = vadd.f32 %v714, %v738
        %v757 = vadd.f32 %v716, %v743
        %v758 = vadd.f32 %v718, %v743
        %v759 = vadd.f32 %v722, %v748
        %v760 = vadd.f32 %v724, %v748
        %v761 = vadd.f32 %v726, %v753
        %v762 = vadd.f32 %v728, %v753
        %vm763 = vcmp.gt.f32.partialorder %v755, 0.0
        %vm764 = vcmp.gt.f32.partialorder %v756, 0.0
        %vm765 = vcmp.gt.f32.partialorder %v757, 0.0
        %vm766 = vcmp.gt.f32.partialorder %v758, 0.0
        %vm767 = vcmp.gt.f32.partialorder %v759, 0.0
        %vm768 = vcmp.gt.f32.partialorder %v760, 0.0
        %vm769 = vcmp.gt.f32.partialorder %v761, 0.0
        %vm770 = vcmp.gt.f32.partialorder %v762, 0.0
        %v771 = vsel %vm763, %v755, 0.0
        %v772 = vsel %vm764, %v756, 0.0
        %v773 = vsel %vm765, %v757, 0.0
        %v774 = vsel %vm766, %v758, 0.0
        %v775 = vsel %vm767, %v759, 0.0
        %v776 = vsel %vm768, %v760, 0.0
        %v777 = vsel %vm769, %v761, 0.0
        %v778 = vsel %vm770, %v762, 0.0
        %s779 = scalar_lea.vmem %s1, 32
        %v780 = vld [vmem:[%s779] sm:$0xf]
        %v781 = vld [vmem:[%s779 + $0x4] sm:$0xf]
        %v782 = vld [vmem:[%s779 + $0x8] sm:$0xf]
        %v783 = vld [vmem:[%s779 + $0xc] sm:$0xf]
        %v784 = vpack.c.bf16 %v773, %v771
        %v785 = vpack.c.bf16 %v774, %v772
        %v786 = vpack.c.bf16 %v777, %v775
        %v787 = vpack.c.bf16 %v778, %v776
        %s788 = scalar_lea.vmem %s326, 96
        %v789 = vld [vmem:[%s788] sm:$0xff]
        %v790 = vld [vmem:[%s788 + $0x8] sm:$0xff]
        %v791 = vld [vmem:[%s788 + $0x10] sm:$0xff]
        %v792 = vld [vmem:[%s788 + $0x18] sm:$0xff]
        %794 = vset.pattern.permute.xlu0 0
        %795 = vperm.xlu0 %794, %v789
        %v796 = vpop.permute.xlu0 %795
        %799 = vset.pattern.permute.xlu0 0
        %800 = vperm.xlu0 %799, %v790
        %v801 = vpop.permute.xlu0 %800
        %804 = vset.pattern.permute.xlu0 0
        %805 = vperm.xlu0 %804, %v791
        %v806 = vpop.permute.xlu0 %805
        %809 = vset.pattern.permute.xlu0 0
        %810 = vperm.xlu0 %809, %v792
        %v811 = vpop.permute.xlu0 %810
        %v817 = vunpack.c.l.b16 %v780
        %v818 = vunpack.c.l.b16 %v781
        %v819 = vunpack.c.l.b16 %v782
        %v820 = vunpack.c.l.b16 %v783
        %v821 = vpack.c.b16 %v818, %v817
        %v822 = vpack.c.b16 %v820, %v819
        %v824 = vsel %vm502, %v821, 0
        %v827 = vsel %vm502, %v822, 0
        %829 = vmatprep.subr.bf16.mxu0 0
        %830 = vmatpush1.bf16.msra.mxu0 0
        %831 = vmatprep.subr.bf16.mxu0 0
        %832 = vmatpush1.bf16.msra.mxu0 0
        %833 = vmatprep.subr.bf16.mxu0 0
        %834 = vmatpush1.bf16.msra.mxu0 0
        %835 = vmatprep.subr.bf16.mxu0 0
        %836 = vmatpush1.bf16.msra.mxu0 0
        %837 = vmatprep.subr.bf16.mxu0 0
        %838 = vmatpush1.bf16.msra.mxu0 0
        %839 = vmatprep.subr.bf16.mxu0 0
        %840 = vmatpush1.bf16.msra.mxu0 0
        %841 = vmatprep.subr.bf16.mxu0 %v787
        %842 = vmatpush1.bf16.msra.mxu0 %v786
        %843 = vmatprep.subr.bf16.mxu0 %v785
        %844 = vmatpush1.bf16.msra.mxu0 %v784
        %845 = vmatprep.subr.bf16.mxu0 0
        %846 = vmatpush2.bf16.msra.mxu0 0
        %847 = vmatprep.subr.bf16.mxu0 0
        %848 = vmatpush2.bf16.msra.mxu0 0
        %849 = vmatprep.subr.bf16.mxu0 0
        %850 = vmatpush2.bf16.msra.mxu0 0
        %851 = vmatprep.subr.bf16.mxu0 0
        %852 = vmatpush2.bf16.msra.mxu0 0
        %853 = vmatprep.subr.bf16.mxu0 0
        %854 = vmatpush2.bf16.msra.mxu0 0
        %855 = vmatprep.subr.bf16.mxu0 0
        %856 = vmatpush2.bf16.msra.mxu0 0
        %857 = vmatprep.subr.bf16.mxu0 0
        %858 = vmatpush2.bf16.msra.mxu0 0
        %859 = vmatprep.subr.bf16.mxu0 0
        %860 = vmatpush2.bf16.msra.mxu0 0
        %861 = vmatprep.mubr.bf16.mxu0 0
        %862 = vmatmul.mubr.bf16.gmra.mxu0 %v824
        %v863 = vpop.f32.mrf.mxu0
        %v864 = vadd.f32 %v796, %v863
        %v865 = vpop.f32.mrf.mxu0
        %v866 = vadd.f32 %v796, %v865
        %v867 = vpop.f32.mrf.mxu0
        %v868 = vadd.f32 %v801, %v867
        %v869 = vpop.f32.mrf.mxu0
        %v870 = vadd.f32 %v801, %v869
        %871 = vmatprep.mubr.bf16.mxu0 0
        %872 = vmatmul.mubr.bf16.gmra.mxu0 %v827
        %v873 = vpop.f32.mrf.mxu0
        %v874 = vadd.f32 %v806, %v873
        %v875 = vpop.f32.mrf.mxu0
        %v876 = vadd.f32 %v806, %v875
        %v877 = vpop.f32.mrf.mxu0
        %v878 = vadd.f32 %v811, %v877
        %v879 = vpop.f32.mrf.mxu0
        %v880 = vadd.f32 %v811, %v879
        %881 = vdwg.mxu0
        %vm882 = vcmp.gt.f32.partialorder %v864, 0.0
        %vm883 = vcmp.gt.f32.partialorder %v866, 0.0
        %vm884 = vcmp.gt.f32.partialorder %v868, 0.0
        %vm885 = vcmp.gt.f32.partialorder %v870, 0.0
        %vm886 = vcmp.gt.f32.partialorder %v874, 0.0
        %vm887 = vcmp.gt.f32.partialorder %v876, 0.0
        %vm888 = vcmp.gt.f32.partialorder %v878, 0.0
        %vm889 = vcmp.gt.f32.partialorder %v880, 0.0
        %v890 = vsel %vm882, %v864, 0.0
        %v891 = vsel %vm883, %v866, 0.0
        %v892 = vsel %vm884, %v868, 0.0
        %v893 = vsel %vm885, %v870, 0.0
        %v894 = vsel %vm886, %v874, 0.0
        %v895 = vsel %vm887, %v876, 0.0
        %v896 = vsel %vm888, %v878, 0.0
        %v897 = vsel %vm889, %v880, 0.0
        %v898 = vld [vmem:[%s6] sm:$0xff]
        %v899 = vld [vmem:[%s6 + $0x8] sm:$0xff]
        %v900 = vld [vmem:[%s6 + $0x10] sm:$0xff]
        %v901 = vld [vmem:[%s6 + $0x18] sm:$0xff]
        %v902 = vld [vmem:[%s6 + $0x20] sm:$0x1]
        %904 = vset.pattern.permute.xlu0 0
        %905 = vperm.xlu0 %904, %v898
        %v906 = vpop.permute.xlu0 %905
        %909 = vset.pattern.permute.xlu0 0
        %910 = vperm.xlu0 %909, %v899
        %v911 = vpop.permute.xlu0 %910
        %914 = vset.pattern.permute.xlu0 0
        %915 = vperm.xlu0 %914, %v900
        %v916 = vpop.permute.xlu0 %915
        %919 = vset.pattern.permute.xlu0 0
        %920 = vperm.xlu0 %919, %v901
        %v921 = vpop.permute.xlu0 %920
        %v923 = vmul.f32 %v906, %v890
        %v924 = vmul.f32 %v906, %v891
        %v925 = vmul.f32 %v911, %v892
        %v926 = vmul.f32 %v911, %v893
        %v927 = vmul.f32 %v916, %v894
        %v928 = vmul.f32 %v916, %v895
        %v929 = vmul.f32 %v921, %v896
        %v930 = vmul.f32 %v921, %v897
        %v931 = vadd.f32 %v923, %v925
        %v932 = vadd.f32 %v931, %v927
        %v933 = vadd.f32 %v932, %v929
        %v934 = vrot.slane %v933, 4
        %v935 = vadd.f32 %v933, %v934
        %v936 = vrot.slane %v935, 2
        %v937 = vadd.f32 %v935, %v936
        %v938 = vrot.slane %v937, 1
        %v939 = vadd.f32 %v937, %v938
        %v940 = vadd.f32 %v924, %v926
        %v941 = vadd.f32 %v940, %v928
        %v942 = vadd.f32 %v941, %v930
        %v943 = vrot.slane %v942, 4
        %v944 = vadd.f32 %v942, %v943
        %v945 = vrot.slane %v944, 2
        %v946 = vadd.f32 %v944, %v945
        %v947 = vrot.slane %v946, 1
        %v948 = vadd.f32 %v946, %v947
        %950 = vset.pattern.permute.xlu0 0
        %951 = vperm.xlu0 %950, %v902
        %v952 = vpop.permute.xlu0 %951
        %v954 = vadd.f32 %v939, %v952
        %v955 = vadd.f32 %v948, %v952
        %v956 = vsel %vm882, %v906, 0.0
        %v957 = vsel %vm883, %v906, 0.0
        %v958 = vsel %vm884, %v911, 0.0
        %v959 = vsel %vm885, %v911, 0.0
        %v960 = vsel %vm886, %v916, 0.0
        %v961 = vsel %vm887, %v916, 0.0
        %v962 = vsel %vm888, %v921, 0.0
        %v963 = vsel %vm889, %v921, 0.0
        %s964 = scalar_lea.vmem %s2, 64
        %v965 = vld [vmem:[%s964] sm:$0xff]
        %v966 = vld [vmem:[%s964 + $0x8] sm:$0xff]
        %v967 = vld [vmem:[%s964 + $0x10] sm:$0xff]
        %v968 = vld [vmem:[%s964 + $0x18] sm:$0xff]
        %v970 = vsel %vm502, %v965, 0
        %v973 = vsel %vm502, %v966, 0
        %v976 = vsel %vm502, %v967, 0
        %v979 = vsel %vm502, %v968, 0
        %981 = vmatprep.subr.mxu0 0.0
        %982 = vmatpush1.msra.mxu0 0.0
        %983 = vmatprep.subr.mxu0 0.0
        %984 = vmatpush1.msra.mxu0 0.0
        %985 = vmatprep.subr.mxu0 0.0
        %986 = vmatpush1.msra.mxu0 0.0
        %987 = vmatprep.subr.mxu0 0.0
        %988 = vmatpush1.msra.mxu0 0.0
        %989 = vmatprep.subr.mxu0 0.0
        %990 = vmatpush1.msra.mxu0 0.0
        %991 = vmatprep.subr.mxu0 0.0
        %992 = vmatpush1.msra.mxu0 0.0
        %993 = vmatprep.subr.mxu0 0.0
        %994 = vmatpush1.msra.mxu0 0.0
        %995 = vmatprep.subr.mxu0 0.0
        %996 = vmatpush1.msra.mxu0 0.0
        %997 = vmatprep.subr.mxu0 0.0
        %998 = vmatpush1.msra.mxu0 0.0
        %999 = vmatprep.subr.mxu0 0.0
        %1000 = vmatpush1.msra.mxu0 0.0
        %1001 = vmatprep.subr.mxu0 0.0
        %1002 = vmatpush1.msra.mxu0 0.0
        %1003 = vmatprep.subr.mxu0 0.0
        %1004 = vmatpush1.msra.mxu0 0.0
        %1005 = vmatprep.subr.mxu0 %v963
        %1006 = vmatpush1.msra.mxu0 %v962
        %1007 = vmatprep.subr.mxu0 %v961
        %1008 = vmatpush1.msra.mxu0 %v960
        %1009 = vmatprep.subr.mxu0 %v959
        %1010 = vmatpush1.msra.mxu0 %v958
        %1011 = vmatprep.subr.mxu0 %v957
        %1012 = vmatpush1.msra.mxu0 %v956
        %1013 = vmatprep.subr.mxu0 0.0
        %1014 = vmatpush2.msra.mxu0 0.0
        %1015 = vmatprep.subr.mxu0 0.0
        %1016 = vmatpush2.msra.mxu0 0.0
        %1017 = vmatprep.subr.mxu0 0.0
        %1018 = vmatpush2.msra.mxu0 0.0
        %1019 = vmatprep.subr.mxu0 0.0
        %1020 = vmatpush2.msra.mxu0 0.0
        %1021 = vmatprep.subr.mxu0 0.0
        %1022 = vmatpush2.msra.mxu0 0.0
        %1023 = vmatprep.subr.mxu0 0.0
        %1024 = vmatpush2.msra.mxu0 0.0
        %1025 = vmatprep.subr.mxu0 0.0
        %1026 = vmatpush2.msra.mxu0 0.0
        %1027 = vmatprep.subr.mxu0 0.0
        %1028 = vmatpush2.msra.mxu0 0.0
        %1029 = vmatprep.subr.mxu0 0.0
        %1030 = vmatpush2.msra.mxu0 0.0
        %1031 = vmatprep.subr.mxu0 0.0
        %1032 = vmatpush2.msra.mxu0 0.0
        %1033 = vmatprep.subr.mxu0 0.0
        %1034 = vmatpush2.msra.mxu0 0.0
        %1035 = vmatprep.subr.mxu0 0.0
        %1036 = vmatpush2.msra.mxu0 0.0
        %1037 = vmatprep.subr.mxu0 0.0
        %1038 = vmatpush2.msra.mxu0 0.0
        %1039 = vmatprep.subr.mxu0 0.0
        %1040 = vmatpush2.msra.mxu0 0.0
        %1041 = vmatprep.subr.mxu0 0.0
        %1042 = vmatpush2.msra.mxu0 0.0
        %1043 = vmatprep.subr.mxu0 0.0
        %1044 = vmatpush2.msra.mxu0 0.0
        %1045 = vmatprep.mubr.f32.mxu0 0.0
        %1046 = vmatmul.mubr.f32.gmra.mxu0 %v970
        %v1047 = vpop.f32.mrf.mxu0
        %v1048 = vadd.f32 0.0, %v1047
        %v1049 = vpop.f32.mrf.mxu0
        %v1050 = vadd.f32 0.0, %v1049
        %1051 = vmatprep.mubr.f32.mxu0 0.0
        %1052 = vmatmul.mubr.f32.gmra.mxu0 %v973
        %v1053 = vpop.f32.mrf.mxu0
        %v1054 = vadd.f32 0.0, %v1053
        %v1055 = vpop.f32.mrf.mxu0
        %v1056 = vadd.f32 0.0, %v1055
        %1057 = vmatprep.mubr.f32.mxu0 0.0
        %1058 = vmatmul.mubr.f32.gmra.mxu0 %v976
        %v1059 = vpop.f32.mrf.mxu0
        %v1060 = vadd.f32 0.0, %v1059
        %v1061 = vpop.f32.mrf.mxu0
        %v1062 = vadd.f32 0.0, %v1061
        %1063 = vmatprep.mubr.f32.mxu0 0.0
        %1064 = vmatmul.mubr.f32.gmra.mxu0 %v979
        %v1065 = vpop.f32.mrf.mxu0
        %v1066 = vadd.f32 0.0, %v1065
        %v1067 = vpop.f32.mrf.mxu0
        %v1068 = vadd.f32 0.0, %v1067
        %1069 = vdwg.mxu0
        %v1070 = vsel %vm763, %v1048, 0.0
        %v1071 = vsel %vm764, %v1050, 0.0
        %v1072 = vsel %vm765, %v1054, 0.0
        %v1073 = vsel %vm766, %v1056, 0.0
        %v1074 = vsel %vm767, %v1060, 0.0
        %v1075 = vsel %vm768, %v1062, 0.0
        %v1076 = vsel %vm769, %v1066, 0.0
        %v1077 = vsel %vm770, %v1068, 0.0
        %s1078 = scalar_lea.vmem %s4, 4
        %v1079 = vld [vmem:[%s1078] sm:$0x7]
        %s1080 = scalar_lea.vmem %s2, 32
        %v1081 = vld [vmem:[%s1080] sm:$0xff]
        %v1082 = vld [vmem:[%s1080 + $0x8] sm:$0xff]
        %v1083 = vld [vmem:[%s1080 + $0x10] sm:$0xff]
        %v1084 = vld [vmem:[%s1080 + $0x18] sm:$0xff]
        %v1086 = vsel %vm502, %v1081, 0
        %v1089 = vsel %vm502, %v1082, 0
        %v1092 = vsel %vm502, %v1083, 0
        %v1095 = vsel %vm502, %v1084, 0
        %1097 = vmatprep.subr.mxu0 0.0
        %1098 = vmatpush1.msra.mxu0 0.0
        %1099 = vmatprep.subr.mxu0 0.0
        %1100 = vmatpush1.msra.mxu0 0.0
        %1101 = vmatprep.subr.mxu0 0.0
        %1102 = vmatpush1.msra.mxu0 0.0
        %1103 = vmatprep.subr.mxu0 0.0
        %1104 = vmatpush1.msra.mxu0 0.0
        %1105 = vmatprep.subr.mxu0 0.0
        %1106 = vmatpush1.msra.mxu0 0.0
        %1107 = vmatprep.subr.mxu0 0.0
        %1108 = vmatpush1.msra.mxu0 0.0
        %1109 = vmatprep.subr.mxu0 0.0
        %1110 = vmatpush1.msra.mxu0 0.0
        %1111 = vmatprep.subr.mxu0 0.0
        %1112 = vmatpush1.msra.mxu0 0.0
        %1113 = vmatprep.subr.mxu0 0.0
        %1114 = vmatpush1.msra.mxu0 0.0
        %1115 = vmatprep.subr.mxu0 0.0
        %1116 = vmatpush1.msra.mxu0 0.0
        %1117 = vmatprep.subr.mxu0 0.0
        %1118 = vmatpush1.msra.mxu0 0.0
        %1119 = vmatprep.subr.mxu0 0.0
        %1120 = vmatpush1.msra.mxu0 0.0
        %1121 = vmatprep.subr.mxu0 %v1077
        %1122 = vmatpush1.msra.mxu0 %v1076
        %1123 = vmatprep.subr.mxu0 %v1075
        %1124 = vmatpush1.msra.mxu0 %v1074
        %1125 = vmatprep.subr.mxu0 %v1073
        %1126 = vmatpush1.msra.mxu0 %v1072
        %1127 = vmatprep.subr.mxu0 %v1071
        %1128 = vmatpush1.msra.mxu0 %v1070
        %1129 = vmatprep.subr.mxu0 0.0
        %1130 = vmatpush2.msra.mxu0 0.0
        %1131 = vmatprep.subr.mxu0 0.0
        %1132 = vmatpush2.msra.mxu0 0.0
        %1133 = vmatprep.subr.mxu0 0.0
        %1134 = vmatpush2.msra.mxu0 0.0
        %1135 = vmatprep.subr.mxu0 0.0
        %1136 = vmatpush2.msra.mxu0 0.0
        %1137 = vmatprep.subr.mxu0 0.0
        %1138 = vmatpush2.msra.mxu0 0.0
        %1139 = vmatprep.subr.mxu0 0.0
        %1140 = vmatpush2.msra.mxu0 0.0
        %1141 = vmatprep.subr.mxu0 0.0
        %1142 = vmatpush2.msra.mxu0 0.0
        %1143 = vmatprep.subr.mxu0 0.0
        %1144 = vmatpush2.msra.mxu0 0.0
        %1145 = vmatprep.subr.mxu0 0.0
        %1146 = vmatpush2.msra.mxu0 0.0
        %1147 = vmatprep.subr.mxu0 0.0
        %1148 = vmatpush2.msra.mxu0 0.0
        %1149 = vmatprep.subr.mxu0 0.0
        %1150 = vmatpush2.msra.mxu0 0.0
        %1151 = vmatprep.subr.mxu0 0.0
        %1152 = vmatpush2.msra.mxu0 0.0
        %1153 = vmatprep.subr.mxu0 0.0
        %1154 = vmatpush2.msra.mxu0 0.0
        %1155 = vmatprep.subr.mxu0 0.0
        %1156 = vmatpush2.msra.mxu0 0.0
        %1157 = vmatprep.subr.mxu0 0.0
        %1158 = vmatpush2.msra.mxu0 0.0
        %1159 = vmatprep.subr.mxu0 0.0
        %1160 = vmatpush2.msra.mxu0 0.0
        %1161 = vmatprep.mubr.f32.mxu0 0.0
        %1162 = vmatmul.mubr.f32.gmra.mxu0 %v1086
        %v1163 = vpop.f32.mrf.mxu0
        %v1164 = vadd.f32 0.0, %v1163
        %v1165 = vpop.f32.mrf.mxu0
        %v1166 = vadd.f32 0.0, %v1165
        %1167 = vmatprep.mubr.f32.mxu0 0.0
        %1168 = vmatmul.mubr.f32.gmra.mxu0 %v1089
        %v1169 = vpop.f32.mrf.mxu0
        %v1170 = vadd.f32 0.0, %v1169
        %v1171 = vpop.f32.mrf.mxu0
        %v1172 = vadd.f32 0.0, %v1171
        %1173 = vmatprep.mubr.f32.mxu0 0.0
        %1174 = vmatmul.mubr.f32.gmra.mxu0 %v1092
        %v1175 = vpop.f32.mrf.mxu0
        %v1176 = vadd.f32 0.0, %v1175
        %v1177 = vpop.f32.mrf.mxu0
        %v1178 = vadd.f32 0.0, %v1177
        %1179 = vmatprep.mubr.f32.mxu0 0.0
        %1180 = vmatmul.mubr.f32.gmra.mxu0 %v1095
        %v1181 = vpop.f32.mrf.mxu0
        %v1182 = vadd.f32 0.0, %v1181
        %v1183 = vpop.f32.mrf.mxu0
        %v1184 = vadd.f32 0.0, %v1183
        %1185 = vdwg.mxu0
        %v1186 = vsel %vm562, %v1164, 0.0
        %v1187 = vsel %vm563, %v1166, 0.0
        %v1188 = vsel %vm564, %v1170, 0.0
        %v1189 = vsel %vm565, %v1172, 0.0
        %v1190 = vsel %vm566, %v1176, 0.0
        %v1191 = vsel %vm567, %v1178, 0.0
        %v1192 = vsel %vm568, %v1182, 0.0
        %v1193 = vsel %vm569, %v1184, 0.0
        %v1194 = vld [vmem:[%s2] sm:$0xff]
        %v1195 = vld [vmem:[%s2 + $0x8] sm:$0xff]
        %v1196 = vld [vmem:[%s2 + $0x10] sm:$0xff]
        %v1197 = vld [vmem:[%s2 + $0x18] sm:$0xff]
        %v1199 = vsel %vm502, %v1194, 0
        %v1202 = vsel %vm502, %v1195, 0
        %v1205 = vsel %vm502, %v1196, 0
        %v1208 = vsel %vm502, %v1197, 0
        %1210 = vmatprep.subr.mxu0 0.0
        %1211 = vmatpush1.msra.mxu0 0.0
        %1212 = vmatprep.subr.mxu0 0.0
        %1213 = vmatpush1.msra.mxu0 0.0
        %1214 = vmatprep.subr.mxu0 0.0
        %1215 = vmatpush1.msra.mxu0 0.0
        %1216 = vmatprep.subr.mxu0 0.0
        %1217 = vmatpush1.msra.mxu0 0.0
        %1218 = vmatprep.subr.mxu0 0.0
        %1219 = vmatpush1.msra.mxu0 0.0
        %1220 = vmatprep.subr.mxu0 0.0
        %1221 = vmatpush1.msra.mxu0 0.0
        %1222 = vmatprep.subr.mxu0 0.0
        %1223 = vmatpush1.msra.mxu0 0.0
        %1224 = vmatprep.subr.mxu0 0.0
        %1225 = vmatpush1.msra.mxu0 0.0
        %1226 = vmatprep.subr.mxu0 0.0
        %1227 = vmatpush1.msra.mxu0 0.0
        %1228 = vmatprep.subr.mxu0 0.0
        %1229 = vmatpush1.msra.mxu0 0.0
        %1230 = vmatprep.subr.mxu0 0.0
        %1231 = vmatpush1.msra.mxu0 0.0
        %1232 = vmatprep.subr.mxu0 0.0
        %1233 = vmatpush1.msra.mxu0 0.0
        %1234 = vmatprep.subr.mxu0 %v1193
        %1235 = vmatpush1.msra.mxu0 %v1192
        %1236 = vmatprep.subr.mxu0 %v1191
        %1237 = vmatpush1.msra.mxu0 %v1190
        %1238 = vmatprep.subr.mxu0 %v1189
        %1239 = vmatpush1.msra.mxu0 %v1188
        %1240 = vmatprep.subr.mxu0 %v1187
        %1241 = vmatpush1.msra.mxu0 %v1186
        %1242 = vmatprep.subr.mxu0 0.0
        %1243 = vmatpush2.msra.mxu0 0.0
        %1244 = vmatprep.subr.mxu0 0.0
        %1245 = vmatpush2.msra.mxu0 0.0
        %1246 = vmatprep.subr.mxu0 0.0
        %1247 = vmatpush2.msra.mxu0 0.0
        %1248 = vmatprep.subr.mxu0 0.0
        %1249 = vmatpush2.msra.mxu0 0.0
        %1250 = vmatprep.subr.mxu0 0.0
        %1251 = vmatpush2.msra.mxu0 0.0
        %1252 = vmatprep.subr.mxu0 0.0
        %1253 = vmatpush2.msra.mxu0 0.0
        %1254 = vmatprep.subr.mxu0 0.0
        %1255 = vmatpush2.msra.mxu0 0.0
        %1256 = vmatprep.subr.mxu0 0.0
        %1257 = vmatpush2.msra.mxu0 0.0
        %1258 = vmatprep.subr.mxu0 0.0
        %1259 = vmatpush2.msra.mxu0 0.0
        %1260 = vmatprep.subr.mxu0 0.0
        %1261 = vmatpush2.msra.mxu0 0.0
        %1262 = vmatprep.subr.mxu0 0.0
        %1263 = vmatpush2.msra.mxu0 0.0
        %1264 = vmatprep.subr.mxu0 0.0
        %1265 = vmatpush2.msra.mxu0 0.0
        %1266 = vmatprep.subr.mxu0 0.0
        %1267 = vmatpush2.msra.mxu0 0.0
        %1268 = vmatprep.subr.mxu0 0.0
        %1269 = vmatpush2.msra.mxu0 0.0
        %1270 = vmatprep.subr.mxu0 0.0
        %1271 = vmatpush2.msra.mxu0 0.0
        %1272 = vmatprep.subr.mxu0 0.0
        %1273 = vmatpush2.msra.mxu0 0.0
        %1274 = vmatprep.mubr.f32.mxu0 0.0
        %1275 = vmatmul.mubr.f32.gmra.mxu0 %v1199
        %v1276 = vpop.f32.mrf.mxu0
        %v1277 = vadd.f32 0.0, %v1276
        %v1278 = vpop.f32.mrf.mxu0
        %v1279 = vadd.f32 0.0, %v1278
        %1280 = vmatprep.mubr.f32.mxu0 0.0
        %1281 = vmatmul.mubr.f32.gmra.mxu0 %v1202
        %v1282 = vpop.f32.mrf.mxu0
        %v1283 = vadd.f32 0.0, %v1282
        %v1284 = vpop.f32.mrf.mxu0
        %v1285 = vadd.f32 0.0, %v1284
        %1286 = vmatprep.mubr.f32.mxu0 0.0
        %1287 = vmatmul.mubr.f32.gmra.mxu0 %v1205
        %v1288 = vpop.f32.mrf.mxu0
        %v1289 = vadd.f32 0.0, %v1288
        %v1290 = vpop.f32.mrf.mxu0
        %v1291 = vadd.f32 0.0, %v1290
        %1292 = vmatprep.mubr.f32.mxu0 0.0
        %1293 = vmatmul.mubr.f32.gmra.mxu0 %v1208
        %v1294 = vpop.f32.mrf.mxu0
        %v1295 = vadd.f32 0.0, %v1294
        %v1296 = vpop.f32.mrf.mxu0
        %v1297 = vadd.f32 0.0, %v1296
        %1298 = vdwg.mxu0
        %v1299 = vsel %vm443, %v1277, 0.0
        %v1300 = vsel %vm444, %v1279, 0.0
        %v1301 = vsel %vm445, %v1283, 0.0
        %v1302 = vsel %vm446, %v1285, 0.0
        %v1303 = vsel %vm447, %v1289, 0.0
        %v1304 = vsel %vm448, %v1291, 0.0
        %v1305 = vsel %vm449, %v1295, 0.0
        %v1306 = vsel %vm450, %v1297, 0.0
        %v1307 = vld [vmem:[%s4] sm:$0x7]
        %v1309 = vsel %vm502, %v1307, 0
        %1311 = vmatprep.subr.mxu0 0.0
        %1312 = vmatpush1.msra.mxu0 0.0
        %1313 = vmatprep.subr.mxu0 0.0
        %1314 = vmatpush1.msra.mxu0 0.0
        %1315 = vmatprep.subr.mxu0 0.0
        %1316 = vmatpush1.msra.mxu0 0.0
        %1317 = vmatprep.subr.mxu0 0.0
        %1318 = vmatpush1.msra.mxu0 0.0
        %1319 = vmatprep.subr.mxu0 0.0
        %1320 = vmatpush1.msra.mxu0 0.0
        %1321 = vmatprep.subr.mxu0 0.0
        %1322 = vmatpush1.msra.mxu0 0.0
        %1323 = vmatprep.subr.mxu0 0.0
        %1324 = vmatpush1.msra.mxu0 0.0
        %1325 = vmatprep.subr.mxu0 0.0
        %1326 = vmatpush1.msra.mxu0 0.0
        %1327 = vmatprep.subr.mxu0 0.0
        %1328 = vmatpush1.msra.mxu0 0.0
        %1329 = vmatprep.subr.mxu0 0.0
        %1330 = vmatpush1.msra.mxu0 0.0
        %1331 = vmatprep.subr.mxu0 0.0
        %1332 = vmatpush1.msra.mxu0 0.0
        %1333 = vmatprep.subr.mxu0 0.0
        %1334 = vmatpush1.msra.mxu0 0.0
        %1335 = vmatprep.subr.mxu0 %v1306
        %1336 = vmatpush1.msra.mxu0 %v1305
        %1337 = vmatprep.subr.mxu0 %v1304
        %1338 = vmatpush1.msra.mxu0 %v1303
        %1339 = vmatprep.subr.mxu0 %v1302
        %1340 = vmatpush1.msra.mxu0 %v1301
        %1341 = vmatprep.subr.mxu0 %v1300
        %1342 = vmatpush1.msra.mxu0 %v1299
        %1343 = vmatprep.subr.mxu0 0.0
        %1344 = vmatpush2.msra.mxu0 0.0
        %1345 = vmatprep.subr.mxu0 0.0
        %1346 = vmatpush2.msra.mxu0 0.0
        %1347 = vmatprep.subr.mxu0 0.0
        %1348 = vmatpush2.msra.mxu0 0.0
        %1349 = vmatprep.subr.mxu0 0.0
        %1350 = vmatpush2.msra.mxu0 0.0
        %1351 = vmatprep.subr.mxu0 0.0
        %1352 = vmatpush2.msra.mxu0 0.0
        %1353 = vmatprep.subr.mxu0 0.0
        %1354 = vmatpush2.msra.mxu0 0.0
        %1355 = vmatprep.subr.mxu0 0.0
        %1356 = vmatpush2.msra.mxu0 0.0
        %1357 = vmatprep.subr.mxu0 0.0
        %1358 = vmatpush2.msra.mxu0 0.0
        %1359 = vmatprep.subr.mxu0 0.0
        %1360 = vmatpush2.msra.mxu0 0.0
        %1361 = vmatprep.subr.mxu0 0.0
        %1362 = vmatpush2.msra.mxu0 0.0
        %1363 = vmatprep.subr.mxu0 0.0
        %1364 = vmatpush2.msra.mxu0 0.0
        %1365 = vmatprep.subr.mxu0 0.0
        %1366 = vmatpush2.msra.mxu0 0.0
        %1367 = vmatprep.subr.mxu0 0.0
        %1368 = vmatpush2.msra.mxu0 0.0
        %1369 = vmatprep.subr.mxu0 0.0
        %1370 = vmatpush2.msra.mxu0 0.0
        %1371 = vmatprep.subr.mxu0 0.0
        %1372 = vmatpush2.msra.mxu0 0.0
        %1373 = vmatprep.subr.mxu0 0.0
        %1374 = vmatpush2.msra.mxu0 0.0
        %1375 = vmatprep.mubr.f32.mxu0 0.0
        %1376 = vmatmul.mubr.f32.gmra.mxu0 %v1309
        %v1377 = vpop.f32.mrf.mxu0
        %v1378 = vadd.f32 0.0, %v1377
        %v1379 = vpop.f32.mrf.mxu0
        %v1380 = vadd.f32 0.0, %v1379
        %1381 = vdwg.mxu0
        %v1383 = vsel %vm502, %v1079, 0
        %1385 = vmatprep.subr.mxu0 0.0
        %1386 = vmatpush1.msra.mxu0 0.0
        %1387 = vmatprep.subr.mxu0 0.0
        %1388 = vmatpush1.msra.mxu0 0.0
        %1389 = vmatprep.subr.mxu0 0.0
        %1390 = vmatpush1.msra.mxu0 0.0
        %1391 = vmatprep.subr.mxu0 0.0
        %1392 = vmatpush1.msra.mxu0 0.0
        %1393 = vmatprep.subr.mxu0 0.0
        %1394 = vmatpush1.msra.mxu0 0.0
        %1395 = vmatprep.subr.mxu0 0.0
        %1396 = vmatpush1.msra.mxu0 0.0
        %1397 = vmatprep.subr.mxu0 0.0
        %1398 = vmatpush1.msra.mxu0 0.0
        %1399 = vmatprep.subr.mxu0 0.0
        %1400 = vmatpush1.msra.mxu0 0.0
        %1401 = vmatprep.subr.mxu0 0.0
        %1402 = vmatpush1.msra.mxu0 0.0
        %1403 = vmatprep.subr.mxu0 0.0
        %1404 = vmatpush1.msra.mxu0 0.0
        %1405 = vmatprep.subr.mxu0 0.0
        %1406 = vmatpush1.msra.mxu0 0.0
        %1407 = vmatprep.subr.mxu0 0.0
        %1408 = vmatpush1.msra.mxu0 0.0
        %1409 = vmatprep.subr.mxu0 %v1077
        %1410 = vmatpush1.msra.mxu0 %v1076
        %1411 = vmatprep.subr.mxu0 %v1075
        %1412 = vmatpush1.msra.mxu0 %v1074
        %1413 = vmatprep.subr.mxu0 %v1073
        %1414 = vmatpush1.msra.mxu0 %v1072
        %1415 = vmatprep.subr.mxu0 %v1071
        %1416 = vmatpush1.msra.mxu0 %v1070
        %1417 = vmatprep.subr.mxu0 0.0
        %1418 = vmatpush2.msra.mxu0 0.0
        %1419 = vmatprep.subr.mxu0 0.0
        %1420 = vmatpush2.msra.mxu0 0.0
        %1421 = vmatprep.subr.mxu0 0.0
        %1422 = vmatpush2.msra.mxu0 0.0
        %1423 = vmatprep.subr.mxu0 0.0
        %1424 = vmatpush2.msra.mxu0 0.0
        %1425 = vmatprep.subr.mxu0 0.0
        %1426 = vmatpush2.msra.mxu0 0.0
        %1427 = vmatprep.subr.mxu0 0.0
        %1428 = vmatpush2.msra.mxu0 0.0
        %1429 = vmatprep.subr.mxu0 0.0
        %1430 = vmatpush2.msra.mxu0 0.0
        %1431 = vmatprep.subr.mxu0 0.0
        %1432 = vmatpush2.msra.mxu0 0.0
        %1433 = vmatprep.subr.mxu0 0.0
        %1434 = vmatpush2.msra.mxu0 0.0
        %1435 = vmatprep.subr.mxu0 0.0
        %1436 = vmatpush2.msra.mxu0 0.0
        %1437 = vmatprep.subr.mxu0 0.0
        %1438 = vmatpush2.msra.mxu0 0.0
        %1439 = vmatprep.subr.mxu0 0.0
        %1440 = vmatpush2.msra.mxu0 0.0
        %1441 = vmatprep.subr.mxu0 0.0
        %1442 = vmatpush2.msra.mxu0 0.0
        %1443 = vmatprep.subr.mxu0 0.0
        %1444 = vmatpush2.msra.mxu0 0.0
        %1445 = vmatprep.subr.mxu0 0.0
        %1446 = vmatpush2.msra.mxu0 0.0
        %1447 = vmatprep.subr.mxu0 0.0
        %1448 = vmatpush2.msra.mxu0 0.0
        %1449 = vmatprep.mubr.f32.mxu0 0.0
        %1450 = vmatmul.mubr.f32.gmra.mxu0 %v1383
        %v1451 = vpop.f32.mrf.mxu0
        %v1452 = vadd.f32 %v1378, %v1451
        %v1453 = vpop.f32.mrf.mxu0
        %v1454 = vadd.f32 %v1380, %v1453
        %1455 = vdwg.mxu0
        %v1458 = vrot.slane %v1452, 7
        %v1459 = vrot.slane %v1454, 7
        %v1462 = vsel %vm380, %v954, %v1458
        %v1463 = vsel %vm380, %v955, %v1459
        %v1466 = vcombine.low %v1462, %v1463
        %1468 = vst [vmem:[%s311] sm:$0xff] %v1466
        %s1469 = sand.u32 %s202, 1
        %s1470 = scalar_lea.sflag [#allocation3], %s1469
        %s1471 = sand.u32 %s202, 1
        %s1472 = smul.addr %s1471, 8
        %s1473 = scalar_lea.vmem [#allocation2], %s1472
        // Predicated region
        $region49: #{tpu_custom_call.1} parent=47 // pred_check
          %p1474 = pneg %p212
        $region50: #{tpu_custom_call.1} parent=47 // pred_check_branch
          %1476 = sbr.rel (%p1474) target = $region52
        $region51: #{tpu_custom_call.1} parent=47 // pred_region
          %s1477 = smul.u32 2, %s26
          %s1479 = ssub.s32 128, 128
          %1480 = vsyncadd %s1470, %s1479
          %s1481 = smul.addr %s25, 2
          %s1482 = sadd.s32 %s1477, %s1481
          %s1483 = smul.addr %s1482, 64
          %s1484 = scalar_lea.hbm %s7, %s1483
          %s1486 = sshll.u32 %s1473, 4
          %s1487 = int_to_ptr.vmem [resolvable:$true] %s1486
          %1489 = dma.vmem_to_hbm [thread:$0]  %s1487, 128, %s1484, %s1470
        $region52: #{tpu_custom_call.1} parent=47 // pred_fallthru
          _
      $region48: #{tpu_custom_call.1} parent=5 // pred_fallthru
        _
      %p1490 = scmp.le.s32.totalorder 2, %s16
      // Predicated region
      $region53: #{tpu_custom_call.1} parent=5 // pred_check
        %p1491 = pneg %p1490
      $region54: #{tpu_custom_call.1} parent=5 // pred_check_branch
        %1493 = sbr.rel (%p1491) target = $region56
      $region55: #{tpu_custom_call.1} parent=5 // pred_region
        %s1494 = ssub.s32 %s16, 2
        // Predicated region
        $region57: #{tpu_custom_call.1} parent=55 // pred_check
          %p1495 = pneg %p218
        $region58: #{tpu_custom_call.1} parent=55 // pred_check_branch
          %1497 = sbr.rel (%p1495) target = $region60
        $region59: #{tpu_custom_call.1} parent=55 // pred_region
          %s1498 = sand.u32 %s203, 1
          %s1499 = scalar_lea.sflag [#allocation3], %s1498
          %s1500 = sand.u32 %s203, 1
          %s1501 = smul.addr %s1500, 8
          %s1502 = scalar_lea.vmem [#allocation2], %s1501
          %1503 = dma.done %s1499, 128
        $region60: #{tpu_custom_call.1} parent=55 // pred_fallthru
          _
      $region56: #{tpu_custom_call.1} parent=5 // pred_fallthru
        _
    $region6: #{tpu_custom_call.1} parent=1 // loop_footer
      %s20 = sadd.s32 1, %s16
    $region7: #{tpu_custom_call.1} parent=1 // loop_footer_branch
      %15 = sbr.rel target = $region3
    $region8: #{tpu_custom_call.1} parent=1 // loop_exit
      _
    %1504 = vsyncpa [#allocation3], 1
    %s1505 = scalar_lea.sflag [#allocation3], 1
    %1506 = vsyncpa %s1505, 1

// kernel: tpu_custom_call.1
$region0: #{tpu_custom_call.1}
  #allocation0 [shape = 'u32[]', space=smem, size = 0x4, offset = 0x4, fixed_abs, tag = 'smem constant byte address 0x4 - core index']
  #allocation1 [shape = 'u32[144,128]{1,0:T(1,128)}', space=vmem, size = 0x12000, scoped, tag = 'internal scratch']
  %s0 = inlined_call_operand.vmem [shape: f32[2,3,256], index: 0, kind: input, shape index: {}]
  %s1 = inlined_call_operand.vmem [shape: bf16[3,32,32], index: 1, kind: input, shape index: {}]
  %s2 = inlined_call_operand.vmem [shape: f32[3,32,32], index: 2, kind: input, shape index: {}]
  %s3 = inlined_call_operand.vmem [shape: bf16[2,32,3], index: 3, kind: input, shape index: {}]
  %s4 = inlined_call_operand.vmem [shape: f32[2,3,32], index: 4, kind: input, shape index: {}]
  %s5 = inlined_call_operand.vmem [shape: f32[2,4,32,1], index: 5, kind: input, shape index: {}]
  %s6 = inlined_call_operand.vmem [shape: f32[33,1], index: 6, kind: input, shape index: {}]
  %s7 = inlined_call_operand.hbm [shape: f32[2,4,256], index: 7, kind: output, shape index: {}]
  %s8 = sld [smem:[#allocation0]]
  $region61: #{tpu_custom_call.1} parent=0
    _
  %s10 = ssub.s32 1, %s8
  %s11 = scalar_select 0, %s10, %s8
  $region1: #{tpu_custom_call.1} parent=0
    #allocation2 [shape = 'u8[8192]{0}', space=vmem, size = 0x2000, scoped, tag = 'output window, operand 0']
    #allocation3 [shape = 's32[2]{0}', space=sflag, size = 0x8, scoped, tag = 'scoped memory for tpu_custom_call.1']
    %12 = vsyncpa [#allocation3], 0
    %s13 = scalar_lea.sflag [#allocation3], 1
    %14 = vsyncpa %s13, 0
    loop: start=0, step=1, limit=4
    $region2: #{tpu_custom_call.1} parent=1 // loop_pre_header
      _
    $region3: #{tpu_custom_call.1} parent=1 // loop_header
      %s16 = sphi 0, %s20
      %p17 = scmp.ge.s32.totalorder %s16, 4
      %s23 = sphi 0, %s35
      %s24 = sphi 0, %s31
      %s25 = sphi 0, %s23
      %s26 = sphi 0, %s24
      %s27 = sphi 0, %s25
      %s28 = sphi 0, %s26
      %s40 = sphi 0, %s42
      %s43 = sphi 0, %s40
      %s44 = sphi 0, %s43
      %s60 = sphi 0, %s44
      %s64 = sphi 0, %s64
      %s66 = sphi 0, %s64
      %s67 = sphi 0, %s66
      %s81 = sphi 0, %s67
      %s85 = sphi 0, %s85
      %s87 = sphi 0, %s85
      %s88 = sphi 0, %s87
      %s102 = sphi 0, %s88
      %s106 = sphi 0, %s106
      %s108 = sphi 0, %s106
      %s109 = sphi 0, %s108
      %s123 = sphi 0, %s109
      %s127 = sphi 0, %s127
      %s129 = sphi 0, %s127
      %s130 = sphi 0, %s129
      %s144 = sphi 0, %s130
      %s150 = sphi 0, %s152
      %s153 = sphi 0, %s150
      %s154 = sphi 0, %s153
      %s170 = sphi 0, %s154
      %s174 = sphi 0, %s174
      %s176 = sphi 0, %s174
      %s177 = sphi 0, %s176
      %s191 = sphi 0, %s177
      %s199 = sphi 0, %s201
      %s202 = sphi 0, %s199
      %s203 = sphi 0, %s202
      %s219 = sphi 0, %s203
    $region4: #{tpu_custom_call.1} parent=1 // loop_header_branch
      %19 = sbr.rel (%p17) target = $region8
    $region5: #{tpu_custom_call.1} parent=1 // loop_body
      %s21 = ssub.s32 %s16, 1
      %s22 = ssub.s32 %s16, 2
      %s29 = sadd.s32 1, %s24
      %p30 = scmp.ge.s32.totalorder %s29, 1
      %s31 = scalar_select %p30, 0, %s29
      %s32 = sadd.s32 1, %s23
      %s33 = scalar_select %p30, %s32, %s23
      %p34 = scmp.ge.s32.totalorder %s33, 2
      %s35 = scalar_select %p34, 0, %s33
      %s36 = ssub.s32 %s23, %s35
      %s37 = ssub.s32 %s24, %s31
      %s38 = sor.u32 %s36, %s37
      %p39 = scmp.eq.s32.totalorder %s38, 0
      %s41 = sadd.s32 %s40, 1
      %s42 = scalar_select %p39, %s40, %s41
      %p45 = pneg %p39
      %p46 = scmp.eq.s32.totalorder %s16, 1
      %p47 = por %p45, %p46
      %p48 = scmp.ne.s32.totalorder %s40, %s43
      %p49 = scmp.eq.s32.totalorder %s16, 0
      %p50 = por %p48, %p49
      %p51 = scmp.ne.s32.totalorder %s40, %s43
      %p52 = scmp.eq.s32.totalorder %s21, 1
      %p53 = por %p51, %p52
      %p54 = scmp.ne.s32.totalorder %s43, %s44
      %p55 = scmp.eq.s32.totalorder %s21, 0
      %p56 = por %p54, %p55
      %p57 = scmp.ne.s32.totalorder %s43, %s44
      %p58 = scmp.eq.s32.totalorder %s22, 1
      %p59 = por %p57, %p58
      %p61 = scmp.ne.s32.totalorder %s44, %s60
      %p62 = scmp.eq.s32.totalorder %s22, 0
      %p63 = por %p61, %p62
      %s65 = sadd.s32 %s64, 1
      %p68 = scmp.eq.s32.totalorder %s16, 1
      %p69 = scmp.ne.s32.totalorder %s64, %s66
      %p70 = scmp.eq.s32.totalorder %s16, 0
      %p71 = por %p69, %p70
      %p72 = scmp.ne.s32.totalorder %s64, %s66
      %p73 = scmp.eq.s32.totalorder %s21, 1
      %p74 = por %p72, %p73
      %p75 = scmp.ne.s32.totalorder %s66, %s67
      %p76 = scmp.eq.s32.totalorder %s21, 0
      %p77 = por %p75, %p76
      %p78 = scmp.ne.s32.totalorder %s66, %s67
      %p79 = scmp.eq.s32.totalorder %s22, 1
      %p80 = por %p78, %p79
      %p82 = scmp.ne.s32.totalorder %s67, %s81
      %p83 = scmp.eq.s32.totalorder %s22, 0
      %p84 = por %p82, %p83
      %s86 = sadd.s32 %s85, 1
      %p89 = scmp.eq.s32.totalorder %s16, 1
      %p90 = scmp.ne.s32.totalorder %s85, %s87
      %p91 = scmp.eq.s32.totalorder %s16, 0
      %p92 = por %p90, %p91
      %p93 = scmp.ne.s32.totalorder %s85, %s87
      %p94 = scmp.eq.s32.totalorder %s21, 1
      %p95 = por %p93, %p94
      %p96 = scmp.ne.s32.totalorder %s87, %s88
      %p97 = scmp.eq.s32.totalorder %s21, 0
      %p98 = por %p96, %p97
      %p99 = scmp.ne.s32.totalorder %s87, %s88
      %p100 = scmp.eq.s32.totalorder %s22, 1
      %p101 = por %p99, %p100
      %p103 = scmp.ne.s32.totalorder %s88, %s102
      %p104 = scmp.eq.s32.totalorder %s22, 0
      %p105 = por %p103, %p104
      %s107 = sadd.s32 %s106, 1
      %p110 = scmp.eq.s32.totalorder %s16, 1
      %p111 = scmp.ne.s32.totalorder %s106, %s108
      %p112 = scmp.eq.s32.totalorder %s16, 0
      %p113 = por %p111, %p112
      %p114 = scmp.ne.s32.totalorder %s106, %s108
      %p115 = scmp.eq.s32.totalorder %s21, 1
      %p116 = por %p114, %p115
      %p117 = scmp.ne.s32.totalorder %s108, %s109
      %p118 = scmp.eq.s32.totalorder %s21, 0
      %p119 = por %p117, %p118
      %p120 = scmp.ne.s32.totalorder %s108, %s109
      %p121 = scmp.eq.s32.totalorder %s22, 1
      %p122 = por %p120, %p121
      %p124 = scmp.ne.s32.totalorder %s109, %s123
      %p125 = scmp.eq.s32.totalorder %s22, 0
      %p126 = por %p124, %p125
      %s128 = sadd.s32 %s127, 1
      %p131 = scmp.eq.s32.totalorder %s16, 1
      %p132 = scmp.ne.s32.totalorder %s127, %s129
      %p133 = scmp.eq.s32.totalorder %s16, 0
      %p134 = por %p132, %p133
      %p135 = scmp.ne.s32.totalorder %s127, %s129
      %p136 = scmp.eq.s32.totalorder %s21, 1
      %p137 = por %p135, %p136
      %p138 = scmp.ne.s32.totalorder %s129, %s130
      %p139 = scmp.eq.s32.totalorder %s21, 0
      %p140 = por %p138, %p139
      %p141 = scmp.ne.s32.totalorder %s129, %s130
      %p142 = scmp.eq.s32.totalorder %s22, 1
      %p143 = por %p141, %p142
      %p145 = scmp.ne.s32.totalorder %s130, %s144
      %p146 = scmp.eq.s32.totalorder %s22, 0
      %p147 = por %p145, %p146
      %s148 = ssub.s32 %s23, %s35
      %p149 = scmp.eq.s32.totalorder %s148, 0
      %s151 = sadd.s32 %s150, 1
      %s152 = scalar_select %p149, %s150, %s151
      %p155 = pneg %p149
      %p156 = scmp.eq.s32.totalorder %s16, 1
      %p157 = por %p155, %p156
      %p158 = scmp.ne.s32.totalorder %s150, %s153
      %p159 = scmp.eq.s32.totalorder %s16, 0
      %p160 = por %p158, %p159
      %p161 = scmp.ne.s32.totalorder %s150, %s153
      %p162 = scmp.eq.s32.totalorder %s21, 1
      %p163 = por %p161, %p162
      %p164 = scmp.ne.s32.totalorder %s153, %s154
      %p165 = scmp.eq.s32.totalorder %s21, 0
      %p166 = por %p164, %p165
      %p167 = scmp.ne.s32.totalorder %s153, %s154
      %p168 = scmp.eq.s32.totalorder %s22, 1
      %p169 = por %p167, %p168
      %p171 = scmp.ne.s32.totalorder %s154, %s170
      %p172 = scmp.eq.s32.totalorder %s22, 0
      %p173 = por %p171, %p172
      %s175 = sadd.s32 %s174, 1
      %p178 = scmp.eq.s32.totalorder %s16, 1
      %p179 = scmp.ne.s32.totalorder %s174, %s176
      %p180 = scmp.eq.s32.totalorder %s16, 0
      %p181 = por %p179, %p180
      %p182 = scmp.ne.s32.totalorder %s174, %s176
      %p183 = scmp.eq.s32.totalorder %s21, 1
      %p184 = por %p182, %p183
      %p185 = scmp.ne.s32.totalorder %s176, %s177
      %p186 = scmp.eq.s32.totalorder %s21, 0
      %p187 = por %p185, %p186
      %p188 = scmp.ne.s32.totalorder %s176, %s177
      %p189 = scmp.eq.s32.totalorder %s22, 1
      %p190 = por %p188, %p189
      %p192 = scmp.ne.s32.totalorder %s177, %s191
      %p193 = scmp.eq.s32.totalorder %s22, 0
      %p194 = por %p192, %p193
      %s195 = ssub.s32 %s23, %s35
      %s196 = ssub.s32 %s24, %s31
      %s197 = sor.u32 %s195, %s196
      %p198 = scmp.eq.s32.totalorder %s197, 0
      %s200 = sadd.s32 %s199, 1
      %s201 = scalar_select %p198, %s199, %s200
      %p204 = pneg %p198
      %p205 = scmp.eq.s32.totalorder %s16, 1
      %p206 = por %p204, %p205
      %p207 = scmp.ne.s32.totalorder %s199, %s202
      %p208 = scmp.eq.s32.totalorder %s16, 0
      %p209 = por %p207, %p208
      %p210 = scmp.ne.s32.totalorder %s199, %s202
      %p211 = scmp.eq.s32.totalorder %s21, 1
      %p212 = por %p210, %p211
      %p213 = scmp.ne.s32.totalorder %s202, %s203
      %p214 = scmp.eq.s32.totalorder %s21, 0
      %p215 = por %p213, %p214
      %p216 = scmp.ne.s32.totalorder %s202, %s203
      %p217 = scmp.eq.s32.totalorder %s22, 1
      %p218 = por %p216, %p217
      %p220 = scmp.ne.s32.totalorder %s203, %s219
      %p221 = scmp.eq.s32.totalorder %s22, 0
      %p222 = por %p220, %p221
      %p223 = scmp.le.s32.totalorder 1, %s16
      %p224 = scmp.lt.s32.totalorder %s16, 3
      %p225 = pnand %p223, %p224
      %p226 = pneg %p225
      // Predicated region
      $region9: #{tpu_custom_call.1} parent=5 // pred_check
        _
      $region10: #{tpu_custom_call.1} parent=5 // pred_check_branch
        %228 = sbr.rel (%p225) target = $region12
      $region11: #{tpu_custom_call.1} parent=5 // pred_region
        %s229 = ssub.s32 %s16, 1
        // Predicated region
        $region13: #{tpu_custom_call.1} parent=11 // pred_check
          %p230 = pneg %p77
        $region14: #{tpu_custom_call.1} parent=11 // pred_check_branch
          %232 = sbr.rel (%p230) target = $region16
        $region15: #{tpu_custom_call.1} parent=11 // pred_region
          _
        $region16: #{tpu_custom_call.1} parent=11 // pred_fallthru
          _
        // Predicated region
        $region17: #{tpu_custom_call.1} parent=11 // pred_check
          %p233 = pneg %p98
        $region18: #{tpu_custom_call.1} parent=11 // pred_check_branch
          %235 = sbr.rel (%p233) target = $region20
        $region19: #{tpu_custom_call.1} parent=11 // pred_region
          _
        $region20: #{tpu_custom_call.1} parent=11 // pred_fallthru
          _
        // Predicated region
        $region21: #{tpu_custom_call.1} parent=11 // pred_check
          %p236 = pneg %p119
        $region22: #{tpu_custom_call.1} parent=11 // pred_check_branch
          %238 = sbr.rel (%p236) target = $region24
        $region23: #{tpu_custom_call.1} parent=11 // pred_region
          _
        $region24: #{tpu_custom_call.1} parent=11 // pred_fallthru
          _
        // Predicated region
        $region25: #{tpu_custom_call.1} parent=11 // pred_check
          %p239 = pneg %p140
        $region26: #{tpu_custom_call.1} parent=11 // pred_check_branch
          %241 = sbr.rel (%p239) target = $region28
        $region27: #{tpu_custom_call.1} parent=11 // pred_region
          _
        $region28: #{tpu_custom_call.1} parent=11 // pred_fallthru
          _
        // Predicated region
        $region29: #{tpu_custom_call.1} parent=11 // pred_check
          %p242 = pneg %p187
        $region30: #{tpu_custom_call.1} parent=11 // pred_check_branch
          %244 = sbr.rel (%p242) target = $region32
        $region31: #{tpu_custom_call.1} parent=11 // pred_region
          _
        $region32: #{tpu_custom_call.1} parent=11 // pred_fallthru
          _
      $region12: #{tpu_custom_call.1} parent=5 // pred_fallthru
        _
      %p245 = scmp.lt.s32.totalorder %s16, 2
      // Predicated region
      $region33: #{tpu_custom_call.1} parent=5 // pred_check
        %p246 = pneg %p245
      $region34: #{tpu_custom_call.1} parent=5 // pred_check_branch
        %248 = sbr.rel (%p246) target = $region36
      $region35: #{tpu_custom_call.1} parent=5 // pred_region
        // Predicated region
        $region37: #{tpu_custom_call.1} parent=35 // pred_check
          %p249 = pneg %p50
        $region38: #{tpu_custom_call.1} parent=35 // pred_check_branch
          %251 = sbr.rel (%p249) target = $region40
        $region39: #{tpu_custom_call.1} parent=35 // pred_region
          %s252 = smul.u32 2, %s24
          %p253 = scmp.lt.s32.totalorder %s23, 1
          %s254 = scalar_select %p253, %s23, 1
          %p255 = scmp.lt.s32.totalorder %s252, 1
          %s256 = scalar_select %p255, %s252, 1
          %s257 = smul.addr %s254, 2
          %s258 = sadd.s32 %s256, %s257
          %s259 = smul.addr %s258, 4
          %s260 = scalar_lea.vmem %s0, %s259
          %s261 = smul.u32 2, %s24
        $region40: #{tpu_custom_call.1} parent=35 // pred_fallthru
          _
        // Predicated region
        $region41: #{tpu_custom_call.1} parent=35 // pred_check
          %p262 = pneg %p160
        $region42: #{tpu_custom_call.1} parent=35 // pred_check_branch
          %264 = sbr.rel (%p262) target = $region44
        $region43: #{tpu_custom_call.1} parent=35 // pred_region
          %p265 = scmp.lt.s32.totalorder %s23, 1
          %s266 = scalar_select %p265, %s23, 1
          %s267 = smul.addr %s266, 16
          %s268 = smul.addr %s267, 8
          %s269 = scalar_lea.vmem %s5, %s268
        $region44: #{tpu_custom_call.1} parent=35 // pred_fallthru
          _
      $region36: #{tpu_custom_call.1} parent=5 // pred_fallthru
        _
      %p270 = scmp.le.s32.totalorder 1, %s16
      %p271 = scmp.lt.s32.totalorder %s16, 3
      %p272 = pnand %p270, %p271
      %p273 = pneg %p272
      // Predicated region
      $region45: #{tpu_custom_call.1} parent=5 // pred_check
        _
      $region46: #{tpu_custom_call.1} parent=5 // pred_check_branch
        %275 = sbr.rel (%p272) target = $region48
      $region47: #{tpu_custom_call.1} parent=5 // pred_region
        %s276 = ssub.s32 %s16, 1
        %s277 = smul.u32 2, %s26
        %p278 = scmp.lt.s32.totalorder %s25, 1
        %s279 = scalar_select %p278, %s25, 1
        %p280 = scmp.lt.s32.totalorder %s277, 1
        %s281 = scalar_select %p280, %s277, 1
        %s282 = smul.addr %s279, 2
        %s283 = sadd.s32 %s281, %s282
        %s284 = smul.addr %s283, 4
        %s285 = scalar_lea.vmem %s0, %s284
        %p286 = pneg %p56
        %p287 = pneg %p53
        %p288 = pneg %p77
        %p289 = pneg %p74
        %p290 = pneg %p98
        %p291 = pneg %p95
        %p292 = pneg %p119
        %p293 = pneg %p116
        %p294 = pneg %p140
        %p295 = pneg %p137
        %p296 = scmp.lt.s32.totalorder %s25, 1
        %s297 = scalar_select %p296, %s25, 1
        %s298 = smul.addr %s297, 16
        %s299 = smul.addr %s298, 8
        %s300 = scalar_lea.vmem %s5, %s299
        %p301 = pneg %p166
        %p302 = pneg %p163
        %p303 = pneg %p187
        %p304 = pneg %p184
        %p305 = pneg %p215
        %p306 = pneg %p212
        %s307 = sand.u32 %s202, 1
        %s308 = scalar_lea.sflag [#allocation3], %s307
        %s309 = sand.u32 %s202, 1
        %s310 = smul.addr %s309, 8
        %s311 = scalar_lea.vmem [#allocation2], %s310
        %s312 = smul.u32 2, %s26
        %p313 = scmp.lt.s32.totalorder %s25, 1
        %s314 = scalar_select %p313, %s25, 1
        %p315 = scmp.lt.s32.totalorder %s312, 1
        %s316 = scalar_select %p315, %s312, 1
        %s317 = smul.addr %s314, 2
        %s318 = sadd.s32 %s316, %s317
        %s319 = smul.addr %s318, 4
        %s320 = scalar_lea.vmem %s0, %s319
        %s321 = smul.u32 2, %s26
        %p322 = scmp.lt.s32.totalorder %s25, 1
        %s323 = scalar_select %p322, %s25, 1
        %s324 = smul.addr %s323, 16
        %s325 = smul.addr %s324, 8
        %s326 = scalar_lea.vmem %s5, %s325
        %s327 = smul.u32 2, %s26
        %v329 = vld [vmem:[%s320] sm:$0x77]
        %v331 = vcombine.high %v329, %v329
        %v333 = vpack.c.bf16 %v329, %v329
        %v334 = vpack.c.bf16 %v331, %v331
        %v335 = vld [vmem:[%s3] sm:$0xf]
        %v336 = vld [vmem:[%s3 + $0x4] sm:$0xf]
        %v337 = vld [vmem:[%s3 + $0x8] sm:$0xf]
        %v338 = vld [vmem:[%s3 + $0xc] sm:$0xf]
        %v339 = vld [vmem:[%s326] sm:$0xff]
        %v340 = vld [vmem:[%s326 + $0x8] sm:$0xff]
        %v341 = vld [vmem:[%s326 + $0x10] sm:$0xff]
        %v342 = vld [vmem:[%s326 + $0x18] sm:$0xff]
        %344 = vset.pattern.permute.xlu0 0
        %345 = vperm.xlu0 %344, %v339
        %v346 = vpop.permute.xlu0 %345
        %349 = vset.pattern.permute.xlu0 0
        %350 = vperm.xlu0 %349, %v340
        %v351 = vpop.permute.xlu0 %350
        %354 = vset.pattern.permute.xlu0 0
        %355 = vperm.xlu0 %354, %v341
        %v356 = vpop.permute.xlu0 %355
        %359 = vset.pattern.permute.xlu0 0
        %360 = vperm.xlu0 %359, %v342
        %v361 = vpop.permute.xlu0 %360
        %v367 = vunpack.c.l.b16 %v335
        %v368 = vunpack.c.l.b16 %v336
        %v369 = vunpack.c.l.b16 %v337
        %v370 = vunpack.c.l.b16 %v338
        %v371 = vpack.c.b16 %v368, %v367
        %v372 = vpack.c.b16 %v370, %v369
        %vm373 = vcmask 23552
        %v375 = vsel %vm373, %v371, 0
        %v378 = vsel %vm373, %v372, 0
        %vm380 = vcmask 1040384
        %vm381 = vcmask 1041408
        %v382 = vsel %vm380, 4294967295, 65535
        %v383 = vsel %vm381, %v382, 0
        %v385 = vand.u32 %v333, %v383
        %v388 = vand.u32 %v334, %v383
        %390 = vmatprep.subr.bf16.mxu0 0
        %391 = vmatpush1.bf16.msra.mxu0 0
        %392 = vmatprep.subr.bf16.mxu0 0
        %393 = vmatpush1.bf16.msra.mxu0 0
        %394 = vmatprep.subr.bf16.mxu0 0
        %395 = vmatpush1.bf16.msra.mxu0 0
        %396 = vmatprep.subr.bf16.mxu0 0
        %397 = vmatpush1.bf16.msra.mxu0 0
        %398 = vmatprep.subr.bf16.mxu0 0
        %399 = vmatpush1.bf16.msra.mxu0 0
        %400 = vmatprep.subr.bf16.mxu0 0
        %401 = vmatpush1.bf16.msra.mxu0 0
        %402 = vmatprep.subr.bf16.mxu0 0
        %403 = vmatpush1.bf16.msra.mxu0 0
        %404 = vmatprep.subr.bf16.mxu0 %v388
        %405 = vmatpush1.bf16.msra.mxu0 %v385
        %406 = vmatprep.subr.bf16.mxu0 0
        %407 = vmatpush2.bf16.msra.mxu0 0
        %408 = vmatprep.subr.bf16.mxu0 0
        %409 = vmatpush2.bf16.msra.mxu0 0
        %410 = vmatprep.subr.bf16.mxu0 0
        %411 = vmatpush2.bf16.msra.mxu0 0
        %412 = vmatprep.subr.bf16.mxu0 0
        %413 = vmatpush2.bf16.msra.mxu0 0
        %414 = vmatprep.subr.bf16.mxu0 0
        %415 = vmatpush2.bf16.msra.mxu0 0
        %416 = vmatprep.subr.bf16.mxu0 0
        %417 = vmatpush2.bf16.msra.mxu0 0
        %418 = vmatprep.subr.bf16.mxu0 0
        %419 = vmatpush2.bf16.msra.mxu0 0
        %420 = vmatprep.subr.bf16.mxu0 0
        %421 = vmatpush2.bf16.msra.mxu0 0
        %422 = vmatprep.mubr.bf16.mxu0 0
        %423 = vmatmul.mubr.bf16.gmra.mxu0 %v375
        %v424 = vpop.f32.mrf.mxu0
        %v425 = vadd.f32 %v346, %v424
        %v426 = vpop.f32.mrf.mxu0
        %v427 = vadd.f32 %v346, %v426
        %v428 = vpop.f32.mrf.mxu0
        %v429 = vadd.f32 %v351, %v428
        %v430 = vpop.f32.mrf.mxu0
        %v431 = vadd.f32 %v351, %v430
        %432 = vmatprep.mubr.bf16.mxu0 0
        %433 = vmatmul.mubr.bf16.gmra.mxu0 %v378
        %v434 = vpop.f32.mrf.mxu0
        %v435 = vadd.f32 %v356, %v434
        %v436 = vpop.f32.mrf.mxu0
        %v437 = vadd.f32 %v356, %v436
        %v438 = vpop.f32.mrf.mxu0
        %v439 = vadd.f32 %v361, %v438
        %v440 = vpop.f32.mrf.mxu0
        %v441 = vadd.f32 %v361, %v440
        %442 = vdwg.mxu0
        %vm443 = vcmp.gt.f32.partialorder %v425, 0.0
        %vm444 = vcmp.gt.f32.partialorder %v427, 0.0
        %vm445 = vcmp.gt.f32.partialorder %v429, 0.0
        %vm446 = vcmp.gt.f32.partialorder %v431, 0.0
        %vm447 = vcmp.gt.f32.partialorder %v435, 0.0
        %vm448 = vcmp.gt.f32.partialorder %v437, 0.0
        %vm449 = vcmp.gt.f32.partialorder %v439, 0.0
        %vm450 = vcmp.gt.f32.partialorder %v441, 0.0
        %v451 = vsel %vm443, %v425, 0.0
        %v452 = vsel %vm444, %v427, 0.0
        %v453 = vsel %vm445, %v429, 0.0
        %v454 = vsel %vm446, %v431, 0.0
        %v455 = vsel %vm447, %v435, 0.0
        %v456 = vsel %vm448, %v437, 0.0
        %v457 = vsel %vm449, %v439, 0.0
        %v458 = vsel %vm450, %v441, 0.0
        %v459 = vld [vmem:[%s1] sm:$0xf]
        %v460 = vld [vmem:[%s1 + $0x4] sm:$0xf]
        %v461 = vld [vmem:[%s1 + $0x8] sm:$0xf]
        %v462 = vld [vmem:[%s1 + $0xc] sm:$0xf]
        %v463 = vpack.c.bf16 %v453, %v451
        %v464 = vpack.c.bf16 %v454, %v452
        %v465 = vpack.c.bf16 %v457, %v455
        %v466 = vpack.c.bf16 %v458, %v456
        %s467 = scalar_lea.vmem %s326, 32
        %v468 = vld [vmem:[%s467] sm:$0xff]
        %v469 = vld [vmem:[%s467 + $0x8] sm:$0xff]
        %v470 = vld [vmem:[%s467 + $0x10] sm:$0xff]
        %v471 = vld [vmem:[%s467 + $0x18] sm:$0xff]
        %473 = vset.pattern.permute.xlu0 0
        %474 = vperm.xlu0 %473, %v468
        %v475 = vpop.permute.xlu0 %474
        %478 = vset.pattern.permute.xlu0 0
        %479 = vperm.xlu0 %478, %v469
        %v480 = vpop.permute.xlu0 %479
        %483 = vset.pattern.permute.xlu0 0
        %484 = vperm.xlu0 %483, %v470
        %v485 = vpop.permute.xlu0 %484
        %488 = vset.pattern.permute.xlu0 0
        %489 = vperm.xlu0 %488, %v471
        %v490 = vpop.permute.xlu0 %489
        %v496 = vunpack.c.l.b16 %v459
        %v497 = vunpack.c.l.b16 %v460
        %v498 = vunpack.c.l.b16 %v461
        %v499 = vunpack.c.l.b16 %v462
        %v500 = vpack.c.b16 %v497, %v496
        %v501 = vpack.c.b16 %v499, %v498
        %vm502 = vcmask 261120
        %v504 = vsel %vm502, %v500, 0
        %v507 = vsel %vm502, %v501, 0
        %509 = vmatprep.subr.bf16.mxu0 0
        %510 = vmatpush1.bf16.msra.mxu0 0
        %511 = vmatprep.subr.bf16.mxu0 0
        %512 = vmatpush1.bf16.msra.mxu0 0
        %513 = vmatprep.subr.bf16.mxu0 0
        %514 = vmatpush1.bf16.msra.mxu0 0
        %515 = vmatprep.subr.bf16.mxu0 0
        %516 = vmatpush1.bf16.msra.mxu0 0
        %517 = vmatprep.subr.bf16.mxu0 0
        %518 = vmatpush1.bf16.msra.mxu0 0
        %519 = vmatprep.subr.bf16.mxu0 0
        %520 = vmatpush1.bf16.msra.mxu0 0
        %521 = vmatprep.subr.bf16.mxu0 %v466
        %522 = vmatpush1.bf16.msra.mxu0 %v465
        %523 = vmatprep.subr.bf16.mxu0 %v464
        %524 = vmatpush1.bf16.msra.mxu0 %v463
        %525 = vmatprep.subr.bf16.mxu0 0
        %526 = vmatpush2.bf16.msra.mxu0 0
        %527 = vmatprep.subr.bf16.mxu0 0
        %528 = vmatpush2.bf16.msra.mxu0 0
        %529 = vmatprep.subr.bf16.mxu0 0
        %530 = vmatpush2.bf16.msra.mxu0 0
        %531 = vmatprep.subr.bf16.mxu0 0
        %532 = vmatpush2.bf16.msra.mxu0 0
        %533 = vmatprep.subr.bf16.mxu0 0
        %534 = vmatpush2.bf16.msra.mxu0 0
        %535 = vmatprep.subr.bf16.mxu0 0
        %536 = vmatpush2.bf16.msra.mxu0 0
        %537 = vmatprep.subr.bf16.mxu0 0
        %538 = vmatpush2.bf16.msra.mxu0 0
        %539 = vmatprep.subr.bf16.mxu0 0
        %540 = vmatpush2.bf16.msra.mxu0 0
        %541 = vmatprep.mubr.bf16.mxu0 0
        %542 = vmatmul.mubr.bf16.gmra.mxu0 %v504
        %v543 = vpop.f32.mrf.mxu0
        %v544 = vadd.f32 %v475, %v543
        %v545 = vpop.f32.mrf.mxu0
        %v546 = vadd.f32 %v475, %v545
        %v547 = vpop.f32.mrf.mxu0
        %v548 = vadd.f32 %v480, %v547
        %v549 = vpop.f32.mrf.mxu0
        %v550 = vadd.f32 %v480, %v549
        %551 = vmatprep.mubr.bf16.mxu0 0
        %552 = vmatmul.mubr.bf16.gmra.mxu0 %v507
        %v553 = vpop.f32.mrf.mxu0
        %v554 = vadd.f32 %v485, %v553
        %v555 = vpop.f32.mrf.mxu0
        %v556 = vadd.f32 %v485, %v555
        %v557 = vpop.f32.mrf.mxu0
        %v558 = vadd.f32 %v490, %v557
        %v559 = vpop.f32.mrf.mxu0
        %v560 = vadd.f32 %v490, %v559
        %561 = vdwg.mxu0
        %vm562 = vcmp.gt.f32.partialorder %v544, 0.0
        %vm563 = vcmp.gt.f32.partialorder %v546, 0.0
        %vm564 = vcmp.gt.f32.partialorder %v548, 0.0
        %vm565 = vcmp.gt.f32.partialorder %v550, 0.0
        %vm566 = vcmp.gt.f32.partialorder %v554, 0.0
        %vm567 = vcmp.gt.f32.partialorder %v556, 0.0
        %vm568 = vcmp.gt.f32.partialorder %v558, 0.0
        %vm569 = vcmp.gt.f32.partialorder %v560, 0.0
        %v570 = vsel %vm562, %v544, 0.0
        %v571 = vsel %vm563, %v546, 0.0
        %v572 = vsel %vm564, %v548, 0.0
        %v573 = vsel %vm565, %v550, 0.0
        %v574 = vsel %vm566, %v554, 0.0
        %v575 = vsel %vm567, %v556, 0.0
        %v576 = vsel %vm568, %v558, 0.0
        %v577 = vsel %vm569, %v560, 0.0
        %s578 = scalar_lea.vmem %s1, 16
        %v579 = vld [vmem:[%s578] sm:$0xf]
        %v580 = vld [vmem:[%s578 + $0x4] sm:$0xf]
        %v581 = vld [vmem:[%s578 + $0x8] sm:$0xf]
        %v582 = vld [vmem:[%s578 + $0xc] sm:$0xf]
        %v583 = vpack.c.bf16 %v572, %v570
        %v584 = vpack.c.bf16 %v573, %v571
        %v585 = vpack.c.bf16 %v576, %v574
        %v586 = vpack.c.bf16 %v577, %v575
        %s587 = scalar_lea.vmem %s3, 16
        %v588 = vld [vmem:[%s587] sm:$0xf]
        %v589 = vld [vmem:[%s587 + $0x4] sm:$0xf]
        %v590 = vld [vmem:[%s587 + $0x8] sm:$0xf]
        %v591 = vld [vmem:[%s587 + $0xc] sm:$0xf]
        %v596 = vunpack.c.l.b16 %v588
        %v597 = vunpack.c.l.b16 %v589
        %v598 = vunpack.c.l.b16 %v590
        %v599 = vunpack.c.l.b16 %v591
        %v600 = vpack.c.b16 %v597, %v596
        %v601 = vpack.c.b16 %v599, %v598
        %v603 = vsel %vm373, %v600, 0
        %v606 = vsel %vm373, %v601, 0
        %608 = vmatprep.subr.bf16.mxu0 0
        %609 = vmatpush1.bf16.msra.mxu0 0
        %610 = vmatprep.subr.bf16.mxu0 0
        %611 = vmatpush1.bf16.msra.mxu0 0
        %612 = vmatprep.subr.bf16.mxu0 0
        %613 = vmatpush1.bf16.msra.mxu0 0
        %614 = vmatprep.subr.bf16.mxu0 0
        %615 = vmatpush1.bf16.msra.mxu0 0
        %616 = vmatprep.subr.bf16.mxu0 0
        %617 = vmatpush1.bf16.msra.mxu0 0
        %618 = vmatprep.subr.bf16.mxu0 0
        %619 = vmatpush1.bf16.msra.mxu0 0
        %620 = vmatprep.subr.bf16.mxu0 0
        %621 = vmatpush1.bf16.msra.mxu0 0
        %622 = vmatprep.subr.bf16.mxu0 %v388
        %623 = vmatpush1.bf16.msra.mxu0 %v385
        %624 = vmatprep.subr.bf16.mxu0 0
        %625 = vmatpush2.bf16.msra.mxu0 0
        %626 = vmatprep.subr.bf16.mxu0 0
        %627 = vmatpush2.bf16.msra.mxu0 0
        %628 = vmatprep.subr.bf16.mxu0 0
        %629 = vmatpush2.bf16.msra.mxu0 0
        %630 = vmatprep.subr.bf16.mxu0 0
        %631 = vmatpush2.bf16.msra.mxu0 0
        %632 = vmatprep.subr.bf16.mxu0 0
        %633 = vmatpush2.bf16.msra.mxu0 0
        %634 = vmatprep.subr.bf16.mxu0 0
        %635 = vmatpush2.bf16.msra.mxu0 0
        %636 = vmatprep.subr.bf16.mxu0 0
        %637 = vmatpush2.bf16.msra.mxu0 0
        %638 = vmatprep.subr.bf16.mxu0 0
        %639 = vmatpush2.bf16.msra.mxu0 0
        %640 = vmatprep.mubr.bf16.mxu0 0
        %641 = vmatmul.mubr.bf16.gmra.mxu0 %v603
        %v642 = vpop.f32.mrf.mxu0
        %v643 = vadd.f32 0.0, %v642
        %v644 = vpop.f32.mrf.mxu0
        %v645 = vadd.f32 0.0, %v644
        %v646 = vpop.f32.mrf.mxu0
        %v647 = vadd.f32 0.0, %v646
        %v648 = vpop.f32.mrf.mxu0
        %v649 = vadd.f32 0.0, %v648
        %650 = vmatprep.mubr.bf16.mxu0 0
        %651 = vmatmul.mubr.bf16.gmra.mxu0 %v606
        %v652 = vpop.f32.mrf.mxu0
        %v653 = vadd.f32 0.0, %v652
        %v654 = vpop.f32.mrf.mxu0
        %v655 = vadd.f32 0.0, %v654
        %v656 = vpop.f32.mrf.mxu0
        %v657 = vadd.f32 0.0, %v656
        %v658 = vpop.f32.mrf.mxu0
        %v659 = vadd.f32 0.0, %v658
        %660 = vdwg.mxu0
        %v665 = vunpack.c.l.b16 %v579
        %v666 = vunpack.c.l.b16 %v580
        %v667 = vunpack.c.l.b16 %v581
        %v668 = vunpack.c.l.b16 %v582
        %v669 = vpack.c.b16 %v666, %v665
        %v670 = vpack.c.b16 %v668, %v667
        %v672 = vsel %vm502, %v669, 0
        %v675 = vsel %vm502, %v670, 0
        %677 = vmatprep.subr.bf16.mxu0 0
        %678 = vmatpush1.bf16.msra.mxu0 0
        %679 = vmatprep.subr.bf16.mxu0 0
        %680 = vmatpush1.bf16.msra.mxu0 0
        %681 = vmatprep.subr.bf16.mxu0 0
        %682 = vmatpush1.bf16.msra.mxu0 0
        %683 = vmatprep.subr.bf16.mxu0 0
        %684 = vmatpush1.bf16.msra.mxu0 0
        %685 = vmatprep.subr.bf16.mxu0 0
        %686 = vmatpush1.bf16.msra.mxu0 0
        %687 = vmatprep.subr.bf16.mxu0 0
        %688 = vmatpush1.bf16.msra.mxu0 0
        %689 = vmatprep.subr.bf16.mxu0 %v586
        %690 = vmatpush1.bf16.msra.mxu0 %v585
        %691 = vmatprep.subr.bf16.mxu0 %v584
        %692 = vmatpush1.bf16.msra.mxu0 %v583
        %693 = vmatprep.subr.bf16.mxu0 0
        %694 = vmatpush2.bf16.msra.mxu0 0
        %695 = vmatprep.subr.bf16.mxu0 0
        %696 = vmatpush2.bf16.msra.mxu0 0
        %697 = vmatprep.subr.bf16.mxu0 0
        %698 = vmatpush2.bf16.msra.mxu0 0
        %699 = vmatprep.subr.bf16.mxu0 0
        %700 = vmatpush2.bf16.msra.mxu0 0
        %701 = vmatprep.subr.bf16.mxu0 0
        %702 = vmatpush2.bf16.msra.mxu0 0
        %703 = vmatprep.subr.bf16.mxu0 0
        %704 = vmatpush2.bf16.msra.mxu0 0
        %705 = vmatprep.subr.bf16.mxu0 0
        %706 = vmatpush2.bf16.msra.mxu0 0
        %707 = vmatprep.subr.bf16.mxu0 0
        %708 = vmatpush2.bf16.msra.mxu0 0
        %709 = vmatprep.mubr.bf16.mxu0 0
        %710 = vmatmul.mubr.bf16.gmra.mxu0 %v672
        %v711 = vpop.f32.mrf.mxu0
        %v712 = vadd.f32 %v643, %v711
        %v713 = vpop.f32.mrf.mxu0
        %v714 = vadd.f32 %v645, %v713
        %v715 = vpop.f32.mrf.mxu0
        %v716 = vadd.f32 %v647, %v715
        %v717 = vpop.f32.mrf.mxu0
        %v718 = vadd.f32 %v649, %v717
        %719 = vmatprep.mubr.bf16.mxu0 0
        %720 = vmatmul.mubr.bf16.gmra.mxu0 %v675
        %v721 = vpop.f32.mrf.mxu0
        %v722 = vadd.f32 %v653, %v721
        %v723 = vpop.f32.mrf.mxu0
        %v724 = vadd.f32 %v655, %v723
        %v725 = vpop.f32.mrf.mxu0
        %v726 = vadd.f32 %v657, %v725
        %v727 = vpop.f32.mrf.mxu0
        %v728 = vadd.f32 %v659, %v727
        %729 = vdwg.mxu0
        %s730 = scalar_lea.vmem %s326, 64
        %v731 = vld [vmem:[%s730] sm:$0xff]
        %v732 = vld [vmem:[%s730 + $0x8] sm:$0xff]
        %v733 = vld [vmem:[%s730 + $0x10] sm:$0xff]
        %v734 = vld [vmem:[%s730 + $0x18] sm:$0xff]
        %736 = vset.pattern.permute.xlu0 0
        %737 = vperm.xlu0 %736, %v731
        %v738 = vpop.permute.xlu0 %737
        %741 = vset.pattern.permute.xlu0 0
        %742 = vperm.xlu0 %741, %v732
        %v743 = vpop.permute.xlu0 %742
        %746 = vset.pattern.permute.xlu0 0
        %747 = vperm.xlu0 %746, %v733
        %v748 = vpop.permute.xlu0 %747
        %751 = vset.pattern.permute.xlu0 0
        %752 = vperm.xlu0 %751, %v734
        %v753 = vpop.permute.xlu0 %752
        %v755 = vadd.f32 %v712, %v738
        %v756 = vadd.f32 %v714, %v738
        %v757 = vadd.f32 %v716, %v743
        %v758 = vadd.f32 %v718, %v743
        %v759 = vadd.f32 %v722, %v748
        %v760 = vadd.f32 %v724, %v748
        %v761 = vadd.f32 %v726, %v753
        %v762 = vadd.f32 %v728, %v753
        %vm763 = vcmp.gt.f32.partialorder %v755, 0.0
        %vm764 = vcmp.gt.f32.partialorder %v756, 0.0
        %vm765 = vcmp.gt.f32.partialorder %v757, 0.0
        %vm766 = vcmp.gt.f32.partialorder %v758, 0.0
        %vm767 = vcmp.gt.f32.partialorder %v759, 0.0
        %vm768 = vcmp.gt.f32.partialorder %v760, 0.0
        %vm769 = vcmp.gt.f32.partialorder %v761, 0.0
        %vm770 = vcmp.gt.f32.partialorder %v762, 0.0
        %v771 = vsel %vm763, %v755, 0.0
        %v772 = vsel %vm764, %v756, 0.0
        %v773 = vsel %vm765, %v757, 0.0
        %v774 = vsel %vm766, %v758, 0.0
        %v775 = vsel %vm767, %v759, 0.0
        %v776 = vsel %vm768, %v760, 0.0
        %v777 = vsel %vm769, %v761, 0.0
        %v778 = vsel %vm770, %v762, 0.0
        %s779 = scalar_lea.vmem %s1, 32
        %v780 = vld [vmem:[%s779] sm:$0xf]
        %v781 = vld [vmem:[%s779 + $0x4] sm:$0xf]
        %v782 = vld [vmem:[%s779 + $0x8] sm:$0xf]
        %v783 = vld [vmem:[%s779 + $0xc] sm:$0xf]
        %v784 = vpack.c.bf16 %v773, %v771
        %v785 = vpack.c.bf16 %v774, %v772
        %v786 = vpack.c.bf16 %v777, %v775
        %v787 = vpack.c.bf16 %v778, %v776
        %s788 = scalar_lea.vmem %s326, 96
        %v789 = vld [vmem:[%s788] sm:$0xff]
        %v790 = vld [vmem:[%s788 + $0x8] sm:$0xff]
        %v791 = vld [vmem:[%s788 + $0x10] sm:$0xff]
        %v792 = vld [vmem:[%s788 + $0x18] sm:$0xff]
        %794 = vset.pattern.permute.xlu0 0
        %795 = vperm.xlu0 %794, %v789
        %v796 = vpop.permute.xlu0 %795
        %799 = vset.pattern.permute.xlu0 0
        %800 = vperm.xlu0 %799, %v790
        %v801 = vpop.permute.xlu0 %800
        %804 = vset.pattern.permute.xlu0 0
        %805 = vperm.xlu0 %804, %v791
        %v806 = vpop.permute.xlu0 %805
        %809 = vset.pattern.permute.xlu0 0
        %810 = vperm.xlu0 %809, %v792
        %v811 = vpop.permute.xlu0 %810
        %v817 = vunpack.c.l.b16 %v780
        %v818 = vunpack.c.l.b16 %v781
        %v819 = vunpack.c.l.b16 %v782
        %v820 = vunpack.c.l.b16 %v783
        %v821 = vpack.c.b16 %v818, %v817
        %v822 = vpack.c.b16 %v820, %v819
        %v824 = vsel %vm502, %v821, 0
        %v827 = vsel %vm502, %v822, 0
        %829 = vmatprep.subr.bf16.mxu0 0
        %830 = vmatpush1.bf16.msra.mxu0 0
        %831 = vmatprep.subr.bf16.mxu0 0
        %832 = vmatpush1.bf16.msra.mxu0 0
        %833 = vmatprep.subr.bf16.mxu0 0
        %834 = vmatpush1.bf16.msra.mxu0 0
        %835 = vmatprep.subr.bf16.mxu0 0
        %836 = vmatpush1.bf16.msra.mxu0 0
        %837 = vmatprep.subr.bf16.mxu0 0
        %838 = vmatpush1.bf16.msra.mxu0 0
        %839 = vmatprep.subr.bf16.mxu0 0
        %840 = vmatpush1.bf16.msra.mxu0 0
        %841 = vmatprep.subr.bf16.mxu0 %v787
        %842 = vmatpush1.bf16.msra.mxu0 %v786
        %843 = vmatprep.subr.bf16.mxu0 %v785
        %844 = vmatpush1.bf16.msra.mxu0 %v784
        %845 = vmatprep.subr.bf16.mxu0 0
        %846 = vmatpush2.bf16.msra.mxu0 0
        %847 = vmatprep.subr.bf16.mxu0 0
        %848 = vmatpush2.bf16.msra.mxu0 0
        %849 = vmatprep.subr.bf16.mxu0 0
        %850 = vmatpush2.bf16.msra.mxu0 0
        %851 = vmatprep.subr.bf16.mxu0 0
        %852 = vmatpush2.bf16.msra.mxu0 0
        %853 = vmatprep.subr.bf16.mxu0 0
        %854 = vmatpush2.bf16.msra.mxu0 0
        %855 = vmatprep.subr.bf16.mxu0 0
        %856 = vmatpush2.bf16.msra.mxu0 0
        %857 = vmatprep.subr.bf16.mxu0 0
        %858 = vmatpush2.bf16.msra.mxu0 0
        %859 = vmatprep.subr.bf16.mxu0 0
        %860 = vmatpush2.bf16.msra.mxu0 0
        %861 = vmatprep.mubr.bf16.mxu0 0
        %862 = vmatmul.mubr.bf16.gmra.mxu0 %v824
        %v863 = vpop.f32.mrf.mxu0
        %v864 = vadd.f32 %v796, %v863
        %v865 = vpop.f32.mrf.mxu0
        %v866 = vadd.f32 %v796, %v865
        %v867 = vpop.f32.mrf.mxu0
        %v868 = vadd.f32 %v801, %v867
        %v869 = vpop.f32.mrf.mxu0
        %v870 = vadd.f32 %v801, %v869
        %871 = vmatprep.mubr.bf16.mxu0 0
        %872 = vmatmul.mubr.bf16.gmra.mxu0 %v827
        %v873 = vpop.f32.mrf.mxu0
        %v874 = vadd.f32 %v806, %v873
        %v875 = vpop.f32.mrf.mxu0
        %v876 = vadd.f32 %v806, %v875
        %v877 = vpop.f32.mrf.mxu0
        %v878 = vadd.f32 %v811, %v877
        %v879 = vpop.f32.mrf.mxu0
        %v880 = vadd.f32 %v811, %v879
        %881 = vdwg.mxu0
        %vm882 = vcmp.gt.f32.partialorder %v864, 0.0
        %vm883 = vcmp.gt.f32.partialorder %v866, 0.0
        %vm884 = vcmp.gt.f32.partialorder %v868, 0.0
        %vm885 = vcmp.gt.f32.partialorder %v870, 0.0
        %vm886 = vcmp.gt.f32.partialorder %v874, 0.0
        %vm887 = vcmp.gt.f32.partialorder %v876, 0.0
        %vm888 = vcmp.gt.f32.partialorder %v878, 0.0
        %vm889 = vcmp.gt.f32.partialorder %v880, 0.0
        %v890 = vsel %vm882, %v864, 0.0
        %v891 = vsel %vm883, %v866, 0.0
        %v892 = vsel %vm884, %v868, 0.0
        %v893 = vsel %vm885, %v870, 0.0
        %v894 = vsel %vm886, %v874, 0.0
        %v895 = vsel %vm887, %v876, 0.0
        %v896 = vsel %vm888, %v878, 0.0
        %v897 = vsel %vm889, %v880, 0.0
        %v898 = vld [vmem:[%s6] sm:$0xff]
        %v899 = vld [vmem:[%s6 + $0x8] sm:$0xff]
        %v900 = vld [vmem:[%s6 + $0x10] sm:$0xff]
        %v901 = vld [vmem:[%s6 + $0x18] sm:$0xff]
        %v902 = vld [vmem:[%s6 + $0x20] sm:$0x1]
        %904 = vset.pattern.permute.xlu0 0
        %905 = vperm.xlu0 %904, %v898
        %v906 = vpop.permute.xlu0 %905
        %909 = vset.pattern.permute.xlu0 0
        %910 = vperm.xlu0 %909, %v899
        %v911 = vpop.permute.xlu0 %910
        %914 = vset.pattern.permute.xlu0 0
        %915 = vperm.xlu0 %914, %v900
        %v916 = vpop.permute.xlu0 %915
        %919 = vset.pattern.permute.xlu0 0
        %920 = vperm.xlu0 %919, %v901
        %v921 = vpop.permute.xlu0 %920
        %v923 = vmul.f32 %v906, %v890
        %v924 = vmul.f32 %v906, %v891
        %v925 = vmul.f32 %v911, %v892
        %v926 = vmul.f32 %v911, %v893
        %v927 = vmul.f32 %v916, %v894
        %v928 = vmul.f32 %v916, %v895
        %v929 = vmul.f32 %v921, %v896
        %v930 = vmul.f32 %v921, %v897
        %v931 = vadd.f32 %v923, %v925
        %v932 = vadd.f32 %v931, %v927
        %v933 = vadd.f32 %v932, %v929
        %v934 = vrot.slane %v933, 4
        %v935 = vadd.f32 %v933, %v934
        %v936 = vrot.slane %v935, 2
        %v937 = vadd.f32 %v935, %v936
        %v938 = vrot.slane %v937, 1
        %v939 = vadd.f32 %v937, %v938
        %v940 = vadd.f32 %v924, %v926
        %v941 = vadd.f32 %v940, %v928
        %v942 = vadd.f32 %v941, %v930
        %v943 = vrot.slane %v942, 4
        %v944 = vadd.f32 %v942, %v943
        %v945 = vrot.slane %v944, 2
        %v946 = vadd.f32 %v944, %v945
        %v947 = vrot.slane %v946, 1
        %v948 = vadd.f32 %v946, %v947
        %950 = vset.pattern.permute.xlu0 0
        %951 = vperm.xlu0 %950, %v902
        %v952 = vpop.permute.xlu0 %951
        %v954 = vadd.f32 %v939, %v952
        %v955 = vadd.f32 %v948, %v952
        %v956 = vsel %vm882, %v906, 0.0
        %v957 = vsel %vm883, %v906, 0.0
        %v958 = vsel %vm884, %v911, 0.0
        %v959 = vsel %vm885, %v911, 0.0
        %v960 = vsel %vm886, %v916, 0.0
        %v961 = vsel %vm887, %v916, 0.0
        %v962 = vsel %vm888, %v921, 0.0
        %v963 = vsel %vm889, %v921, 0.0
        %s964 = scalar_lea.vmem %s2, 64
        %v965 = vld [vmem:[%s964] sm:$0xff]
        %v966 = vld [vmem:[%s964 + $0x8] sm:$0xff]
        %v967 = vld [vmem:[%s964 + $0x10] sm:$0xff]
        %v968 = vld [vmem:[%s964 + $0x18] sm:$0xff]
        %v970 = vsel %vm502, %v965, 0
        %v973 = vsel %vm502, %v966, 0
        %v976 = vsel %vm502, %v967, 0
        %v979 = vsel %vm502, %v968, 0
        %981 = vmatprep.subr.mxu0 0.0
        %982 = vmatpush1.msra.mxu0 0.0
        %983 = vmatprep.subr.mxu0 0.0
        %984 = vmatpush1.msra.mxu0 0.0
        %985 = vmatprep.subr.mxu0 0.0
        %986 = vmatpush1.msra.mxu0 0.0
        %987 = vmatprep.subr.mxu0 0.0
        %988 = vmatpush1.msra.mxu0 0.0
        %989 = vmatprep.subr.mxu0 0.0
        %990 = vmatpush1.msra.mxu0 0.0
        %991 = vmatprep.subr.mxu0 0.0
        %992 = vmatpush1.msra.mxu0 0.0
        %993 = vmatprep.subr.mxu0 0.0
        %994 = vmatpush1.msra.mxu0 0.0
        %995 = vmatprep.subr.mxu0 0.0
        %996 = vmatpush1.msra.mxu0 0.0
        %997 = vmatprep.subr.mxu0 0.0
        %998 = vmatpush1.msra.mxu0 0.0
        %999 = vmatprep.subr.mxu0 0.0
        %1000 = vmatpush1.msra.mxu0 0.0
        %1001 = vmatprep.subr.mxu0 0.0
        %1002 = vmatpush1.msra.mxu0 0.0
        %1003 = vmatprep.subr.mxu0 0.0
        %1004 = vmatpush1.msra.mxu0 0.0
        %1005 = vmatprep.subr.mxu0 %v963
        %1006 = vmatpush1.msra.mxu0 %v962
        %1007 = vmatprep.subr.mxu0 %v961
        %1008 = vmatpush1.msra.mxu0 %v960
        %1009 = vmatprep.subr.mxu0 %v959
        %1010 = vmatpush1.msra.mxu0 %v958
        %1011 = vmatprep.subr.mxu0 %v957
        %1012 = vmatpush1.msra.mxu0 %v956
        %1013 = vmatprep.subr.mxu0 0.0
        %1014 = vmatpush2.msra.mxu0 0.0
        %1015 = vmatprep.subr.mxu0 0.0
        %1016 = vmatpush2.msra.mxu0 0.0
        %1017 = vmatprep.subr.mxu0 0.0
        %1018 = vmatpush2.msra.mxu0 0.0
        %1019 = vmatprep.subr.mxu0 0.0
        %1020 = vmatpush2.msra.mxu0 0.0
        %1021 = vmatprep.subr.mxu0 0.0
        %1022 = vmatpush2.msra.mxu0 0.0
        %1023 = vmatprep.subr.mxu0 0.0
        %1024 = vmatpush2.msra.mxu0 0.0
        %1025 = vmatprep.subr.mxu0 0.0
        %1026 = vmatpush2.msra.mxu0 0.0
        %1027 = vmatprep.subr.mxu0 0.0
        %1028 = vmatpush2.msra.mxu0 0.0
        %1029 = vmatprep.subr.mxu0 0.0
        %1030 = vmatpush2.msra.mxu0 0.0
        %1031 = vmatprep.subr.mxu0 0.0
        %1032 = vmatpush2.msra.mxu0 0.0
        %1033 = vmatprep.subr.mxu0 0.0
        %1034 = vmatpush2.msra.mxu0 0.0
        %1035 = vmatprep.subr.mxu0 0.0
        %1036 = vmatpush2.msra.mxu0 0.0
        %1037 = vmatprep.subr.mxu0 0.0
        %1038 = vmatpush2.msra.mxu0 0.0
        %1039 = vmatprep.subr.mxu0 0.0
        %1040 = vmatpush2.msra.mxu0 0.0
        %1041 = vmatprep.subr.mxu0 0.0
        %1042 = vmatpush2.msra.mxu0 0.0
        %1043 = vmatprep.subr.mxu0 0.0
        %1044 = vmatpush2.msra.mxu0 0.0
        %1045 = vmatprep.mubr.f32.mxu0 0.0
        %1046 = vmatmul.mubr.f32.gmra.mxu0 %v970
        %v1047 = vpop.f32.mrf.mxu0
        %v1048 = vadd.f32 0.0, %v1047
        %v1049 = vpop.f32.mrf.mxu0
        %v1050 = vadd.f32 0.0, %v1049
        %1051 = vmatprep.mubr.f32.mxu0 0.0
        %1052 = vmatmul.mubr.f32.gmra.mxu0 %v973
        %v1053 = vpop.f32.mrf.mxu0
        %v1054 = vadd.f32 0.0, %v1053
        %v1055 = vpop.f32.mrf.mxu0
        %v1056 = vadd.f32 0.0, %v1055
        %1057 = vmatprep.mubr.f32.mxu0 0.0
        %1058 = vmatmul.mubr.f32.gmra.mxu0 %v976
        %v1059 = vpop.f32.mrf.mxu0
        %v1060 = vadd.f32 0.0, %v1059
        %v1061 = vpop.f32.mrf.mxu0
        %v1062 = vadd.f32 0.0, %v1061
        %1063 = vmatprep.mubr.f32.mxu0 0.0
        %1064 = vmatmul.mubr.f32.gmra.mxu0 %v979
        %v1065 = vpop.f32.mrf.mxu0
        %v1066 = vadd.f32 0.0, %v1065
        %v1067 = vpop.f32.mrf.mxu0
        %v1068 = vadd.f32 0.0, %v1067
        %1069 = vdwg.mxu0
        %v1070 = vsel %vm763, %v1048, 0.0
        %v1071 = vsel %vm764, %v1050, 0.0
        %v1072 = vsel %vm765, %v1054, 0.0
        %v1073 = vsel %vm766, %v1056, 0.0
        %v1074 = vsel %vm767, %v1060, 0.0
        %v1075 = vsel %vm768, %v1062, 0.0
        %v1076 = vsel %vm769, %v1066, 0.0
        %v1077 = vsel %vm770, %v1068, 0.0
        %s1078 = scalar_lea.vmem %s4, 4
        %v1079 = vld [vmem:[%s1078] sm:$0x7]
        %s1080 = scalar_lea.vmem %s2, 32
        %v1081 = vld [vmem:[%s1080] sm:$0xff]
        %v1082 = vld [vmem:[%s1080 + $0x8] sm:$0xff]
        %v1083 = vld [vmem:[%s1080 + $0x10] sm:$0xff]
        %v1084 = vld [vmem:[%s1080 + $0x18] sm:$0xff]
        %v1086 = vsel %vm502, %v1081, 0
        %v1089 = vsel %vm502, %v1082, 0
        %v1092 = vsel %vm502, %v1083, 0
        %v1095 = vsel %vm502, %v1084, 0
        %1097 = vmatprep.subr.mxu0 0.0
        %1098 = vmatpush1.msra.mxu0 0.0
        %1099 = vmatprep.subr.mxu0 0.0
        %1100 = vmatpush1.msra.mxu0 0.0
        %1101 = vmatprep.subr.mxu0 0.0
        %1102 = vmatpush1.msra.mxu0 0.0
        %1103 = vmatprep.subr.mxu0 0.0
        %1104 = vmatpush1.msra.mxu0 0.0
        %1105 = vmatprep.subr.mxu0 0.0
        %1106 = vmatpush1.msra.mxu0 0.0
        %1107 = vmatprep.subr.mxu0 0.0
        %1108 = vmatpush1.msra.mxu0 0.0
        %1109 = vmatprep.subr.mxu0 0.0
        %1110 = vmatpush1.msra.mxu0 0.0
        %1111 = vmatprep.subr.mxu0 0.0
        %1112 = vmatpush1.msra.mxu0 0.0
        %1113 = vmatprep.subr.mxu0 0.0
        %1114 = vmatpush1.msra.mxu0 0.0
        %1115 = vmatprep.subr.mxu0 0.0
        %1116 = vmatpush1.msra.mxu0 0.0
        %1117 = vmatprep.subr.mxu0 0.0
        %1118 = vmatpush1.msra.mxu0 0.0
        %1119 = vmatprep.subr.mxu0 0.0
        %1120 = vmatpush1.msra.mxu0 0.0
        %1121 = vmatprep.subr.mxu0 %v1077
        %1122 = vmatpush1.msra.mxu0 %v1076
        %1123 = vmatprep.subr.mxu0 %v1075
        %1124 = vmatpush1.msra.mxu0 %v1074
        %1125 = vmatprep.subr.mxu0 %v1073
        %1126 = vmatpush1.msra.mxu0 %v1072
        %1127 = vmatprep.subr.mxu0 %v1071
        %1128 = vmatpush1.msra.mxu0 %v1070
        %1129 = vmatprep.subr.mxu0 0.0
        %1130 = vmatpush2.msra.mxu0 0.0
        %1131 = vmatprep.subr.mxu0 0.0
        %1132 = vmatpush2.msra.mxu0 0.0
        %1133 = vmatprep.subr.mxu0 0.0
        %1134 = vmatpush2.msra.mxu0 0.0
        %1135 = vmatprep.subr.mxu0 0.0
        %1136 = vmatpush2.msra.mxu0 0.0
        %1137 = vmatprep.subr.mxu0 0.0
        %1138 = vmatpush2.msra.mxu0 0.0
        %1139 = vmatprep.subr.mxu0 0.0
        %1140 = vmatpush2.msra.mxu0 0.0
        %1141 = vmatprep.subr.mxu0 0.0
        %1142 = vmatpush2.msra.mxu0 0.0
        %1143 = vmatprep.subr.mxu0 0.0
        %1144 = vmatpush2.msra.mxu0 0.0
        %1145 = vmatprep.subr.mxu0 0.0
        %1146 = vmatpush2.msra.mxu0 0.0
        %1147 = vmatprep.subr.mxu0 0.0
        %1148 = vmatpush2.msra.mxu0 0.0
        %1149 = vmatprep.subr.mxu0 0.0
        %1150 = vmatpush2.msra.mxu0 0.0
        %1151 = vmatprep.subr.mxu0 0.0
        %1152 = vmatpush2.msra.mxu0 0.0
        %1153 = vmatprep.subr.mxu0 0.0
        %1154 = vmatpush2.msra.mxu0 0.0
        %1155 = vmatprep.subr.mxu0 0.0
        %1156 = vmatpush2.msra.mxu0 0.0
        %1157 = vmatprep.subr.mxu0 0.0
        %1158 = vmatpush2.msra.mxu0 0.0
        %1159 = vmatprep.subr.mxu0 0.0
        %1160 = vmatpush2.msra.mxu0 0.0
        %1161 = vmatprep.mubr.f32.mxu0 0.0
        %1162 = vmatmul.mubr.f32.gmra.mxu0 %v1086
        %v1163 = vpop.f32.mrf.mxu0
        %v1164 = vadd.f32 0.0, %v1163
        %v1165 = vpop.f32.mrf.mxu0
        %v1166 = vadd.f32 0.0, %v1165
        %1167 = vmatprep.mubr.f32.mxu0 0.0
        %1168 = vmatmul.mubr.f32.gmra.mxu0 %v1089
        %v1169 = vpop.f32.mrf.mxu0
        %v1170 = vadd.f32 0.0, %v1169
        %v1171 = vpop.f32.mrf.mxu0
        %v1172 = vadd.f32 0.0, %v1171
        %1173 = vmatprep.mubr.f32.mxu0 0.0
        %1174 = vmatmul.mubr.f32.gmra.mxu0 %v1092
        %v1175 = vpop.f32.mrf.mxu0
        %v1176 = vadd.f32 0.0, %v1175
        %v1177 = vpop.f32.mrf.mxu0
        %v1178 = vadd.f32 0.0, %v1177
        %1179 = vmatprep.mubr.f32.mxu0 0.0
        %1180 = vmatmul.mubr.f32.gmra.mxu0 %v1095
        %v1181 = vpop.f32.mrf.mxu0
        %v1182 = vadd.f32 0.0, %v1181
        %v1183 = vpop.f32.mrf.mxu0
        %v1184 = vadd.f32 0.0, %v1183
        %1185 = vdwg.mxu0
        %v1186 = vsel %vm562, %v1164, 0.0
        %v1187 = vsel %vm563, %v1166, 0.0
        %v1188 = vsel %vm564, %v1170, 0.0
        %v1189 = vsel %vm565, %v1172, 0.0
        %v1190 = vsel %vm566, %v1176, 0.0
        %v1191 = vsel %vm567, %v1178, 0.0
        %v1192 = vsel %vm568, %v1182, 0.0
        %v1193 = vsel %vm569, %v1184, 0.0
        %v1194 = vld [vmem:[%s2] sm:$0xff]
        %v1195 = vld [vmem:[%s2 + $0x8] sm:$0xff]
        %v1196 = vld [vmem:[%s2 + $0x10] sm:$0xff]
        %v1197 = vld [vmem:[%s2 + $0x18] sm:$0xff]
        %v1199 = vsel %vm502, %v1194, 0
        %v1202 = vsel %vm502, %v1195, 0
        %v1205 = vsel %vm502, %v1196, 0
        %v1208 = vsel %vm502, %v1197, 0
        %1210 = vmatprep.subr.mxu0 0.0
        %1211 = vmatpush1.msra.mxu0 0.0
        %1212 = vmatprep.subr.mxu0 0.0
        %1213 = vmatpush1.msra.mxu0 0.0
        %1214 = vmatprep.subr.mxu0 0.0
        %1215 = vmatpush1.msra.mxu0 0.0
        %1216 = vmatprep.subr.mxu0 0.0
        %1217 = vmatpush1.msra.mxu0 0.0
        %1218 = vmatprep.subr.mxu0 0.0
        %1219 = vmatpush1.msra.mxu0 0.0
        %1220 = vmatprep.subr.mxu0 0.0
        %1221 = vmatpush1.msra.mxu0 0.0
        %1222 = vmatprep.subr.mxu0 0.0
        %1223 = vmatpush1.msra.mxu0 0.0
        %1224 = vmatprep.subr.mxu0 0.0
        %1225 = vmatpush1.msra.mxu0 0.0
        %1226 = vmatprep.subr.mxu0 0.0
        %1227 = vmatpush1.msra.mxu0 0.0
        %1228 = vmatprep.subr.mxu0 0.0
        %1229 = vmatpush1.msra.mxu0 0.0
        %1230 = vmatprep.subr.mxu0 0.0
        %1231 = vmatpush1.msra.mxu0 0.0
        %1232 = vmatprep.subr.mxu0 0.0
        %1233 = vmatpush1.msra.mxu0 0.0
        %1234 = vmatprep.subr.mxu0 %v1193
        %1235 = vmatpush1.msra.mxu0 %v1192
        %1236 = vmatprep.subr.mxu0 %v1191
        %1237 = vmatpush1.msra.mxu0 %v1190
        %1238 = vmatprep.subr.mxu0 %v1189
        %1239 = vmatpush1.msra.mxu0 %v1188
        %1240 = vmatprep.subr.mxu0 %v1187
        %1241 = vmatpush1.msra.mxu0 %v1186
        %1242 = vmatprep.subr.mxu0 0.0
        %1243 = vmatpush2.msra.mxu0 0.0
        %1244 = vmatprep.subr.mxu0 0.0
        %1245 = vmatpush2.msra.mxu0 0.0
        %1246 = vmatprep.subr.mxu0 0.0
        %1247 = vmatpush2.msra.mxu0 0.0
        %1248 = vmatprep.subr.mxu0 0.0
        %1249 = vmatpush2.msra.mxu0 0.0
        %1250 = vmatprep.subr.mxu0 0.0
        %1251 = vmatpush2.msra.mxu0 0.0
        %1252 = vmatprep.subr.mxu0 0.0
        %1253 = vmatpush2.msra.mxu0 0.0
        %1254 = vmatprep.subr.mxu0 0.0
        %1255 = vmatpush2.msra.mxu0 0.0
        %1256 = vmatprep.subr.mxu0 0.0
        %1257 = vmatpush2.msra.mxu0 0.0
        %1258 = vmatprep.subr.mxu0 0.0
        %1259 = vmatpush2.msra.mxu0 0.0
        %1260 = vmatprep.subr.mxu0 0.0
        %1261 = vmatpush2.msra.mxu0 0.0
        %1262 = vmatprep.subr.mxu0 0.0
        %1263 = vmatpush2.msra.mxu0 0.0
        %1264 = vmatprep.subr.mxu0 0.0
        %1265 = vmatpush2.msra.mxu0 0.0
        %1266 = vmatprep.subr.mxu0 0.0
        %1267 = vmatpush2.msra.mxu0 0.0
        %1268 = vmatprep.subr.mxu0 0.0
        %1269 = vmatpush2.msra.mxu0 0.0
        %1270 = vmatprep.subr.mxu0 0.0
        %1271 = vmatpush2.msra.mxu0 0.0
        %1272 = vmatprep.subr.mxu0 0.0
        %1273 = vmatpush2.msra.mxu0 0.0
        %1274 = vmatprep.mubr.f32.mxu0 0.0
        %1275 = vmatmul.mubr.f32.gmra.mxu0 %v1199
        %v1276 = vpop.f32.mrf.mxu0
        %v1277 = vadd.f32 0.0, %v1276
        %v1278 = vpop.f32.mrf.mxu0
        %v1279 = vadd.f32 0.0, %v1278
        %1280 = vmatprep.mubr.f32.mxu0 0.0
        %1281 = vmatmul.mubr.f32.gmra.mxu0 %v1202
        %v1282 = vpop.f32.mrf.mxu0
        %v1283 = vadd.f32 0.0, %v1282
        %v1284 = vpop.f32.mrf.mxu0
        %v1285 = vadd.f32 0.0, %v1284
        %1286 = vmatprep.mubr.f32.mxu0 0.0
        %1287 = vmatmul.mubr.f32.gmra.mxu0 %v1205
        %v1288 = vpop.f32.mrf.mxu0
        %v1289 = vadd.f32 0.0, %v1288
        %v1290 = vpop.f32.mrf.mxu0
        %v1291 = vadd.f32 0.0, %v1290
        %1292 = vmatprep.mubr.f32.mxu0 0.0
        %1293 = vmatmul.mubr.f32.gmra.mxu0 %v1208
        %v1294 = vpop.f32.mrf.mxu0
        %v1295 = vadd.f32 0.0, %v1294
        %v1296 = vpop.f32.mrf.mxu0
        %v1297 = vadd.f32 0.0, %v1296
        %1298 = vdwg.mxu0
        %v1299 = vsel %vm443, %v1277, 0.0
        %v1300 = vsel %vm444, %v1279, 0.0
        %v1301 = vsel %vm445, %v1283, 0.0
        %v1302 = vsel %vm446, %v1285, 0.0
        %v1303 = vsel %vm447, %v1289, 0.0
        %v1304 = vsel %vm448, %v1291, 0.0
        %v1305 = vsel %vm449, %v1295, 0.0
        %v1306 = vsel %vm450, %v1297, 0.0
        %v1307 = vld [vmem:[%s4] sm:$0x7]
        %v1309 = vsel %vm502, %v1307, 0
        %1311 = vmatprep.subr.mxu0 0.0
        %1312 = vmatpush1.msra.mxu0 0.0
        %1313 = vmatprep.subr.mxu0 0.0
        %1314 = vmatpush1.msra.mxu0 0.0
        %1315 = vmatprep.subr.mxu0 0.0
        %1316 = vmatpush1.msra.mxu0 0.0
        %1317 = vmatprep.subr.mxu0 0.0
        %1318 = vmatpush1.msra.mxu0 0.0
        %1319 = vmatprep.subr.mxu0 0.0
        %1320 = vmatpush1.msra.mxu0 0.0
        %1321 = vmatprep.subr.mxu0 0.0
        %1322 = vmatpush1.msra.mxu0 0.0
        %1323 = vmatprep.subr.mxu0 0.0
        %1324 = vmatpush1.msra.mxu0 0.0
        %1325 = vmatprep.subr.mxu0 0.0
        %1326 = vmatpush1.msra.mxu0 0.0
        %1327 = vmatprep.subr.mxu0 0.0
        %1328 = vmatpush1.msra.mxu0 0.0
        %1329 = vmatprep.subr.mxu0 0.0
        %1330 = vmatpush1.msra.mxu0 0.0
        %1331 = vmatprep.subr.mxu0 0.0
        %1332 = vmatpush1.msra.mxu0 0.0
        %1333 = vmatprep.subr.mxu0 0.0
        %1334 = vmatpush1.msra.mxu0 0.0
        %1335 = vmatprep.subr.mxu0 %v1306
        %1336 = vmatpush1.msra.mxu0 %v1305
        %1337 = vmatprep.subr.mxu0 %v1304
        %1338 = vmatpush1.msra.mxu0 %v1303
        %1339 = vmatprep.subr.mxu0 %v1302
        %1340 = vmatpush1.msra.mxu0 %v1301
        %1341 = vmatprep.subr.mxu0 %v1300
        %1342 = vmatpush1.msra.mxu0 %v1299
        %1343 = vmatprep.subr.mxu0 0.0
        %1344 = vmatpush2.msra.mxu0 0.0
        %1345 = vmatprep.subr.mxu0 0.0
        %1346 = vmatpush2.msra.mxu0 0.0
        %1347 = vmatprep.subr.mxu0 0.0
        %1348 = vmatpush2.msra.mxu0 0.0
        %1349 = vmatprep.subr.mxu0 0.0
        %1350 = vmatpush2.msra.mxu0 0.0
        %1351 = vmatprep.subr.mxu0 0.0
        %1352 = vmatpush2.msra.mxu0 0.0
        %1353 = vmatprep.subr.mxu0 0.0
        %1354 = vmatpush2.msra.mxu0 0.0
        %1355 = vmatprep.subr.mxu0 0.0
        %1356 = vmatpush2.msra.mxu0 0.0
        %1357 = vmatprep.subr.mxu0 0.0
        %1358 = vmatpush2.msra.mxu0 0.0
        %1359 = vmatprep.subr.mxu0 0.0
        %1360 = vmatpush2.msra.mxu0 0.0
        %1361 = vmatprep.subr.mxu0 0.0
        %1362 = vmatpush2.msra.mxu0 0.0
        %1363 = vmatprep.subr.mxu0 0.0
        %1364 = vmatpush2.msra.mxu0 0.0
        %1365 = vmatprep.subr.mxu0 0.0
        %1366 = vmatpush2.msra.mxu0 0.0
        %1367 = vmatprep.subr.mxu0 0.0
        %1368 = vmatpush2.msra.mxu0 0.0
        %1369 = vmatprep.subr.mxu0 0.0
        %1370 = vmatpush2.msra.mxu0 0.0
        %1371 = vmatprep.subr.mxu0 0.0
        %1372 = vmatpush2.msra.mxu0 0.0
        %1373 = vmatprep.subr.mxu0 0.0
        %1374 = vmatpush2.msra.mxu0 0.0
        %1375 = vmatprep.mubr.f32.mxu0 0.0
        %1376 = vmatmul.mubr.f32.gmra.mxu0 %v1309
        %v1377 = vpop.f32.mrf.mxu0
        %v1378 = vadd.f32 0.0, %v1377
        %v1379 = vpop.f32.mrf.mxu0
        %v1380 = vadd.f32 0.0, %v1379
        %1381 = vdwg.mxu0
        %v1383 = vsel %vm502, %v1079, 0
        %1385 = vmatprep.subr.mxu0 0.0
        %1386 = vmatpush1.msra.mxu0 0.0
        %1387 = vmatprep.subr.mxu0 0.0
        %1388 = vmatpush1.msra.mxu0 0.0
        %1389 = vmatprep.subr.mxu0 0.0
        %1390 = vmatpush1.msra.mxu0 0.0
        %1391 = vmatprep.subr.mxu0 0.0
        %1392 = vmatpush1.msra.mxu0 0.0
        %1393 = vmatprep.subr.mxu0 0.0
        %1394 = vmatpush1.msra.mxu0 0.0
        %1395 = vmatprep.subr.mxu0 0.0
        %1396 = vmatpush1.msra.mxu0 0.0
        %1397 = vmatprep.subr.mxu0 0.0
        %1398 = vmatpush1.msra.mxu0 0.0
        %1399 = vmatprep.subr.mxu0 0.0
        %1400 = vmatpush1.msra.mxu0 0.0
        %1401 = vmatprep.subr.mxu0 0.0
        %1402 = vmatpush1.msra.mxu0 0.0
        %1403 = vmatprep.subr.mxu0 0.0
        %1404 = vmatpush1.msra.mxu0 0.0
        %1405 = vmatprep.subr.mxu0 0.0
        %1406 = vmatpush1.msra.mxu0 0.0
        %1407 = vmatprep.subr.mxu0 0.0
        %1408 = vmatpush1.msra.mxu0 0.0
        %1409 = vmatprep.subr.mxu0 %v1077
        %1410 = vmatpush1.msra.mxu0 %v1076
        %1411 = vmatprep.subr.mxu0 %v1075
        %1412 = vmatpush1.msra.mxu0 %v1074
        %1413 = vmatprep.subr.mxu0 %v1073
        %1414 = vmatpush1.msra.mxu0 %v1072
        %1415 = vmatprep.subr.mxu0 %v1071
        %1416 = vmatpush1.msra.mxu0 %v1070
        %1417 = vmatprep.subr.mxu0 0.0
        %1418 = vmatpush2.msra.mxu0 0.0
        %1419 = vmatprep.subr.mxu0 0.0
        %1420 = vmatpush2.msra.mxu0 0.0
        %1421 = vmatprep.subr.mxu0 0.0
        %1422 = vmatpush2.msra.mxu0 0.0
        %1423 = vmatprep.subr.mxu0 0.0
        %1424 = vmatpush2.msra.mxu0 0.0
        %1425 = vmatprep.subr.mxu0 0.0
        %1426 = vmatpush2.msra.mxu0 0.0
        %1427 = vmatprep.subr.mxu0 0.0
        %1428 = vmatpush2.msra.mxu0 0.0
        %1429 = vmatprep.subr.mxu0 0.0
        %1430 = vmatpush2.msra.mxu0 0.0
        %1431 = vmatprep.subr.mxu0 0.0
        %1432 = vmatpush2.msra.mxu0 0.0
        %1433 = vmatprep.subr.mxu0 0.0
        %1434 = vmatpush2.msra.mxu0 0.0
        %1435 = vmatprep.subr.mxu0 0.0
        %1436 = vmatpush2.msra.mxu0 0.0
        %1437 = vmatprep.subr.mxu0 0.0
        %1438 = vmatpush2.msra.mxu0 0.0
        %1439 = vmatprep.subr.mxu0 0.0
        %1440 = vmatpush2.msra.mxu0 0.0
        %1441 = vmatprep.subr.mxu0 0.0
        %1442 = vmatpush2.msra.mxu0 0.0
        %1443 = vmatprep.subr.mxu0 0.0
        %1444 = vmatpush2.msra.mxu0 0.0
        %1445 = vmatprep.subr.mxu0 0.0
        %1446 = vmatpush2.msra.mxu0 0.0
        %1447 = vmatprep.subr.mxu0 0.0
        %1448 = vmatpush2.msra.mxu0 0.0
        %1449 = vmatprep.mubr.f32.mxu0 0.0
        %1450 = vmatmul.mubr.f32.gmra.mxu0 %v1383
        %v1451 = vpop.f32.mrf.mxu0
        %v1452 = vadd.f32 %v1378, %v1451
        %v1453 = vpop.f32.mrf.mxu0
        %v1454 = vadd.f32 %v1380, %v1453
        %1455 = vdwg.mxu0
        %v1458 = vrot.slane %v1452, 7
        %v1459 = vrot.slane %v1454, 7
        %v1462 = vsel %vm380, %v954, %v1458
        %v1463 = vsel %vm380, %v955, %v1459
        %v1466 = vcombine.low %v1462, %v1463
        %1468 = vst [vmem:[%s311] sm:$0xff] %v1466
        %s1469 = sand.u32 %s202, 1
        %s1470 = scalar_lea.sflag [#allocation3], %s1469
        %s1471 = sand.u32 %s202, 1
        %s1472 = smul.addr %s1471, 8
        %s1473 = scalar_lea.vmem [#allocation2], %s1472
        // Predicated region
        $region49: #{tpu_custom_call.1} parent=47 // pred_check
          %p1474 = pneg %p212
        $region50: #{tpu_custom_call.1} parent=47 // pred_check_branch
          %1476 = sbr.rel (%p1474) target = $region52
        $region51: #{tpu_custom_call.1} parent=47 // pred_region
          %s1477 = smul.u32 2, %s26
          %s1479 = ssub.s32 128, 128
          %1480 = vsyncadd %s1470, %s1479
          %s1481 = smul.addr %s25, 2
          %s1482 = sadd.s32 %s1477, %s1481
          %s1483 = smul.addr %s1482, 64
          %s1484 = scalar_lea.hbm %s7, %s1483
          %s1486 = sshll.u32 %s1473, 4
          %s1487 = int_to_ptr.vmem [resolvable:$true] %s1486
          %1489 = dma.vmem_to_hbm [thread:$0]  %s1487, 128, %s1484, %s1470
        $region52: #{tpu_custom_call.1} parent=47 // pred_fallthru
          _
      $region48: #{tpu_custom_call.1} parent=5 // pred_fallthru
        _
      %p1490 = scmp.le.s32.totalorder 2, %s16
      // Predicated region
      $region53: #{tpu_custom_call.1} parent=5 // pred_check
        %p1491 = pneg %p1490
      $region54: #{tpu_custom_call.1} parent=5 // pred_check_branch
        %1493 = sbr.rel (%p1491) target = $region56
      $region55: #{tpu_custom_call.1} parent=5 // pred_region
        %s1494 = ssub.s32 %s16, 2
        // Predicated region
        $region57: #{tpu_custom_call.1} parent=55 // pred_check
          %p1495 = pneg %p218
        $region58: #{tpu_custom_call.1} parent=55 // pred_check_branch
          %1497 = sbr.rel (%p1495) target = $region60
        $region59: #{tpu_custom_call.1} parent=55 // pred_region
          %s1498 = sand.u32 %s203, 1
          %s1499 = scalar_lea.sflag [#allocation3], %s1498
          %s1500 = sand.u32 %s203, 1
          %s1501 = smul.addr %s1500, 8
          %s1502 = scalar_lea.vmem [#allocation2], %s1501
          %1503 = dma.done %s1499, 128
        $region60: #{tpu_custom_call.1} parent=55 // pred_fallthru
          _
      $region56: #{tpu_custom_call.1} parent=5 // pred_fallthru
        _
    $region6: #{tpu_custom_call.1} parent=1 // loop_footer
      %s20 = sadd.s32 1, %s16
    $region7: #{tpu_custom_call.1} parent=1 // loop_footer_branch
      %15 = sbr.rel target = $region3
    $region8: #{tpu_custom_call.1} parent=1 // loop_exit
      _
    %1504 = vsyncpa [#allocation3], 1
    %s1505 = scalar_lea.sflag [#allocation3], 1
    %1506 = vsyncpa %s1505, 1

</llo_original>
